<compile_context>
chip_gen: v6e
topology: v6e:2x2x1
jax: 0.10.0
libtpu: 0.0.40
codegen_flags: <defaults>
</compile_context>

<pallas_src>
import numpy as np
import jax
import jax.numpy as jnp
from jax import lax
from jax.experimental import pallas as pl
from jax.experimental.pallas import tpu as pltpu

LATENT_DIM = 96
IMAGE_SIZE = (1, 28, 28)
IMG_FLAT = int(np.prod(IMAGE_SIZE))      # 784
OUT_PAD = 896                            # 7 * 128, lane-aligned padded output width
HIDDEN = [128, 256, 512, 1024]
BN_EPS = 1e-5
_INV_SQRT2 = np.float32(1.0 / np.sqrt(2.0))


def _linear_bf16(x_f32, w_bf16, b_ref):
    # bf16 x bf16 MXU matmul with f32 accumulation, f32 bias broadcast.
    return jnp.dot(x_f32.astype(jnp.bfloat16), w_bf16,
                   preferred_element_type=jnp.float32) + b_ref[...]


def _bn_gelu(x, g_ref, bt_ref):
    # Training-mode BatchNorm1d (biased batch stats) folded into one per-feature
    # scale/shift, followed by exact (erf) GELU.
    mean = jnp.mean(x, axis=0, keepdims=True)
    var = jnp.mean((x - mean) ** 2, axis=0, keepdims=True)
    scale = g_ref[...] * lax.rsqrt(var + BN_EPS)      # (1, N)
    shift = bt_ref[...] - mean * scale                # (1, N)
    y = x * scale + shift
    return 0.5 * y * (1.0 + lax.erf(y * _INV_SQRT2))


def generator_kernel(
    z_ref,
    w1_ref, b1_ref, g1_ref, bt1_ref,
    w2_ref, b2_ref, g2_ref, bt2_ref,
    w3_hbm, b3_ref, g3_ref, bt3_ref,
    w4_hbm, b4_ref, g4_ref, bt4_ref,
    w5_hbm, b5_ref,
    out_ref,
    w3_buf, w4_buf, w5_buf, sem,
):
    # Kick off the tail-weight prefetch immediately; w3/w4/w5 stream HBM->VMEM
    # while layers 1 and 2 compute on the small VMEM-resident weights.
    cp3 = pltpu.make_async_copy(w3_hbm, w3_buf, sem.at[0]); cp3.start()
    cp4 = pltpu.make_async_copy(w4_hbm, w4_buf, sem.at[1]); cp4.start()
    cp5 = pltpu.make_async_copy(w5_hbm, w5_buf, sem.at[2]); cp5.start()

    x = z_ref[...].astype(jnp.float32)
    x = _bn_gelu(_linear_bf16(x, w1_ref[...], b1_ref), g1_ref, bt1_ref)
    x = _bn_gelu(_linear_bf16(x, w2_ref[...], b2_ref), g2_ref, bt2_ref)

    cp3.wait()
    x = _bn_gelu(_linear_bf16(x, w3_buf[...], b3_ref), g3_ref, bt3_ref)
    cp4.wait()
    x = _bn_gelu(_linear_bf16(x, w4_buf[...], b4_ref), g4_ref, bt4_ref)
    cp5.wait()
    logits = _linear_bf16(x, w5_buf[...], b5_ref)

    # Sigmoid: exp on the EUP, approximate reciprocal also on the EUP.
    out_ref[...] = pl.reciprocal(1.0 + jnp.exp(-logits), approx=True)


def generator_forward(z, kparams):
    """z: (B, LATENT_DIM) float32. kparams: output of prepare_params()."""
    B = z.shape[0]
    vmem = pl.BlockSpec(memory_space=pltpu.MemorySpace.VMEM)
    hbm = pl.BlockSpec(memory_space=pl.ANY)
    in_specs = [vmem] * (1 + len(kparams))
    for idx in (9, 13, 17):          # w3, w4, w5 stay in HBM; DMA'd manually
        in_specs[idx] = hbm

    out_flat = pl.pallas_call(
        generator_kernel,
        out_shape=jax.ShapeDtypeStruct((B, OUT_PAD), jnp.float32),
        in_specs=in_specs,
        out_specs=vmem,
        scratch_shapes=[
            pltpu.VMEM((HIDDEN[1], HIDDEN[2]), jnp.bfloat16),   # w3 buffer (256, 512)
            pltpu.VMEM((HIDDEN[2], HIDDEN[3]), jnp.bfloat16),   # w4 buffer (512, 1024)
            pltpu.VMEM((HIDDEN[3], OUT_PAD), jnp.bfloat16),     # w5 buffer (1024, 896)
            pltpu.SemaphoreType.DMA((3,)),
        ],
        compiler_params=pltpu.CompilerParams(vmem_limit_bytes=32 << 20),
    )(z, *kparams)
    # Drop the lane padding, then reshape(z.shape[0], *image_size) -> NCHW.
    return out_flat[:, :IMG_FLAT].reshape(B, *IMAGE_SIZE)
    # TODO(synk): for large batches, add a batch grid axis ("parallel" for the
    # two v7x TensorCores) with a cross-tile reduction for training-mode BN stats.


def init_params(key):
    """Deterministic synthetic f32 parameters with the PyTorch module's shapes."""
    dims = [LATENT_DIM] + HIDDEN + [IMG_FLAT]
    params = []
    keys = jax.random.split(key, 2 * (len(dims) - 1) + 2 * len(HIDDEN))
    ki = 0
    for li in range(len(dims) - 1):
        fan_in, fan_out = dims[li], dims[li + 1]
        w = jax.random.normal(keys[ki], (fan_in, fan_out), jnp.float32) * (1.0 / np.sqrt(fan_in)); ki += 1
        b = jax.random.normal(keys[ki], (1, fan_out), jnp.float32) * 0.01; ki += 1
        params.extend([w, b])
        if li < len(HIDDEN):  # BatchNorm after every hidden Linear (not the last)
            gamma = 1.0 + 0.1 * jax.random.normal(keys[ki], (1, fan_out), jnp.float32); ki += 1
            beta = 0.1 * jax.random.normal(keys[ki], (1, fan_out), jnp.float32); ki += 1
            params.extend([gamma, beta])
    return params


def prepare_params(params):
    """One-time packing: weights -> bf16 (halves HBM traffic), last layer padded
    to OUT_PAD lanes. Biases / BN params stay f32."""
    kp = []
    idx = 0
    for _ in range(len(HIDDEN)):
        w, b, g, bt = params[idx:idx + 4]
        idx += 4
        kp.extend([w.astype(jnp.bfloat16), b, g, bt])
    w5, b5 = params[idx], params[idx + 1]
    pad = OUT_PAD - IMG_FLAT
    kp.append(jnp.pad(w5, ((0, 0), (0, pad))).astype(jnp.bfloat16))
    kp.append(jnp.pad(b5, ((0, 0), (0, pad))))
    return kp


def reference_forward(z, kparams):
    """Pure-JAX reference performing the SAME bf16-weight math as the kernel."""
    x = z.astype(jnp.float32)
    idx = 0
    for _ in range(len(HIDDEN)):
        w, b, g, bt = kparams[idx:idx + 4]
        idx += 4
        x = jnp.dot(x.astype(jnp.bfloat16), w, preferred_element_type=jnp.float32) + b
        mean = jnp.mean(x, axis=0, keepdims=True)
        var = jnp.mean((x - mean) ** 2, axis=0, keepdims=True)
        scale = g * lax.rsqrt(var + BN_EPS)
        shift = bt - mean * scale
        x = x * scale + shift
        x = 0.5 * x * (1.0 + lax.erf(x * _INV_SQRT2))
    w5, b5 = kparams[idx], kparams[idx + 1]
    logits = jnp.dot(x.astype(jnp.bfloat16), w5, preferred_element_type=jnp.float32) + b5
    x = 1.0 / (1.0 + jnp.exp(-logits))
    return x[:, :IMG_FLAT].reshape(z.shape[0], *IMAGE_SIZE)


def reference_forward_f32(z, params):
    """Full-f32 PyTorch-spec reference (kept for documentation; not asserted
    against because the kernel intentionally stores weights in bf16)."""
    x = z
    idx = 0
    for _ in range(len(HIDDEN)):
        w, b, g, bt = params[idx:idx + 4]
        idx += 4
        x = x @ w + b
        mean = jnp.mean(x, axis=0, keepdims=True)
        var = jnp.mean((x - mean) ** 2, axis=0, keepdims=True)
        x = (x - mean) / jnp.sqrt(var + BN_EPS) * g + bt
        x = 0.5 * x * (1.0 + lax.erf(x * _INV_SQRT2))
    w, b = params[idx], params[idx + 1]
    return jax.nn.sigmoid(x @ w + b).reshape(z.shape[0], *IMAGE_SIZE)


if __name__ == "__main__":
    key = jax.random.PRNGKey(0)
    k_params, k_z = jax.random.split(key)

    B = 8  # small batch; training-mode BatchNorm needs B > 1
    z = jax.random.normal(k_z, (B, LATENT_DIM), jnp.float32)
    params = init_params(k_params)
    kparams = prepare_params(params)

    fwd = jax.jit(generator_forward)
    img = jax.block_until_ready(fwd(z, kparams))

    assert img.shape == (B, *IMAGE_SIZE), img.shape
    assert img.dtype == jnp.float32

    ref = jax.block_until_ready(reference_forward(z, kparams))
    np.testing.assert_allclose(np.asarray(img), np.asarray(ref), rtol=5e-3, atol=5e-3)

    print("KERNEL_OK")
</pallas_src>

<mosaic_0001>
module attributes {stable_mosaic.version = 11 : i64} {
  func.func @generator_kernel(%arg0: memref<8x96xf32, #tpu.memory_space<vmem>>, %arg1: memref<96x128xbf16, #tpu.memory_space<vmem>>, %arg2: memref<1x128xf32, #tpu.memory_space<vmem>>, %arg3: memref<1x128xf32, #tpu.memory_space<vmem>>, %arg4: memref<1x128xf32, #tpu.memory_space<vmem>>, %arg5: memref<128x256xbf16, #tpu.memory_space<vmem>>, %arg6: memref<1x256xf32, #tpu.memory_space<vmem>>, %arg7: memref<1x256xf32, #tpu.memory_space<vmem>>, %arg8: memref<1x256xf32, #tpu.memory_space<vmem>>, %arg9: memref<256x512xbf16, #tpu.memory_space<any>>, %arg10: memref<1x512xf32, #tpu.memory_space<vmem>>, %arg11: memref<1x512xf32, #tpu.memory_space<vmem>>, %arg12: memref<1x512xf32, #tpu.memory_space<vmem>>, %arg13: memref<512x1024xbf16, #tpu.memory_space<any>>, %arg14: memref<1x1024xf32, #tpu.memory_space<vmem>>, %arg15: memref<1x1024xf32, #tpu.memory_space<vmem>>, %arg16: memref<1x1024xf32, #tpu.memory_space<vmem>>, %arg17: memref<1024x896xbf16, #tpu.memory_space<any>>, %arg18: memref<1x896xf32, #tpu.memory_space<vmem>>, %arg19: memref<8x896xf32, #tpu.memory_space<vmem>>, %arg20: memref<256x512xbf16, #tpu.memory_space<vmem>>, %arg21: memref<512x1024xbf16, #tpu.memory_space<vmem>>, %arg22: memref<1024x896xbf16, #tpu.memory_space<vmem>>, %arg23: memref<3x!tpu.dma_semaphore, #tpu.memory_space<semaphore_mem>>) attributes {dimension_semantics = [], scalar_prefetch = 0 : i64, scratch_operands = 4 : i64, tpu.core_type = #tpu.core_type<tc>} {
    %c0_i32 = arith.constant 0 : i32
    %0 = tpu.memref_slice %arg23[%c0_i32] : memref<3x!tpu.dma_semaphore, #tpu.memory_space<semaphore_mem>> -> memref<1x!tpu.dma_semaphore, #tpu.memory_space<semaphore_mem>>
    %1 = tpu.memref_squeeze %0 : memref<1x!tpu.dma_semaphore, #tpu.memory_space<semaphore_mem>> -> memref<!tpu.dma_semaphore, #tpu.memory_space<semaphore_mem>>
    tpu.enqueue_dma source(%arg9 : memref<256x512xbf16, #tpu.memory_space<any>>) target(%arg20 : memref<256x512xbf16, #tpu.memory_space<vmem>>) target_semaphore(%1 : memref<!tpu.dma_semaphore, #tpu.memory_space<semaphore_mem>>)
    %c1_i32 = arith.constant 1 : i32
    %2 = tpu.memref_slice %arg23[%c1_i32] : memref<3x!tpu.dma_semaphore, #tpu.memory_space<semaphore_mem>> -> memref<1x!tpu.dma_semaphore, #tpu.memory_space<semaphore_mem>>
    %3 = tpu.memref_squeeze %2 : memref<1x!tpu.dma_semaphore, #tpu.memory_space<semaphore_mem>> -> memref<!tpu.dma_semaphore, #tpu.memory_space<semaphore_mem>>
    tpu.enqueue_dma source(%arg13 : memref<512x1024xbf16, #tpu.memory_space<any>>) target(%arg21 : memref<512x1024xbf16, #tpu.memory_space<vmem>>) target_semaphore(%3 : memref<!tpu.dma_semaphore, #tpu.memory_space<semaphore_mem>>)
    %c2_i32 = arith.constant 2 : i32
    %4 = tpu.memref_slice %arg23[%c2_i32] : memref<3x!tpu.dma_semaphore, #tpu.memory_space<semaphore_mem>> -> memref<1x!tpu.dma_semaphore, #tpu.memory_space<semaphore_mem>>
    %5 = tpu.memref_squeeze %4 : memref<1x!tpu.dma_semaphore, #tpu.memory_space<semaphore_mem>> -> memref<!tpu.dma_semaphore, #tpu.memory_space<semaphore_mem>>
    tpu.enqueue_dma source(%arg17 : memref<1024x896xbf16, #tpu.memory_space<any>>) target(%arg22 : memref<1024x896xbf16, #tpu.memory_space<vmem>>) target_semaphore(%5 : memref<!tpu.dma_semaphore, #tpu.memory_space<semaphore_mem>>)
    %c0 = arith.constant 0 : index
    %c0_0 = arith.constant 0 : index
    %6 = vector.load %arg0[%c0, %c0_0] : memref<8x96xf32, #tpu.memory_space<vmem>>, vector<8x96xf32>
    %c0_1 = arith.constant 0 : index
    %c0_2 = arith.constant 0 : index
    %7 = vector.load %arg1[%c0_1, %c0_2] : memref<96x128xbf16, #tpu.memory_space<vmem>>, vector<96x128xbf16>
    %8 = arith.truncf %6 : vector<8x96xf32> to vector<8x96xbf16>
    %cst = arith.constant dense<0.000000e+00> : vector<8x128xf32>
    %9 = tpu.matmul %8, %7, %cst {dimension_numbers = #tpu.dot_dimension_numbers<[1], [0], [0], [1], [0, 0, 1, 1], [], []>} : vector<8x96xbf16>, vector<96x128xbf16>, vector<8x128xf32> -> vector<8x128xf32>
    %c0_3 = arith.constant 0 : index
    %c0_4 = arith.constant 0 : index
    %10 = vector.load %arg2[%c0_3, %c0_4] : memref<1x128xf32, #tpu.memory_space<vmem>>, vector<1x128xf32>
    %11 = vector.broadcast %10 : vector<1x128xf32> to vector<8x128xf32>
    %12 = arith.addf %9, %11 : vector<8x128xf32>
    %cst_5 = arith.constant dense<0.000000e+00> : vector<128xf32>
    %13 = vector.multi_reduction <add>, %12, %cst_5 [0] : vector<8x128xf32> to vector<128xf32>
    %14 = vector.shape_cast %13 : vector<128xf32> to vector<1x128xf32>
    %cst_6 = arith.constant 8.000000e+00 : f32
    %15 = vector.broadcast %cst_6 : f32 to vector<1x128xf32>
    %16 = arith.divf %14, %15 : vector<1x128xf32>
    %17 = vector.broadcast %16 : vector<1x128xf32> to vector<8x128xf32>
    %18 = arith.subf %12, %17 : vector<8x128xf32>
    %19 = arith.mulf %18, %18 : vector<8x128xf32>
    %cst_7 = arith.constant dense<0.000000e+00> : vector<128xf32>
    %20 = vector.multi_reduction <add>, %19, %cst_7 [0] : vector<8x128xf32> to vector<128xf32>
    %21 = vector.shape_cast %20 : vector<128xf32> to vector<1x128xf32>
    %cst_8 = arith.constant 8.000000e+00 : f32
    %22 = vector.broadcast %cst_8 : f32 to vector<1x128xf32>
    %23 = arith.divf %21, %22 : vector<1x128xf32>
    %c0_9 = arith.constant 0 : index
    %c0_10 = arith.constant 0 : index
    %24 = vector.load %arg3[%c0_9, %c0_10] : memref<1x128xf32, #tpu.memory_space<vmem>>, vector<1x128xf32>
    %cst_11 = arith.constant 9.99999974E-6 : f32
    %25 = vector.broadcast %cst_11 : f32 to vector<1x128xf32>
    %26 = arith.addf %23, %25 : vector<1x128xf32>
    %27 = math.rsqrt %26 : vector<1x128xf32>
    %28 = arith.mulf %24, %27 : vector<1x128xf32>
    %c0_12 = arith.constant 0 : index
    %c0_13 = arith.constant 0 : index
    %29 = vector.load %arg4[%c0_12, %c0_13] : memref<1x128xf32, #tpu.memory_space<vmem>>, vector<1x128xf32>
    %30 = arith.mulf %16, %28 : vector<1x128xf32>
    %31 = arith.subf %29, %30 : vector<1x128xf32>
    %32 = vector.broadcast %28 : vector<1x128xf32> to vector<8x128xf32>
    %33 = arith.mulf %12, %32 : vector<8x128xf32>
    %34 = vector.broadcast %31 : vector<1x128xf32> to vector<8x128xf32>
    %35 = arith.addf %33, %34 : vector<8x128xf32>
    %cst_14 = arith.constant 5.000000e-01 : f32
    %36 = vector.broadcast %cst_14 : f32 to vector<8x128xf32>
    %37 = arith.mulf %36, %35 : vector<8x128xf32>
    %cst_15 = arith.constant 0.707106769 : f32
    %38 = vector.broadcast %cst_15 : f32 to vector<8x128xf32>
    %39 = arith.mulf %35, %38 : vector<8x128xf32>
    %40 = math.erf %39 : vector<8x128xf32>
    %cst_16 = arith.constant 1.000000e+00 : f32
    %41 = vector.broadcast %cst_16 : f32 to vector<8x128xf32>
    %42 = arith.addf %41, %40 : vector<8x128xf32>
    %43 = arith.mulf %37, %42 : vector<8x128xf32>
    %c0_17 = arith.constant 0 : index
    %c0_18 = arith.constant 0 : index
    %44 = vector.load %arg5[%c0_17, %c0_18] : memref<128x256xbf16, #tpu.memory_space<vmem>>, vector<128x256xbf16>
    %45 = arith.truncf %43 : vector<8x128xf32> to vector<8x128xbf16>
    %cst_19 = arith.constant dense<0.000000e+00> : vector<8x256xf32>
    %46 = tpu.matmul %45, %44, %cst_19 {dimension_numbers = #tpu.dot_dimension_numbers<[1], [0], [0], [1], [0, 0, 1, 1], [], []>} : vector<8x128xbf16>, vector<128x256xbf16>, vector<8x256xf32> -> vector<8x256xf32>
    %c0_20 = arith.constant 0 : index
    %c0_21 = arith.constant 0 : index
    %47 = vector.load %arg6[%c0_20, %c0_21] : memref<1x256xf32, #tpu.memory_space<vmem>>, vector<1x256xf32>
    %48 = vector.broadcast %47 : vector<1x256xf32> to vector<8x256xf32>
    %49 = arith.addf %46, %48 : vector<8x256xf32>
    %cst_22 = arith.constant dense<0.000000e+00> : vector<256xf32>
    %50 = vector.multi_reduction <add>, %49, %cst_22 [0] : vector<8x256xf32> to vector<256xf32>
    %51 = vector.shape_cast %50 : vector<256xf32> to vector<1x256xf32>
    %cst_23 = arith.constant 8.000000e+00 : f32
    %52 = vector.broadcast %cst_23 : f32 to vector<1x256xf32>
    %53 = arith.divf %51, %52 : vector<1x256xf32>
    %54 = vector.broadcast %53 : vector<1x256xf32> to vector<8x256xf32>
    %55 = arith.subf %49, %54 : vector<8x256xf32>
    %56 = arith.mulf %55, %55 : vector<8x256xf32>
    %cst_24 = arith.constant dense<0.000000e+00> : vector<256xf32>
    %57 = vector.multi_reduction <add>, %56, %cst_24 [0] : vector<8x256xf32> to vector<256xf32>
    %58 = vector.shape_cast %57 : vector<256xf32> to vector<1x256xf32>
    %cst_25 = arith.constant 8.000000e+00 : f32
    %59 = vector.broadcast %cst_25 : f32 to vector<1x256xf32>
    %60 = arith.divf %58, %59 : vector<1x256xf32>
    %c0_26 = arith.constant 0 : index
    %c0_27 = arith.constant 0 : index
    %61 = vector.load %arg7[%c0_26, %c0_27] : memref<1x256xf32, #tpu.memory_space<vmem>>, vector<1x256xf32>
    %cst_28 = arith.constant 9.99999974E-6 : f32
    %62 = vector.broadcast %cst_28 : f32 to vector<1x256xf32>
    %63 = arith.addf %60, %62 : vector<1x256xf32>
    %64 = math.rsqrt %63 : vector<1x256xf32>
    %65 = arith.mulf %61, %64 : vector<1x256xf32>
    %c0_29 = arith.constant 0 : index
    %c0_30 = arith.constant 0 : index
    %66 = vector.load %arg8[%c0_29, %c0_30] : memref<1x256xf32, #tpu.memory_space<vmem>>, vector<1x256xf32>
    %67 = arith.mulf %53, %65 : vector<1x256xf32>
    %68 = arith.subf %66, %67 : vector<1x256xf32>
    %69 = vector.broadcast %65 : vector<1x256xf32> to vector<8x256xf32>
    %70 = arith.mulf %49, %69 : vector<8x256xf32>
    %71 = vector.broadcast %68 : vector<1x256xf32> to vector<8x256xf32>
    %72 = arith.addf %70, %71 : vector<8x256xf32>
    %cst_31 = arith.constant 5.000000e-01 : f32
    %73 = vector.broadcast %cst_31 : f32 to vector<8x256xf32>
    %74 = arith.mulf %73, %72 : vector<8x256xf32>
    %cst_32 = arith.constant 0.707106769 : f32
    %75 = vector.broadcast %cst_32 : f32 to vector<8x256xf32>
    %76 = arith.mulf %72, %75 : vector<8x256xf32>
    %77 = math.erf %76 : vector<8x256xf32>
    %cst_33 = arith.constant 1.000000e+00 : f32
    %78 = vector.broadcast %cst_33 : f32 to vector<8x256xf32>
    %79 = arith.addf %78, %77 : vector<8x256xf32>
    %80 = arith.mulf %74, %79 : vector<8x256xf32>
    %c0_i32_34 = arith.constant 0 : i32
    %81 = tpu.memref_slice %arg23[%c0_i32_34] : memref<3x!tpu.dma_semaphore, #tpu.memory_space<semaphore_mem>> -> memref<1x!tpu.dma_semaphore, #tpu.memory_space<semaphore_mem>>
    %82 = tpu.memref_squeeze %81 : memref<1x!tpu.dma_semaphore, #tpu.memory_space<semaphore_mem>> -> memref<!tpu.dma_semaphore, #tpu.memory_space<semaphore_mem>>
    tpu.wait_dma2 semaphore(%82 : memref<!tpu.dma_semaphore, #tpu.memory_space<semaphore_mem>>) src(%arg9 : memref<256x512xbf16, #tpu.memory_space<any>>) dst(%arg20 : memref<256x512xbf16, #tpu.memory_space<vmem>>)
    %c0_35 = arith.constant 0 : index
    %c0_36 = arith.constant 0 : index
    %83 = vector.load %arg20[%c0_35, %c0_36] : memref<256x512xbf16, #tpu.memory_space<vmem>>, vector<256x512xbf16>
    %84 = arith.truncf %80 : vector<8x256xf32> to vector<8x256xbf16>
    %cst_37 = arith.constant dense<0.000000e+00> : vector<8x512xf32>
    %85 = tpu.matmul %84, %83, %cst_37 {dimension_numbers = #tpu.dot_dimension_numbers<[1], [0], [0], [1], [0, 0, 1, 1], [], []>} : vector<8x256xbf16>, vector<256x512xbf16>, vector<8x512xf32> -> vector<8x512xf32>
    %c0_38 = arith.constant 0 : index
    %c0_39 = arith.constant 0 : index
    %86 = vector.load %arg10[%c0_38, %c0_39] : memref<1x512xf32, #tpu.memory_space<vmem>>, vector<1x512xf32>
    %87 = vector.broadcast %86 : vector<1x512xf32> to vector<8x512xf32>
    %88 = arith.addf %85, %87 : vector<8x512xf32>
    %cst_40 = arith.constant dense<0.000000e+00> : vector<512xf32>
    %89 = vector.multi_reduction <add>, %88, %cst_40 [0] : vector<8x512xf32> to vector<512xf32>
    %90 = vector.shape_cast %89 : vector<512xf32> to vector<1x512xf32>
    %cst_41 = arith.constant 8.000000e+00 : f32
    %91 = vector.broadcast %cst_41 : f32 to vector<1x512xf32>
    %92 = arith.divf %90, %91 : vector<1x512xf32>
    %93 = vector.broadcast %92 : vector<1x512xf32> to vector<8x512xf32>
    %94 = arith.subf %88, %93 : vector<8x512xf32>
    %95 = arith.mulf %94, %94 : vector<8x512xf32>
    %cst_42 = arith.constant dense<0.000000e+00> : vector<512xf32>
    %96 = vector.multi_reduction <add>, %95, %cst_42 [0] : vector<8x512xf32> to vector<512xf32>
    %97 = vector.shape_cast %96 : vector<512xf32> to vector<1x512xf32>
    %cst_43 = arith.constant 8.000000e+00 : f32
    %98 = vector.broadcast %cst_43 : f32 to vector<1x512xf32>
    %99 = arith.divf %97, %98 : vector<1x512xf32>
    %c0_44 = arith.constant 0 : index
    %c0_45 = arith.constant 0 : index
    %100 = vector.load %arg11[%c0_44, %c0_45] : memref<1x512xf32, #tpu.memory_space<vmem>>, vector<1x512xf32>
    %cst_46 = arith.constant 9.99999974E-6 : f32
    %101 = vector.broadcast %cst_46 : f32 to vector<1x512xf32>
    %102 = arith.addf %99, %101 : vector<1x512xf32>
    %103 = math.rsqrt %102 : vector<1x512xf32>
    %104 = arith.mulf %100, %103 : vector<1x512xf32>
    %c0_47 = arith.constant 0 : index
    %c0_48 = arith.constant 0 : index
    %105 = vector.load %arg12[%c0_47, %c0_48] : memref<1x512xf32, #tpu.memory_space<vmem>>, vector<1x512xf32>
    %106 = arith.mulf %92, %104 : vector<1x512xf32>
    %107 = arith.subf %105, %106 : vector<1x512xf32>
    %108 = vector.broadcast %104 : vector<1x512xf32> to vector<8x512xf32>
    %109 = arith.mulf %88, %108 : vector<8x512xf32>
    %110 = vector.broadcast %107 : vector<1x512xf32> to vector<8x512xf32>
    %111 = arith.addf %109, %110 : vector<8x512xf32>
    %cst_49 = arith.constant 5.000000e-01 : f32
    %112 = vector.broadcast %cst_49 : f32 to vector<8x512xf32>
    %113 = arith.mulf %112, %111 : vector<8x512xf32>
    %cst_50 = arith.constant 0.707106769 : f32
    %114 = vector.broadcast %cst_50 : f32 to vector<8x512xf32>
    %115 = arith.mulf %111, %114 : vector<8x512xf32>
    %116 = math.erf %115 : vector<8x512xf32>
    %cst_51 = arith.constant 1.000000e+00 : f32
    %117 = vector.broadcast %cst_51 : f32 to vector<8x512xf32>
    %118 = arith.addf %117, %116 : vector<8x512xf32>
    %119 = arith.mulf %113, %118 : vector<8x512xf32>
    %c1_i32_52 = arith.constant 1 : i32
    %120 = tpu.memref_slice %arg23[%c1_i32_52] : memref<3x!tpu.dma_semaphore, #tpu.memory_space<semaphore_mem>> -> memref<1x!tpu.dma_semaphore, #tpu.memory_space<semaphore_mem>>
    %121 = tpu.memref_squeeze %120 : memref<1x!tpu.dma_semaphore, #tpu.memory_space<semaphore_mem>> -> memref<!tpu.dma_semaphore, #tpu.memory_space<semaphore_mem>>
    tpu.wait_dma2 semaphore(%121 : memref<!tpu.dma_semaphore, #tpu.memory_space<semaphore_mem>>) src(%arg13 : memref<512x1024xbf16, #tpu.memory_space<any>>) dst(%arg21 : memref<512x1024xbf16, #tpu.memory_space<vmem>>)
    %c0_53 = arith.constant 0 : index
    %c0_54 = arith.constant 0 : index
    %122 = vector.load %arg21[%c0_53, %c0_54] : memref<512x1024xbf16, #tpu.memory_space<vmem>>, vector<512x1024xbf16>
    %123 = arith.truncf %119 : vector<8x512xf32> to vector<8x512xbf16>
    %cst_55 = arith.constant dense<0.000000e+00> : vector<8x1024xf32>
    %124 = tpu.matmul %123, %122, %cst_55 {dimension_numbers = #tpu.dot_dimension_numbers<[1], [0], [0], [1], [0, 0, 1, 1], [], []>} : vector<8x512xbf16>, vector<512x1024xbf16>, vector<8x1024xf32> -> vector<8x1024xf32>
    %c0_56 = arith.constant 0 : index
    %c0_57 = arith.constant 0 : index
    %125 = vector.load %arg14[%c0_56, %c0_57] : memref<1x1024xf32, #tpu.memory_space<vmem>>, vector<1x1024xf32>
    %126 = vector.broadcast %125 : vector<1x1024xf32> to vector<8x1024xf32>
    %127 = arith.addf %124, %126 : vector<8x1024xf32>
    %cst_58 = arith.constant dense<0.000000e+00> : vector<1024xf32>
    %128 = vector.multi_reduction <add>, %127, %cst_58 [0] : vector<8x1024xf32> to vector<1024xf32>
    %129 = vector.shape_cast %128 : vector<1024xf32> to vector<1x1024xf32>
    %cst_59 = arith.constant 8.000000e+00 : f32
    %130 = vector.broadcast %cst_59 : f32 to vector<1x1024xf32>
    %131 = arith.divf %129, %130 : vector<1x1024xf32>
    %132 = vector.broadcast %131 : vector<1x1024xf32> to vector<8x1024xf32>
    %133 = arith.subf %127, %132 : vector<8x1024xf32>
    %134 = arith.mulf %133, %133 : vector<8x1024xf32>
    %cst_60 = arith.constant dense<0.000000e+00> : vector<1024xf32>
    %135 = vector.multi_reduction <add>, %134, %cst_60 [0] : vector<8x1024xf32> to vector<1024xf32>
    %136 = vector.shape_cast %135 : vector<1024xf32> to vector<1x1024xf32>
    %cst_61 = arith.constant 8.000000e+00 : f32
    %137 = vector.broadcast %cst_61 : f32 to vector<1x1024xf32>
    %138 = arith.divf %136, %137 : vector<1x1024xf32>
    %c0_62 = arith.constant 0 : index
    %c0_63 = arith.constant 0 : index
    %139 = vector.load %arg15[%c0_62, %c0_63] : memref<1x1024xf32, #tpu.memory_space<vmem>>, vector<1x1024xf32>
    %cst_64 = arith.constant 9.99999974E-6 : f32
    %140 = vector.broadcast %cst_64 : f32 to vector<1x1024xf32>
    %141 = arith.addf %138, %140 : vector<1x1024xf32>
    %142 = math.rsqrt %141 : vector<1x1024xf32>
    %143 = arith.mulf %139, %142 : vector<1x1024xf32>
    %c0_65 = arith.constant 0 : index
    %c0_66 = arith.constant 0 : index
    %144 = vector.load %arg16[%c0_65, %c0_66] : memref<1x1024xf32, #tpu.memory_space<vmem>>, vector<1x1024xf32>
    %145 = arith.mulf %131, %143 : vector<1x1024xf32>
    %146 = arith.subf %144, %145 : vector<1x1024xf32>
    %147 = vector.broadcast %143 : vector<1x1024xf32> to vector<8x1024xf32>
    %148 = arith.mulf %127, %147 : vector<8x1024xf32>
    %149 = vector.broadcast %146 : vector<1x1024xf32> to vector<8x1024xf32>
    %150 = arith.addf %148, %149 : vector<8x1024xf32>
    %cst_67 = arith.constant 5.000000e-01 : f32
    %151 = vector.broadcast %cst_67 : f32 to vector<8x1024xf32>
    %152 = arith.mulf %151, %150 : vector<8x1024xf32>
    %cst_68 = arith.constant 0.707106769 : f32
    %153 = vector.broadcast %cst_68 : f32 to vector<8x1024xf32>
    %154 = arith.mulf %150, %153 : vector<8x1024xf32>
    %155 = math.erf %154 : vector<8x1024xf32>
    %cst_69 = arith.constant 1.000000e+00 : f32
    %156 = vector.broadcast %cst_69 : f32 to vector<8x1024xf32>
    %157 = arith.addf %156, %155 : vector<8x1024xf32>
    %158 = arith.mulf %152, %157 : vector<8x1024xf32>
    %c2_i32_70 = arith.constant 2 : i32
    %159 = tpu.memref_slice %arg23[%c2_i32_70] : memref<3x!tpu.dma_semaphore, #tpu.memory_space<semaphore_mem>> -> memref<1x!tpu.dma_semaphore, #tpu.memory_space<semaphore_mem>>
    %160 = tpu.memref_squeeze %159 : memref<1x!tpu.dma_semaphore, #tpu.memory_space<semaphore_mem>> -> memref<!tpu.dma_semaphore, #tpu.memory_space<semaphore_mem>>
    tpu.wait_dma2 semaphore(%160 : memref<!tpu.dma_semaphore, #tpu.memory_space<semaphore_mem>>) src(%arg17 : memref<1024x896xbf16, #tpu.memory_space<any>>) dst(%arg22 : memref<1024x896xbf16, #tpu.memory_space<vmem>>)
    %c0_71 = arith.constant 0 : index
    %c0_72 = arith.constant 0 : index
    %161 = vector.load %arg22[%c0_71, %c0_72] : memref<1024x896xbf16, #tpu.memory_space<vmem>>, vector<1024x896xbf16>
    %162 = arith.truncf %158 : vector<8x1024xf32> to vector<8x1024xbf16>
    %cst_73 = arith.constant dense<0.000000e+00> : vector<8x896xf32>
    %163 = tpu.matmul %162, %161, %cst_73 {dimension_numbers = #tpu.dot_dimension_numbers<[1], [0], [0], [1], [0, 0, 1, 1], [], []>} : vector<8x1024xbf16>, vector<1024x896xbf16>, vector<8x896xf32> -> vector<8x896xf32>
    %c0_74 = arith.constant 0 : index
    %c0_75 = arith.constant 0 : index
    %164 = vector.load %arg18[%c0_74, %c0_75] : memref<1x896xf32, #tpu.memory_space<vmem>>, vector<1x896xf32>
    %165 = vector.broadcast %164 : vector<1x896xf32> to vector<8x896xf32>
    %166 = arith.addf %163, %165 : vector<8x896xf32>
    %cst_76 = arith.constant 0.000000e+00 : f32
    %167 = vector.broadcast %cst_76 : f32 to vector<8x896xf32>
    %168 = arith.subf %167, %166 : vector<8x896xf32>
    %169 = math.exp %168 : vector<8x896xf32>
    %cst_77 = arith.constant 1.000000e+00 : f32
    %170 = vector.broadcast %cst_77 : f32 to vector<8x896xf32>
    %171 = arith.addf %170, %169 : vector<8x896xf32>
    %172 = tpu.reciprocal %171 {approx = true} : vector<8x896xf32> -> vector<8x896xf32>
    %c0_78 = arith.constant 0 : index
    %c0_79 = arith.constant 0 : index
    %173 = vector.load %arg19[%c0_78, %c0_79] : memref<8x896xf32, #tpu.memory_space<vmem>>, vector<8x896xf32>
    tpu.vector_store %arg19[%c0_78, %c0_79], %172 {strides = array<i32>} : memref<8x896xf32, #tpu.memory_space<vmem>>, vector<8x896xf32>,
    return
  }
}

</mosaic_0001>

<llo_original>
// kernel: generator_forward.1
$region0: #{generator_forward.1}
  #allocation0 [shape = 'u32[]', space=smem, size = 0x4, offset = 0x4, fixed_abs, tag = 'smem constant byte address 0x4 - core index']
  #allocation1 [shape = 'u32[144,128]{1,0:T(1,128)}', space=vmem, size = 0x12000, scoped, tag = 'internal scratch']
  #allocation2 [shape = 'bf16[256,512]{1,0:T(8,128)(2,1)}', space=vmem, size = 0x40000, scoped, tag = 'scratch operand']
  #allocation3 [shape = 'bf16[512,1024]{1,0:T(8,128)(2,1)}', space=vmem, size = 0x100000, scoped, tag = 'scratch operand']
  #allocation4 [shape = 'bf16[1024,896]{1,0:T(8,128)(2,1)}', space=vmem, size = 0x1c0000, scoped, tag = 'scratch operand']
  #allocation5 [shape = 's32[3]{0}', space=sflag, size = 0xc, scoped, tag = 'scratch operand']
  #allocation31 [shape = 's32[]', space=sflag, size = 0x4, offset = 0, fixed_abs, tag = 'sflag constant byte address 0x0 - dummy sync flag']
  #allocation32 [shape = 's32[]', space=sflag, size = 0x4, offset = 0, fixed_abs, tag = 'sflag constant byte address 0x0 - dummy sync flag']
  #allocation33 [shape = 'u32[]', space=smem, size = 0x4, offset = 0x44, fixed_abs, tag = 'smem constant byte address 0x44 - assertion arg 0']
  #allocation34 [shape = 'u32[]', space=smem, size = 0x4, offset = 0x48, fixed_abs, tag = 'smem constant byte address 0x48 - assertion arg 1']
  #allocation35 [shape = 's32[]', space=sflag, size = 0x4, offset = 0, fixed_abs, tag = 'sflag constant byte address 0x0 - dummy sync flag']
  #allocation36 [shape = 's32[]', space=sflag, size = 0x4, offset = 0, fixed_abs, tag = 'sflag constant byte address 0x0 - dummy sync flag']
  #allocation37 [shape = 's32[]', space=sflag, size = 0x4, offset = 0, fixed_abs, tag = 'sflag constant byte address 0x0 - dummy sync flag']
  #allocation38 [shape = 's32[]', space=sflag, size = 0x4, offset = 0, fixed_abs, tag = 'sflag constant byte address 0x0 - dummy sync flag']
  %s0 = inlined_call_operand.hbm [shape: f32[8,96], index: 0, kind: input, shape index: {}]
  %s1 = inlined_call_operand.hbm [shape: bf16[96,128], index: 1, kind: input, shape index: {}]
  %s2 = inlined_call_operand.hbm [shape: f32[1,128], index: 2, kind: input, shape index: {}]
  %s3 = inlined_call_operand.hbm [shape: f32[1,128], index: 3, kind: input, shape index: {}]
  %s4 = inlined_call_operand.hbm [shape: f32[1,128], index: 4, kind: input, shape index: {}]
  %s5 = inlined_call_operand.hbm [shape: bf16[128,256], index: 5, kind: input, shape index: {}]
  %s6 = inlined_call_operand.hbm [shape: f32[1,256], index: 6, kind: input, shape index: {}]
  %s7 = inlined_call_operand.hbm [shape: f32[1,256], index: 7, kind: input, shape index: {}]
  %s8 = inlined_call_operand.hbm [shape: f32[1,256], index: 8, kind: input, shape index: {}]
  %s9 = inlined_call_operand.hbm [shape: bf16[256,512], index: 9, kind: input, shape index: {}]
  %s10 = inlined_call_operand.hbm [shape: f32[1,512], index: 10, kind: input, shape index: {}]
  %s11 = inlined_call_operand.hbm [shape: f32[1,512], index: 11, kind: input, shape index: {}]
  %s12 = inlined_call_operand.hbm [shape: f32[1,512], index: 12, kind: input, shape index: {}]
  %s13 = inlined_call_operand.hbm [shape: bf16[512,1024], index: 13, kind: input, shape index: {}]
  %s14 = inlined_call_operand.hbm [shape: f32[1,1024], index: 14, kind: input, shape index: {}]
  %s15 = inlined_call_operand.hbm [shape: f32[1,1024], index: 15, kind: input, shape index: {}]
  %s16 = inlined_call_operand.hbm [shape: f32[1,1024], index: 16, kind: input, shape index: {}]
  %s17 = inlined_call_operand.hbm [shape: bf16[1024,896], index: 17, kind: input, shape index: {}]
  %s18 = inlined_call_operand.hbm [shape: f32[1,896], index: 18, kind: input, shape index: {}]
  %s19 = inlined_call_operand.vmem [shape: f32[8,896], index: 19, kind: output, shape index: {}]
  %s20 = sld [smem:[#allocation0]]
  $region150: #{generator_forward.1} parent=0
    _
  %s22 = ssub.s32 1, %s20
  %s23 = scalar_select 0, %s22, %s20
  $region1: #{generator_forward.1} parent=0
    #allocation6 [shape = 'u8[4096]{0}', space=vmem, size = 0x1000, scoped, tag = 'input window, operand 0, single buffered']
    #allocation7 [shape = 's32[1]{0}', space=sflag, size = 0x4, scoped, tag = 'scoped memory for generator_forward.1']
    #allocation8 [shape = 'u8[24576]{0}', space=vmem, size = 0x6000, scoped, tag = 'input window, operand 1, single buffered']
    #allocation9 [shape = 's32[1]{0}', space=sflag, size = 0x4, scoped, tag = 'scoped memory for generator_forward.1']
    #allocation10 [shape = 'u8[512]{0}', space=vmem, size = 0x400, scoped, tag = 'input window, operand 2, single buffered']
    #allocation11 [shape = 'u8[512]{0}', space=vmem, size = 0x400, scoped, tag = 'input window, operand 3, single buffered']
    #allocation12 [shape = 's32[1]{0}', space=sflag, size = 0x4, scoped, tag = 'scoped memory for generator_forward.1']
    #allocation13 [shape = 'u8[512]{0}', space=vmem, size = 0x400, scoped, tag = 'input window, operand 4, single buffered']
    #allocation14 [shape = 'u8[65536]{0}', space=vmem, size = 0x10000, scoped, tag = 'input window, operand 5, single buffered']
    #allocation15 [shape = 's32[1]{0}', space=sflag, size = 0x4, scoped, tag = 'scoped memory for generator_forward.1']
    #allocation16 [shape = 'u8[1024]{0}', space=vmem, size = 0x400, scoped, tag = 'input window, operand 6, single buffered']
    #allocation17 [shape = 'u8[1024]{0}', space=vmem, size = 0x400, scoped, tag = 'input window, operand 7, single buffered']
    #allocation18 [shape = 's32[1]{0}', space=sflag, size = 0x4, scoped, tag = 'scoped memory for generator_forward.1']
    #allocation19 [shape = 'u8[1024]{0}', space=vmem, size = 0x400, scoped, tag = 'input window, operand 8, single buffered']
    #allocation20 [shape = 'u8[2048]{0}', space=vmem, size = 0x800, scoped, tag = 'input window, operand 10, single buffered']
    #allocation21 [shape = 's32[1]{0}', space=sflag, size = 0x4, scoped, tag = 'scoped memory for generator_forward.1']
    #allocation22 [shape = 'u8[2048]{0}', space=vmem, size = 0x800, scoped, tag = 'input window, operand 11, single buffered']
    #allocation23 [shape = 'u8[2048]{0}', space=vmem, size = 0x800, scoped, tag = 'input window, operand 12, single buffered']
    #allocation24 [shape = 's32[1]{0}', space=sflag, size = 0x4, scoped, tag = 'scoped memory for generator_forward.1']
    #allocation25 [shape = 'u8[4096]{0}', space=vmem, size = 0x1000, scoped, tag = 'input window, operand 14, single buffered']
    #allocation26 [shape = 'u8[4096]{0}', space=vmem, size = 0x1000, scoped, tag = 'input window, operand 15, single buffered']
    #allocation27 [shape = 's32[1]{0}', space=sflag, size = 0x4, scoped, tag = 'scoped memory for generator_forward.1']
    #allocation28 [shape = 'u8[4096]{0}', space=vmem, size = 0x1000, scoped, tag = 'input window, operand 16, single buffered']
    #allocation29 [shape = 'u8[3584]{0}', space=vmem, size = 0x1000, scoped, tag = 'input window, operand 18, single buffered']
    #allocation30 [shape = 's32[1]{0}', space=sflag, size = 0x4, scoped, tag = 'scoped memory for generator_forward.1']
    %24 = vsyncpa [#allocation7], 0
    %25 = vsyncpa [#allocation9], 0
    %26 = vsyncpa [#allocation12], 0
    %27 = vsyncpa [#allocation15], 0
    %28 = vsyncpa [#allocation18], 0
    %29 = vsyncpa [#allocation21], 0
    %30 = vsyncpa [#allocation24], 0
    %31 = vsyncpa [#allocation27], 0
    %32 = vsyncpa [#allocation30], 0
    // Predicated region
    $region2: #{generator_forward.1} parent=1 // pred_check
      _
    $region3: #{generator_forward.1} parent=1 // pred_check_branch
      %34 = sbr.rel (0) target = $region5
    $region4: #{generator_forward.1} parent=1 // pred_region
      %s36 = ssub.s32 128, 128
      %37 = vsyncadd [#allocation7], %s36
      %s39 = sshll.u32 [#allocation6], 4
      %s40 = int_to_ptr.vmem [resolvable:$true] %s39
      %42 = dma.hbm_to_vmem [thread:$0]  %s0, 128, %s40, [#allocation7]
    $region5: #{generator_forward.1} parent=1 // pred_fallthru
      _
    // Predicated region
    $region6: #{generator_forward.1} parent=1 // pred_check
      _
    $region7: #{generator_forward.1} parent=1 // pred_check_branch
      %44 = sbr.rel (0) target = $region9
    $region8: #{generator_forward.1} parent=1 // pred_region
      %s46 = ssub.s32 768, 768
      %47 = vsyncadd [#allocation9], %s46
      %s48 = sshll.u32 [#allocation8], 4
      %s49 = int_to_ptr.vmem [resolvable:$true] %s48
      %54 = dma.hbm_to_vmem [thread:$0]  %s1, 768, %s49, [#allocation9], 64, 64, 4
    $region9: #{generator_forward.1} parent=1 // pred_fallthru
      _
    // Predicated region
    $region10: #{generator_forward.1} parent=1 // pred_check
      _
    $region11: #{generator_forward.1} parent=1 // pred_check_branch
      %56 = sbr.rel (0) target = $region13
    $region12: #{generator_forward.1} parent=1 // pred_region
      %s58 = ssub.s32 16, 16
      %59 = vsyncadd [#allocation9], %s58
      %s61 = sshll.u32 [#allocation10], 4
      %s62 = int_to_ptr.vmem [resolvable:$true] %s61
      %64 = dma.hbm_to_vmem [thread:$0]  %s2, 16, %s62, [#allocation9]
    $region13: #{generator_forward.1} parent=1 // pred_fallthru
      _
    // Predicated region
    $region14: #{generator_forward.1} parent=1 // pred_check
      _
    $region15: #{generator_forward.1} parent=1 // pred_check_branch
      %66 = sbr.rel (0) target = $region17
    $region16: #{generator_forward.1} parent=1 // pred_region
      %s68 = ssub.s32 16, 16
      %69 = vsyncadd [#allocation12], %s68
      %s71 = sshll.u32 [#allocation11], 4
      %s72 = int_to_ptr.vmem [resolvable:$true] %s71
      %74 = dma.hbm_to_vmem [thread:$0]  %s3, 16, %s72, [#allocation12]
    $region17: #{generator_forward.1} parent=1 // pred_fallthru
      _
    // Predicated region
    $region18: #{generator_forward.1} parent=1 // pred_check
      _
    $region19: #{generator_forward.1} parent=1 // pred_check_branch
      %76 = sbr.rel (0) target = $region21
    $region20: #{generator_forward.1} parent=1 // pred_region
      %s78 = ssub.s32 16, 16
      %79 = vsyncadd [#allocation12], %s78
      %s81 = sshll.u32 [#allocation13], 4
      %s82 = int_to_ptr.vmem [resolvable:$true] %s81
      %84 = dma.hbm_to_vmem [thread:$0]  %s4, 16, %s82, [#allocation12]
    $region21: #{generator_forward.1} parent=1 // pred_fallthru
      _
    // Predicated region
    $region22: #{generator_forward.1} parent=1 // pred_check
      _
    $region23: #{generator_forward.1} parent=1 // pred_check_branch
      %86 = sbr.rel (0) target = $region25
    $region24: #{generator_forward.1} parent=1 // pred_region
      %s88 = ssub.s32 2048, 2048
      %89 = vsyncadd [#allocation15], %s88
      %s90 = sshll.u32 [#allocation14], 4
      %s91 = int_to_ptr.vmem [resolvable:$true] %s90
      %96 = dma.hbm_to_vmem [thread:$0]  %s5, 2048, %s91, [#allocation15], 128, 128, 8
    $region25: #{generator_forward.1} parent=1 // pred_fallthru
      _
    // Predicated region
    $region26: #{generator_forward.1} parent=1 // pred_check
      _
    $region27: #{generator_forward.1} parent=1 // pred_check_branch
      %98 = sbr.rel (0) target = $region29
    $region28: #{generator_forward.1} parent=1 // pred_region
      %s100 = ssub.s32 32, 32
      %101 = vsyncadd [#allocation15], %s100
      %s103 = sshll.u32 [#allocation16], 4
      %s104 = int_to_ptr.vmem [resolvable:$true] %s103
      %106 = dma.hbm_to_vmem [thread:$0]  %s6, 32, %s104, [#allocation15]
    $region29: #{generator_forward.1} parent=1 // pred_fallthru
      _
    // Predicated region
    $region30: #{generator_forward.1} parent=1 // pred_check
      _
    $region31: #{generator_forward.1} parent=1 // pred_check_branch
      %108 = sbr.rel (0) target = $region33
    $region32: #{generator_forward.1} parent=1 // pred_region
      %s110 = ssub.s32 32, 32
      %111 = vsyncadd [#allocation18], %s110
      %s113 = sshll.u32 [#allocation17], 4
      %s114 = int_to_ptr.vmem [resolvable:$true] %s113
      %116 = dma.hbm_to_vmem [thread:$0]  %s7, 32, %s114, [#allocation18]
    $region33: #{generator_forward.1} parent=1 // pred_fallthru
      _
    // Predicated region
    $region34: #{generator_forward.1} parent=1 // pred_check
      _
    $region35: #{generator_forward.1} parent=1 // pred_check_branch
      %118 = sbr.rel (0) target = $region37
    $region36: #{generator_forward.1} parent=1 // pred_region
      %s120 = ssub.s32 32, 32
      %121 = vsyncadd [#allocation18], %s120
      %s123 = sshll.u32 [#allocation19], 4
      %s124 = int_to_ptr.vmem [resolvable:$true] %s123
      %126 = dma.hbm_to_vmem [thread:$0]  %s8, 32, %s124, [#allocation18]
    $region37: #{generator_forward.1} parent=1 // pred_fallthru
      _
    // Predicated region
    $region38: #{generator_forward.1} parent=1 // pred_check
      _
    $region39: #{generator_forward.1} parent=1 // pred_check_branch
      %128 = sbr.rel (0) target = $region41
    $region40: #{generator_forward.1} parent=1 // pred_region
      %s130 = ssub.s32 64, 64
      %131 = vsyncadd [#allocation21], %s130
      %s133 = sshll.u32 [#allocation20], 4
      %s134 = int_to_ptr.vmem [resolvable:$true] %s133
      %136 = dma.hbm_to_vmem [thread:$0]  %s10, 64, %s134, [#allocation21]
    $region41: #{generator_forward.1} parent=1 // pred_fallthru
      _
    // Predicated region
    $region42: #{generator_forward.1} parent=1 // pred_check
      _
    $region43: #{generator_forward.1} parent=1 // pred_check_branch
      %138 = sbr.rel (0) target = $region45
    $region44: #{generator_forward.1} parent=1 // pred_region
      %s140 = ssub.s32 64, 64
      %141 = vsyncadd [#allocation21], %s140
      %s143 = sshll.u32 [#allocation22], 4
      %s144 = int_to_ptr.vmem [resolvable:$true] %s143
      %146 = dma.hbm_to_vmem [thread:$0]  %s11, 64, %s144, [#allocation21]
    $region45: #{generator_forward.1} parent=1 // pred_fallthru
      _
    // Predicated region
    $region46: #{generator_forward.1} parent=1 // pred_check
      _
    $region47: #{generator_forward.1} parent=1 // pred_check_branch
      %148 = sbr.rel (0) target = $region49
    $region48: #{generator_forward.1} parent=1 // pred_region
      %s150 = ssub.s32 64, 64
      %151 = vsyncadd [#allocation24], %s150
      %s153 = sshll.u32 [#allocation23], 4
      %s154 = int_to_ptr.vmem [resolvable:$true] %s153
      %156 = dma.hbm_to_vmem [thread:$0]  %s12, 64, %s154, [#allocation24]
    $region49: #{generator_forward.1} parent=1 // pred_fallthru
      _
    // Predicated region
    $region50: #{generator_forward.1} parent=1 // pred_check
      _
    $region51: #{generator_forward.1} parent=1 // pred_check_branch
      %158 = sbr.rel (0) target = $region53
    $region52: #{generator_forward.1} parent=1 // pred_region
      %s160 = ssub.s32 128, 128
      %161 = vsyncadd [#allocation24], %s160
      %s163 = sshll.u32 [#allocation25], 4
      %s164 = int_to_ptr.vmem [resolvable:$true] %s163
      %166 = dma.hbm_to_vmem [thread:$0]  %s14, 128, %s164, [#allocation24]
    $region53: #{generator_forward.1} parent=1 // pred_fallthru
      _
    // Predicated region
    $region54: #{generator_forward.1} parent=1 // pred_check
      _
    $region55: #{generator_forward.1} parent=1 // pred_check_branch
      %168 = sbr.rel (0) target = $region57
    $region56: #{generator_forward.1} parent=1 // pred_region
      %s170 = ssub.s32 128, 128
      %171 = vsyncadd [#allocation27], %s170
      %s173 = sshll.u32 [#allocation26], 4
      %s174 = int_to_ptr.vmem [resolvable:$true] %s173
      %176 = dma.hbm_to_vmem [thread:$0]  %s15, 128, %s174, [#allocation27]
    $region57: #{generator_forward.1} parent=1 // pred_fallthru
      _
    // Predicated region
    $region58: #{generator_forward.1} parent=1 // pred_check
      _
    $region59: #{generator_forward.1} parent=1 // pred_check_branch
      %178 = sbr.rel (0) target = $region61
    $region60: #{generator_forward.1} parent=1 // pred_region
      %s180 = ssub.s32 128, 128
      %181 = vsyncadd [#allocation27], %s180
      %s183 = sshll.u32 [#allocation28], 4
      %s184 = int_to_ptr.vmem [resolvable:$true] %s183
      %186 = dma.hbm_to_vmem [thread:$0]  %s16, 128, %s184, [#allocation27]
    $region61: #{generator_forward.1} parent=1 // pred_fallthru
      _
    // Predicated region
    $region62: #{generator_forward.1} parent=1 // pred_check
      _
    $region63: #{generator_forward.1} parent=1 // pred_check_branch
      %188 = sbr.rel (0) target = $region65
    $region64: #{generator_forward.1} parent=1 // pred_region
      %s190 = ssub.s32 112, 112
      %191 = vsyncadd [#allocation30], %s190
      %s193 = sshll.u32 [#allocation29], 4
      %s194 = int_to_ptr.vmem [resolvable:$true] %s193
      %196 = dma.hbm_to_vmem [thread:$0]  %s18, 112, %s194, [#allocation30]
    $region65: #{generator_forward.1} parent=1 // pred_fallthru
      _
    // Predicated region
    $region66: #{generator_forward.1} parent=1 // pred_check
      _
    $region67: #{generator_forward.1} parent=1 // pred_check_branch
      %198 = sbr.rel (0) target = $region69
    $region68: #{generator_forward.1} parent=1 // pred_region
      %199 = dma.done [#allocation7], 128
    $region69: #{generator_forward.1} parent=1 // pred_fallthru
      _
    // Predicated region
    $region70: #{generator_forward.1} parent=1 // pred_check
      _
    $region71: #{generator_forward.1} parent=1 // pred_check_branch
      %201 = sbr.rel (0) target = $region73
    $region72: #{generator_forward.1} parent=1 // pred_region
      %202 = dma.done [#allocation9], 768
    $region73: #{generator_forward.1} parent=1 // pred_fallthru
      _
    // Predicated region
    $region74: #{generator_forward.1} parent=1 // pred_check
      _
    $region75: #{generator_forward.1} parent=1 // pred_check_branch
      %204 = sbr.rel (0) target = $region77
    $region76: #{generator_forward.1} parent=1 // pred_region
      %205 = dma.done [#allocation9], 16
    $region77: #{generator_forward.1} parent=1 // pred_fallthru
      _
    // Predicated region
    $region78: #{generator_forward.1} parent=1 // pred_check
      _
    $region79: #{generator_forward.1} parent=1 // pred_check_branch
      %207 = sbr.rel (0) target = $region81
    $region80: #{generator_forward.1} parent=1 // pred_region
      %208 = dma.done [#allocation12], 16
    $region81: #{generator_forward.1} parent=1 // pred_fallthru
      _
    // Predicated region
    $region82: #{generator_forward.1} parent=1 // pred_check
      _
    $region83: #{generator_forward.1} parent=1 // pred_check_branch
      %210 = sbr.rel (0) target = $region85
    $region84: #{generator_forward.1} parent=1 // pred_region
      %211 = dma.done [#allocation12], 16
    $region85: #{generator_forward.1} parent=1 // pred_fallthru
      _
    // Predicated region
    $region86: #{generator_forward.1} parent=1 // pred_check
      _
    $region87: #{generator_forward.1} parent=1 // pred_check_branch
      %213 = sbr.rel (0) target = $region89
    $region88: #{generator_forward.1} parent=1 // pred_region
      %214 = dma.done [#allocation15], 2048
    $region89: #{generator_forward.1} parent=1 // pred_fallthru
      _
    // Predicated region
    $region90: #{generator_forward.1} parent=1 // pred_check
      _
    $region91: #{generator_forward.1} parent=1 // pred_check_branch
      %216 = sbr.rel (0) target = $region93
    $region92: #{generator_forward.1} parent=1 // pred_region
      %217 = dma.done [#allocation15], 32
    $region93: #{generator_forward.1} parent=1 // pred_fallthru
      _
    // Predicated region
    $region94: #{generator_forward.1} parent=1 // pred_check
      _
    $region95: #{generator_forward.1} parent=1 // pred_check_branch
      %219 = sbr.rel (0) target = $region97
    $region96: #{generator_forward.1} parent=1 // pred_region
      %220 = dma.done [#allocation18], 32
    $region97: #{generator_forward.1} parent=1 // pred_fallthru
      _
    // Predicated region
    $region98: #{generator_forward.1} parent=1 // pred_check
      _
    $region99: #{generator_forward.1} parent=1 // pred_check_branch
      %222 = sbr.rel (0) target = $region101
    $region100: #{generator_forward.1} parent=1 // pred_region
      %223 = dma.done [#allocation18], 32
    $region101: #{generator_forward.1} parent=1 // pred_fallthru
      _
    // Predicated region
    $region102: #{generator_forward.1} parent=1 // pred_check
      _
    $region103: #{generator_forward.1} parent=1 // pred_check_branch
      %225 = sbr.rel (0) target = $region105
    $region104: #{generator_forward.1} parent=1 // pred_region
      %226 = dma.done [#allocation21], 64
    $region105: #{generator_forward.1} parent=1 // pred_fallthru
      _
    // Predicated region
    $region106: #{generator_forward.1} parent=1 // pred_check
      _
    $region107: #{generator_forward.1} parent=1 // pred_check_branch
      %228 = sbr.rel (0) target = $region109
    $region108: #{generator_forward.1} parent=1 // pred_region
      %229 = dma.done [#allocation21], 64
    $region109: #{generator_forward.1} parent=1 // pred_fallthru
      _
    // Predicated region
    $region110: #{generator_forward.1} parent=1 // pred_check
      _
    $region111: #{generator_forward.1} parent=1 // pred_check_branch
      %231 = sbr.rel (0) target = $region113
    $region112: #{generator_forward.1} parent=1 // pred_region
      %232 = dma.done [#allocation24], 64
    $region113: #{generator_forward.1} parent=1 // pred_fallthru
      _
    // Predicated region
    $region114: #{generator_forward.1} parent=1 // pred_check
      _
    $region115: #{generator_forward.1} parent=1 // pred_check_branch
      %234 = sbr.rel (0) target = $region117
    $region116: #{generator_forward.1} parent=1 // pred_region
      %235 = dma.done [#allocation24], 128
    $region117: #{generator_forward.1} parent=1 // pred_fallthru
      _
    // Predicated region
    $region118: #{generator_forward.1} parent=1 // pred_check
      _
    $region119: #{generator_forward.1} parent=1 // pred_check_branch
      %237 = sbr.rel (0) target = $region121
    $region120: #{generator_forward.1} parent=1 // pred_region
      %238 = dma.done [#allocation27], 128
    $region121: #{generator_forward.1} parent=1 // pred_fallthru
      _
    // Predicated region
    $region122: #{generator_forward.1} parent=1 // pred_check
      _
    $region123: #{generator_forward.1} parent=1 // pred_check_branch
      %240 = sbr.rel (0) target = $region125
    $region124: #{generator_forward.1} parent=1 // pred_region
      %241 = dma.done [#allocation27], 128
    $region125: #{generator_forward.1} parent=1 // pred_fallthru
      _
    // Predicated region
    $region126: #{generator_forward.1} parent=1 // pred_check
      _
    $region127: #{generator_forward.1} parent=1 // pred_check_branch
      %243 = sbr.rel (0) target = $region129
    $region128: #{generator_forward.1} parent=1 // pred_region
      %244 = dma.done [#allocation30], 112
    $region129: #{generator_forward.1} parent=1 // pred_fallthru
      _
    // Predicated region
    $region130: #{generator_forward.1} parent=1 // pred_check
      _
    $region131: #{generator_forward.1} parent=1 // pred_check_branch
      %247 = sbr.rel target = $region133
    $region132: #{generator_forward.1} parent=1 // pred_region
      %248 = sst [smem:[#allocation33]] [#allocation32]
      %249 = sst [smem:[#allocation34]] [#allocation31]
    $region133: #{generator_forward.1} parent=1 // pred_fallthru
      _
    %251 = shalt.err (0)
    %s253 = sshll.u32 [#allocation2], 4
    %s254 = int_to_ptr.vmem [resolvable:$true] %s253
    %256 = dma.hbm_to_vmem [thread:$0]  %s9, 8192, %s254, [#allocation5]
    %s257 = scalar_lea.sflag [#allocation5], 1
    // Predicated region
    $region134: #{generator_forward.1} parent=1 // pred_check
      _
    $region135: #{generator_forward.1} parent=1 // pred_check_branch
      %259 = sbr.rel target = $region137
    $region136: #{generator_forward.1} parent=1 // pred_region
      %260 = sst [smem:[#allocation33]] [#allocation36]
      %261 = sst [smem:[#allocation34]] [#allocation35]
    $region137: #{generator_forward.1} parent=1 // pred_fallthru
      _
    %263 = shalt.err (0)
    %s265 = sshll.u32 [#allocation3], 4
    %s266 = int_to_ptr.vmem [resolvable:$true] %s265
    %268 = dma.hbm_to_vmem [thread:$0]  %s13, 32768, %s266, %s257
    %s269 = scalar_lea.sflag [#allocation5], 2
    // Predicated region
    $region138: #{generator_forward.1} parent=1 // pred_check
      _
    $region139: #{generator_forward.1} parent=1 // pred_check_branch
      %271 = sbr.rel target = $region141
    $region140: #{generator_forward.1} parent=1 // pred_region
      %272 = sst [smem:[#allocation33]] [#allocation38]
      %273 = sst [smem:[#allocation34]] [#allocation37]
    $region141: #{generator_forward.1} parent=1 // pred_fallthru
      _
    %275 = shalt.err (0)
    %s277 = sshll.u32 [#allocation4], 4
    %s278 = int_to_ptr.vmem [resolvable:$true] %s277
    %280 = dma.hbm_to_vmem [thread:$0]  %s17, 57344, %s278, %s269
    %v281 = vld [vmem:[#allocation6] sm:$0xff]
    %v282 = vld [vmem:[#allocation8] sm:$0xf]
    %v283 = vld [vmem:[#allocation8 + $0x4] sm:$0xf]
    %v284 = vld [vmem:[#allocation8 + $0x8] sm:$0xf]
    %v285 = vld [vmem:[#allocation8 + $0xc] sm:$0xf]
    %v286 = vld [vmem:[#allocation8 + $0x10] sm:$0xf]
    %v287 = vld [vmem:[#allocation8 + $0x14] sm:$0xf]
    %v288 = vld [vmem:[#allocation8 + $0x18] sm:$0xf]
    %v289 = vld [vmem:[#allocation8 + $0x1c] sm:$0xf]
    %v290 = vld [vmem:[#allocation8 + $0x20] sm:$0xf]
    %v291 = vld [vmem:[#allocation8 + $0x24] sm:$0xf]
    %v292 = vld [vmem:[#allocation8 + $0x28] sm:$0xf]
    %v293 = vld [vmem:[#allocation8 + $0x2c] sm:$0xf]
    %v294 = vpack.c.bf16 %v281, %v281
    %v295 = vld [vmem:[#allocation10] sm:$0x1]
    %v297 = vlaneseq
    %v298 = vshrl.u32 %v297, 7
    %v299 = vsub.s32 0, %v298
    %v300 = vrot.slane %v295, %v299
    %v314 = vunpack.c.l.b16 %v282
    %v315 = vunpack.c.l.b16 %v283
    %v316 = vunpack.c.l.b16 %v284
    %v317 = vunpack.c.l.b16 %v285
    %v318 = vunpack.c.l.b16 %v286
    %v319 = vunpack.c.l.b16 %v287
    %v320 = vunpack.c.l.b16 %v288
    %v321 = vunpack.c.l.b16 %v289
    %v322 = vunpack.c.l.b16 %v290
    %v323 = vunpack.c.l.b16 %v291
    %v324 = vunpack.c.l.b16 %v292
    %v325 = vunpack.c.l.b16 %v293
    %v326 = vpack.c.b16 %v315, %v314
    %v327 = vpack.c.b16 %v317, %v316
    %v328 = vpack.c.b16 %v319, %v318
    %v329 = vpack.c.b16 %v321, %v320
    %v330 = vpack.c.b16 %v323, %v322
    %v331 = vpack.c.b16 %v325, %v324
    %vm338 = vcmask 785408
    %v340 = vsel %vm338, %v294, 0
    %342 = vmatprep.subr.bf16.mxu0 0
    %343 = vmatpush1.bf16.msra.mxu0 0
    %344 = vmatprep.subr.bf16.mxu0 0
    %345 = vmatpush1.bf16.msra.mxu0 0
    %346 = vmatprep.subr.bf16.mxu0 0
    %347 = vmatpush1.bf16.msra.mxu0 %v331
    %348 = vmatprep.subr.bf16.mxu0 0
    %349 = vmatpush1.bf16.msra.mxu0 %v330
    %350 = vmatprep.subr.bf16.mxu0 0
    %351 = vmatpush1.bf16.msra.mxu0 %v329
    %352 = vmatprep.subr.bf16.mxu0 0
    %353 = vmatpush1.bf16.msra.mxu0 %v328
    %354 = vmatprep.subr.bf16.mxu0 0
    %355 = vmatpush1.bf16.msra.mxu0 %v327
    %356 = vmatprep.subr.bf16.mxu0 0
    %357 = vmatpush1.bf16.msra.mxu0 %v326
    %358 = vmatprep.subr.bf16.mxu0 0
    %359 = vmatpush2.bf16.msra.mxu0 0
    %360 = vmatprep.subr.bf16.mxu0 0
    %361 = vmatpush2.bf16.msra.mxu0 0
    %362 = vmatprep.subr.bf16.mxu0 0
    %363 = vmatpush2.bf16.msra.mxu0 0
    %364 = vmatprep.subr.bf16.mxu0 0
    %365 = vmatpush2.bf16.msra.mxu0 0
    %366 = vmatprep.subr.bf16.mxu0 0
    %367 = vmatpush2.bf16.msra.mxu0 0
    %368 = vmatprep.subr.bf16.mxu0 0
    %369 = vmatpush2.bf16.msra.mxu0 0
    %370 = vmatprep.subr.bf16.mxu0 0
    %371 = vmatpush2.bf16.msra.mxu0 0
    %372 = vmatprep.subr.bf16.mxu0 0
    %373 = vmatpush2.bf16.msra.mxu0 0
    %374 = vmatprep.mubr.bf16.mxu0 0
    %375 = vmatmul.mubr.bf16.gmra.mxu0 %v340
    %v376 = vpop.f32.mrf.mxu0
    %v377 = vadd.f32 %v300, %v376
    %v378 = vpop.f32.mrf.mxu0
    %v379 = vpop.f32.mrf.mxu0
    %v380 = vpop.f32.mrf.mxu0
    %381 = vdwg.mxu0
    %v382 = vrot.slane %v377, 4
    %v383 = vadd.f32 %v377, %v382
    %v384 = vrot.slane %v383, 2
    %v385 = vadd.f32 %v383, %v384
    %v386 = vrot.slane %v385, 1
    %v387 = vadd.f32 %v385, %v386
    %v388 = vrcp.pop 8.0
    %v389 = vmul.f32 %v387, %v388
    %v390 = vsub.f32 %v377, %v389
    %v391 = vmul.f32 %v390, %v390
    %v392 = vrot.slane %v391, 4
    %v393 = vadd.f32 %v391, %v392
    %v394 = vrot.slane %v393, 2
    %v395 = vadd.f32 %v393, %v394
    %v396 = vrot.slane %v395, 1
    %v397 = vadd.f32 %v395, %v396
    %v398 = vmul.f32 %v397, %v388
    %v399 = vld [vmem:[#allocation11] sm:$0x1]
    %v400 = vadd.f32 %v398, 1e-05
    %v401 = vrsqrt.pop %v400
    %v402 = vmul.f32 %v399, %v401
    %v403 = vld [vmem:[#allocation13] sm:$0x1]
    %v404 = vmul.f32 %v389, %v402
    %v405 = vsub.f32 %v403, %v404
    %v407 = vlaneseq
    %v408 = vshrl.u32 %v407, 7
    %v409 = vsub.s32 0, %v408
    %v410 = vrot.slane %v402, %v409
    %v412 = vmul.f32 %v377, %v410
    %v414 = vlaneseq
    %v415 = vshrl.u32 %v414, 7
    %v416 = vsub.s32 0, %v415
    %v417 = vrot.slane %v405, %v416
    %v419 = vadd.f32 %v412, %v417
    %v420 = vmul.f32 %v419, 0.5
    %v421 = vmul.f32 %v419, 0.70710677
    %v422 = verf.f32.pop %v421
    %v423 = vadd.f32 %v422, 1.0
    %v424 = vmul.f32 %v420, %v423
    %v425 = vld [vmem:[#allocation14] sm:$0xff]
    %v426 = vld [vmem:[#allocation14 + $0x8] sm:$0xff]
    %v427 = vld [vmem:[#allocation14 + $0x10] sm:$0xff]
    %v428 = vld [vmem:[#allocation14 + $0x18] sm:$0xff]
    %v429 = vld [vmem:[#allocation14 + $0x20] sm:$0xff]
    %v430 = vld [vmem:[#allocation14 + $0x28] sm:$0xff]
    %v431 = vld [vmem:[#allocation14 + $0x30] sm:$0xff]
    %v432 = vld [vmem:[#allocation14 + $0x38] sm:$0xff]
    %v433 = vld [vmem:[#allocation14 + $0x40] sm:$0xff]
    %v434 = vld [vmem:[#allocation14 + $0x48] sm:$0xff]
    %v435 = vld [vmem:[#allocation14 + $0x50] sm:$0xff]
    %v436 = vld [vmem:[#allocation14 + $0x58] sm:$0xff]
    %v437 = vld [vmem:[#allocation14 + $0x60] sm:$0xff]
    %v438 = vld [vmem:[#allocation14 + $0x68] sm:$0xff]
    %v439 = vld [vmem:[#allocation14 + $0x70] sm:$0xff]
    %v440 = vld [vmem:[#allocation14 + $0x78] sm:$0xff]
    %v441 = vpack.c.bf16 %v424, %v424
    %v442 = vld [vmem:[#allocation16] sm:$0x3]
    %v444 = vlaneseq
    %v445 = vshrl.u32 %v444, 7
    %v446 = vsub.s32 0, %v445
    %v447 = vrot.slane %v442, %v446
    %v448 = vlaneseq
    %v449 = vshrl.u32 %v448, 7
    %v450 = vsub.s32 1, %v449
    %v451 = vrot.slane %v442, %v450
    %v470 = vunpack.c.l.b16 %v425
    %v471 = vunpack.c.h.b16 %v425
    %v472 = vunpack.c.l.b16 %v426
    %v473 = vunpack.c.h.b16 %v426
    %v474 = vunpack.c.l.b16 %v427
    %v475 = vunpack.c.h.b16 %v427
    %v476 = vunpack.c.l.b16 %v428
    %v477 = vunpack.c.h.b16 %v428
    %v478 = vunpack.c.l.b16 %v429
    %v479 = vunpack.c.h.b16 %v429
    %v480 = vunpack.c.l.b16 %v430
    %v481 = vunpack.c.h.b16 %v430
    %v482 = vunpack.c.l.b16 %v431
    %v483 = vunpack.c.h.b16 %v431
    %v484 = vunpack.c.l.b16 %v432
    %v485 = vunpack.c.h.b16 %v432
    %v486 = vunpack.c.l.b16 %v433
    %v487 = vunpack.c.h.b16 %v433
    %v488 = vunpack.c.l.b16 %v434
    %v489 = vunpack.c.h.b16 %v434
    %v490 = vunpack.c.l.b16 %v435
    %v491 = vunpack.c.h.b16 %v435
    %v492 = vunpack.c.l.b16 %v436
    %v493 = vunpack.c.h.b16 %v436
    %v494 = vunpack.c.l.b16 %v437
    %v495 = vunpack.c.h.b16 %v437
    %v496 = vunpack.c.l.b16 %v438
    %v497 = vunpack.c.h.b16 %v438
    %v498 = vunpack.c.l.b16 %v439
    %v499 = vunpack.c.h.b16 %v439
    %v500 = vunpack.c.l.b16 %v440
    %v501 = vunpack.c.h.b16 %v440
    %v502 = vpack.c.b16 %v472, %v470
    %v503 = vpack.c.b16 %v473, %v471
    %v504 = vpack.c.b16 %v476, %v474
    %v505 = vpack.c.b16 %v477, %v475
    %v506 = vpack.c.b16 %v480, %v478
    %v507 = vpack.c.b16 %v481, %v479
    %v508 = vpack.c.b16 %v484, %v482
    %v509 = vpack.c.b16 %v485, %v483
    %v510 = vpack.c.b16 %v488, %v486
    %v511 = vpack.c.b16 %v489, %v487
    %v512 = vpack.c.b16 %v492, %v490
    %v513 = vpack.c.b16 %v493, %v491
    %v514 = vpack.c.b16 %v496, %v494
    %v515 = vpack.c.b16 %v497, %v495
    %v516 = vpack.c.b16 %v500, %v498
    %v517 = vpack.c.b16 %v501, %v499
    %534 = vmatprep.subr.bf16.mxu0 %v517
    %535 = vmatpush1.bf16.msra.mxu0 %v516
    %536 = vmatprep.subr.bf16.mxu0 %v515
    %537 = vmatpush1.bf16.msra.mxu0 %v514
    %538 = vmatprep.subr.bf16.mxu0 %v513
    %539 = vmatpush1.bf16.msra.mxu0 %v512
    %540 = vmatprep.subr.bf16.mxu0 %v511
    %541 = vmatpush1.bf16.msra.mxu0 %v510
    %542 = vmatprep.subr.bf16.mxu0 %v509
    %543 = vmatpush1.bf16.msra.mxu0 %v508
    %544 = vmatprep.subr.bf16.mxu0 %v507
    %545 = vmatpush1.bf16.msra.mxu0 %v506
    %546 = vmatprep.subr.bf16.mxu0 %v505
    %547 = vmatpush1.bf16.msra.mxu0 %v504
    %548 = vmatprep.subr.bf16.mxu0 %v503
    %549 = vmatpush1.bf16.msra.mxu0 %v502
    %550 = vmatprep.subr.bf16.mxu0 0
    %551 = vmatpush2.bf16.msra.mxu0 0
    %552 = vmatprep.subr.bf16.mxu0 0
    %553 = vmatpush2.bf16.msra.mxu0 0
    %554 = vmatprep.subr.bf16.mxu0 0
    %555 = vmatpush2.bf16.msra.mxu0 0
    %556 = vmatprep.subr.bf16.mxu0 0
    %557 = vmatpush2.bf16.msra.mxu0 0
    %558 = vmatprep.subr.bf16.mxu0 0
    %559 = vmatpush2.bf16.msra.mxu0 0
    %560 = vmatprep.subr.bf16.mxu0 0
    %561 = vmatpush2.bf16.msra.mxu0 0
    %562 = vmatprep.subr.bf16.mxu0 0
    %563 = vmatpush2.bf16.msra.mxu0 0
    %564 = vmatprep.subr.bf16.mxu0 0
    %565 = vmatpush2.bf16.msra.mxu0 0
    %566 = vmatprep.mubr.bf16.mxu0 0
    %567 = vmatmul.mubr.bf16.gmra.mxu0 %v441
    %v568 = vpop.f32.mrf.mxu0
    %v569 = vadd.f32 %v447, %v568
    %v570 = vpop.f32.mrf.mxu0
    %v571 = vadd.f32 %v451, %v570
    %v572 = vpop.f32.mrf.mxu0
    %v573 = vpop.f32.mrf.mxu0
    %574 = vdwg.mxu0
    %v575 = vrot.slane %v569, 4
    %v576 = vadd.f32 %v569, %v575
    %v577 = vrot.slane %v576, 2
    %v578 = vadd.f32 %v576, %v577
    %v579 = vrot.slane %v578, 1
    %v580 = vadd.f32 %v578, %v579
    %v581 = vrot.slane %v571, 4
    %v582 = vadd.f32 %v571, %v581
    %v583 = vrot.slane %v582, 2
    %v584 = vadd.f32 %v582, %v583
    %v585 = vrot.slane %v584, 1
    %v586 = vadd.f32 %v584, %v585
    %v587 = vmul.f32 %v580, %v388
    %v588 = vmul.f32 %v586, %v388
    %v589 = vsub.f32 %v569, %v587
    %v590 = vsub.f32 %v571, %v588
    %v591 = vmul.f32 %v589, %v589
    %v592 = vmul.f32 %v590, %v590
    %v593 = vrot.slane %v591, 4
    %v594 = vadd.f32 %v591, %v593
    %v595 = vrot.slane %v594, 2
    %v596 = vadd.f32 %v594, %v595
    %v597 = vrot.slane %v596, 1
    %v598 = vadd.f32 %v596, %v597
    %v599 = vrot.slane %v592, 4
    %v600 = vadd.f32 %v592, %v599
    %v601 = vrot.slane %v600, 2
    %v602 = vadd.f32 %v600, %v601
    %v603 = vrot.slane %v602, 1
    %v604 = vadd.f32 %v602, %v603
    %v605 = vmul.f32 %v598, %v388
    %v606 = vmul.f32 %v604, %v388
    %v607 = vld [vmem:[#allocation17] sm:$0x3]
    %v608 = vadd.f32 %v605, 1e-05
    %v609 = vadd.f32 %v606, 1e-05
    %v610 = vrsqrt.pop %v608
    %v611 = vrsqrt.pop %v609
    %v614 = vcombine.low %v610, %v611
    %v616 = vunpack.c.l.s4 1966171168
    %v617 = vunpack.c.0.s8 %v616
    %v618 = vlaneseq
    %v619 = vshrl.u32 %v618, 7
    %v620 = vsub.s32 %v617, %v619
    %v621 = vrot.slane %v614, %v620
    %v623 = vunpack.c.l.s4 1966171168
    %v624 = vunpack.c.0.s8 %v623
    %v625 = vlaneseq
    %v626 = vshrl.u32 %v625, 7
    %v627 = vsub.s32 %v624, %v626
    %v628 = vrot.slane %v621, %v627
    %v630 = vmul.f32 %v607, %v628
    %v631 = vld [vmem:[#allocation19] sm:$0x3]
    %v633 = vlaneseq
    %v634 = vshrl.u32 %v633, 7
    %v635 = vsub.s32 0, %v634
    %v636 = vrot.slane %v630, %v635
    %v637 = vlaneseq
    %v638 = vshrl.u32 %v637, 7
    %v639 = vsub.s32 1, %v638
    %v640 = vrot.slane %v630, %v639
    %v643 = vmul.f32 %v587, %v636
    %v644 = vmul.f32 %v588, %v640
    %v647 = vcombine.low %v643, %v644
    %v649 = vunpack.c.l.s4 1966171168
    %v650 = vunpack.c.0.s8 %v649
    %v651 = vlaneseq
    %v652 = vshrl.u32 %v651, 7
    %v653 = vsub.s32 %v650, %v652
    %v654 = vrot.slane %v647, %v653
    %v656 = vunpack.c.l.s4 1966171168
    %v657 = vunpack.c.0.s8 %v656
    %v658 = vlaneseq
    %v659 = vshrl.u32 %v658, 7
    %v660 = vsub.s32 %v657, %v659
    %v661 = vrot.slane %v654, %v660
    %v663 = vsub.f32 %v631, %v661
    %v664 = vmul.f32 %v569, %v636
    %v665 = vmul.f32 %v571, %v640
    %v667 = vlaneseq
    %v668 = vshrl.u32 %v667, 7
    %v669 = vsub.s32 0, %v668
    %v670 = vrot.slane %v663, %v669
    %v671 = vlaneseq
    %v672 = vshrl.u32 %v671, 7
    %v673 = vsub.s32 1, %v672
    %v674 = vrot.slane %v663, %v673
    %v677 = vadd.f32 %v664, %v670
    %v678 = vadd.f32 %v665, %v674
    %v679 = vmul.f32 %v677, 0.5
    %v680 = vmul.f32 %v678, 0.5
    %v681 = vmul.f32 %v677, 0.70710677
    %v682 = vmul.f32 %v678, 0.70710677
    %v683 = verf.f32.pop %v681
    %v684 = verf.f32.pop %v682
    %v685 = vadd.f32 %v683, 1.0
    %v686 = vadd.f32 %v684, 1.0
    %v687 = vmul.f32 %v679, %v685
    %v688 = vmul.f32 %v680, %v686
    %s689 = smul.u32 4, 32
    %s690 = smul.u32 %s689, 4
    %s691 = sshll.u32 %s690, 4
    %692 = dma.done [#allocation5], %s691
    %v693 = vld [vmem:[#allocation2] sm:$0xff]
    %v694 = vld [vmem:[#allocation2 + $0x8] sm:$0xff]
    %v695 = vld [vmem:[#allocation2 + $0x10] sm:$0xff]
    %v696 = vld [vmem:[#allocation2 + $0x18] sm:$0xff]
    %v697 = vld [vmem:[#allocation2 + $0x20] sm:$0xff]
    %v698 = vld [vmem:[#allocation2 + $0x28] sm:$0xff]
    %v699 = vld [vmem:[#allocation2 + $0x30] sm:$0xff]
    %v700 = vld [vmem:[#allocation2 + $0x38] sm:$0xff]
    %v701 = vld [vmem:[#allocation2 + $0x40] sm:$0xff]
    %v702 = vld [vmem:[#allocation2 + $0x48] sm:$0xff]
    %v703 = vld [vmem:[#allocation2 + $0x50] sm:$0xff]
    %v704 = vld [vmem:[#allocation2 + $0x58] sm:$0xff]
    %v705 = vld [vmem:[#allocation2 + $0x60] sm:$0xff]
    %v706 = vld [vmem:[#allocation2 + $0x68] sm:$0xff]
    %v707 = vld [vmem:[#allocation2 + $0x70] sm:$0xff]
    %v708 = vld [vmem:[#allocation2 + $0x78] sm:$0xff]
    %v709 = vld [vmem:[#allocation2 + $0x80] sm:$0xff]
    %v710 = vld [vmem:[#allocation2 + $0x88] sm:$0xff]
    %v711 = vld [vmem:[#allocation2 + $0x90] sm:$0xff]
    %v712 = vld [vmem:[#allocation2 + $0x98] sm:$0xff]
    %v713 = vld [vmem:[#allocation2 + $0xa0] sm:$0xff]
    %v714 = vld [vmem:[#allocation2 + $0xa8] sm:$0xff]
    %v715 = vld [vmem:[#allocation2 + $0xb0] sm:$0xff]
    %v716 = vld [vmem:[#allocation2 + $0xb8] sm:$0xff]
    %v717 = vld [vmem:[#allocation2 + $0xc0] sm:$0xff]
    %v718 = vld [vmem:[#allocation2 + $0xc8] sm:$0xff]
    %v719 = vld [vmem:[#allocation2 + $0xd0] sm:$0xff]
    %v720 = vld [vmem:[#allocation2 + $0xd8] sm:$0xff]
    %v721 = vld [vmem:[#allocation2 + $0xe0] sm:$0xff]
    %v722 = vld [vmem:[#allocation2 + $0xe8] sm:$0xff]
    %v723 = vld [vmem:[#allocation2 + $0xf0] sm:$0xff]
    %v724 = vld [vmem:[#allocation2 + $0xf8] sm:$0xff]
    %v725 = vld [vmem:[#allocation2 + $0x100] sm:$0xff]
    %v726 = vld [vmem:[#allocation2 + $0x108] sm:$0xff]
    %v727 = vld [vmem:[#allocation2 + $0x110] sm:$0xff]
    %v728 = vld [vmem:[#allocation2 + $0x118] sm:$0xff]
    %v729 = vld [vmem:[#allocation2 + $0x120] sm:$0xff]
    %v730 = vld [vmem:[#allocation2 + $0x128] sm:$0xff]
    %v731 = vld [vmem:[#allocation2 + $0x130] sm:$0xff]
    %v732 = vld [vmem:[#allocation2 + $0x138] sm:$0xff]
    %v733 = vld [vmem:[#allocation2 + $0x140] sm:$0xff]
    %v734 = vld [vmem:[#allocation2 + $0x148] sm:$0xff]
    %v735 = vld [vmem:[#allocation2 + $0x150] sm:$0xff]
    %v736 = vld [vmem:[#allocation2 + $0x158] sm:$0xff]
    %v737 = vld [vmem:[#allocation2 + $0x160] sm:$0xff]
    %v738 = vld [vmem:[#allocation2 + $0x168] sm:$0xff]
    %v739 = vld [vmem:[#allocation2 + $0x170] sm:$0xff]
    %v740 = vld [vmem:[#allocation2 + $0x178] sm:$0xff]
    %v741 = vld [vmem:[#allocation2 + $0x180] sm:$0xff]
    %v742 = vld [vmem:[#allocation2 + $0x188] sm:$0xff]
    %v743 = vld [vmem:[#allocation2 + $0x190] sm:$0xff]
    %v744 = vld [vmem:[#allocation2 + $0x198] sm:$0xff]
    %v745 = vld [vmem:[#allocation2 + $0x1a0] sm:$0xff]
    %v746 = vld [vmem:[#allocation2 + $0x1a8] sm:$0xff]
    %v747 = vld [vmem:[#allocation2 + $0x1b0] sm:$0xff]
    %v748 = vld [vmem:[#allocation2 + $0x1b8] sm:$0xff]
    %v749 = vld [vmem:[#allocation2 + $0x1c0] sm:$0xff]
    %v750 = vld [vmem:[#allocation2 + $0x1c8] sm:$0xff]
    %v751 = vld [vmem:[#allocation2 + $0x1d0] sm:$0xff]
    %v752 = vld [vmem:[#allocation2 + $0x1d8] sm:$0xff]
    %v753 = vld [vmem:[#allocation2 + $0x1e0] sm:$0xff]
    %v754 = vld [vmem:[#allocation2 + $0x1e8] sm:$0xff]
    %v755 = vld [vmem:[#allocation2 + $0x1f0] sm:$0xff]
    %v756 = vld [vmem:[#allocation2 + $0x1f8] sm:$0xff]
    %v757 = vpack.c.bf16 %v687, %v687
    %v758 = vpack.c.bf16 %v688, %v688
    %v759 = vld [vmem:[#allocation20] sm:$0xf]
    %v761 = vlaneseq
    %v762 = vshrl.u32 %v761, 7
    %v763 = vsub.s32 0, %v762
    %v764 = vrot.slane %v759, %v763
    %v765 = vlaneseq
    %v766 = vshrl.u32 %v765, 7
    %v767 = vsub.s32 1, %v766
    %v768 = vrot.slane %v759, %v767
    %v769 = vlaneseq
    %v770 = vshrl.u32 %v769, 7
    %v771 = vsub.s32 2, %v770
    %v772 = vrot.slane %v759, %v771
    %v773 = vlaneseq
    %v774 = vshrl.u32 %v773, 7
    %v775 = vsub.s32 3, %v774
    %v776 = vrot.slane %v759, %v775
    %v845 = vunpack.c.l.b16 %v693
    %v846 = vunpack.c.h.b16 %v693
    %v847 = vunpack.c.l.b16 %v694
    %v848 = vunpack.c.h.b16 %v694
    %v849 = vunpack.c.l.b16 %v695
    %v850 = vunpack.c.h.b16 %v695
    %v851 = vunpack.c.l.b16 %v696
    %v852 = vunpack.c.h.b16 %v696
    %v853 = vunpack.c.l.b16 %v697
    %v854 = vunpack.c.h.b16 %v697
    %v855 = vunpack.c.l.b16 %v698
    %v856 = vunpack.c.h.b16 %v698
    %v857 = vunpack.c.l.b16 %v699
    %v858 = vunpack.c.h.b16 %v699
    %v859 = vunpack.c.l.b16 %v700
    %v860 = vunpack.c.h.b16 %v700
    %v861 = vunpack.c.l.b16 %v701
    %v862 = vunpack.c.h.b16 %v701
    %v863 = vunpack.c.l.b16 %v702
    %v864 = vunpack.c.h.b16 %v702
    %v865 = vunpack.c.l.b16 %v703
    %v866 = vunpack.c.h.b16 %v703
    %v867 = vunpack.c.l.b16 %v704
    %v868 = vunpack.c.h.b16 %v704
    %v869 = vunpack.c.l.b16 %v705
    %v870 = vunpack.c.h.b16 %v705
    %v871 = vunpack.c.l.b16 %v706
    %v872 = vunpack.c.h.b16 %v706
    %v873 = vunpack.c.l.b16 %v707
    %v874 = vunpack.c.h.b16 %v707
    %v875 = vunpack.c.l.b16 %v708
    %v876 = vunpack.c.h.b16 %v708
    %v877 = vunpack.c.l.b16 %v709
    %v878 = vunpack.c.h.b16 %v709
    %v879 = vunpack.c.l.b16 %v710
    %v880 = vunpack.c.h.b16 %v710
    %v881 = vunpack.c.l.b16 %v711
    %v882 = vunpack.c.h.b16 %v711
    %v883 = vunpack.c.l.b16 %v712
    %v884 = vunpack.c.h.b16 %v712
    %v885 = vunpack.c.l.b16 %v713
    %v886 = vunpack.c.h.b16 %v713
    %v887 = vunpack.c.l.b16 %v714
    %v888 = vunpack.c.h.b16 %v714
    %v889 = vunpack.c.l.b16 %v715
    %v890 = vunpack.c.h.b16 %v715
    %v891 = vunpack.c.l.b16 %v716
    %v892 = vunpack.c.h.b16 %v716
    %v893 = vunpack.c.l.b16 %v717
    %v894 = vunpack.c.h.b16 %v717
    %v895 = vunpack.c.l.b16 %v718
    %v896 = vunpack.c.h.b16 %v718
    %v897 = vunpack.c.l.b16 %v719
    %v898 = vunpack.c.h.b16 %v719
    %v899 = vunpack.c.l.b16 %v720
    %v900 = vunpack.c.h.b16 %v720
    %v901 = vunpack.c.l.b16 %v721
    %v902 = vunpack.c.h.b16 %v721
    %v903 = vunpack.c.l.b16 %v722
    %v904 = vunpack.c.h.b16 %v722
    %v905 = vunpack.c.l.b16 %v723
    %v906 = vunpack.c.h.b16 %v723
    %v907 = vunpack.c.l.b16 %v724
    %v908 = vunpack.c.h.b16 %v724
    %v909 = vunpack.c.l.b16 %v725
    %v910 = vunpack.c.h.b16 %v725
    %v911 = vunpack.c.l.b16 %v726
    %v912 = vunpack.c.h.b16 %v726
    %v913 = vunpack.c.l.b16 %v727
    %v914 = vunpack.c.h.b16 %v727
    %v915 = vunpack.c.l.b16 %v728
    %v916 = vunpack.c.h.b16 %v728
    %v917 = vunpack.c.l.b16 %v729
    %v918 = vunpack.c.h.b16 %v729
    %v919 = vunpack.c.l.b16 %v730
    %v920 = vunpack.c.h.b16 %v730
    %v921 = vunpack.c.l.b16 %v731
    %v922 = vunpack.c.h.b16 %v731
    %v923 = vunpack.c.l.b16 %v732
    %v924 = vunpack.c.h.b16 %v732
    %v925 = vunpack.c.l.b16 %v733
    %v926 = vunpack.c.h.b16 %v733
    %v927 = vunpack.c.l.b16 %v734
    %v928 = vunpack.c.h.b16 %v734
    %v929 = vunpack.c.l.b16 %v735
    %v930 = vunpack.c.h.b16 %v735
    %v931 = vunpack.c.l.b16 %v736
    %v932 = vunpack.c.h.b16 %v736
    %v933 = vunpack.c.l.b16 %v737
    %v934 = vunpack.c.h.b16 %v737
    %v935 = vunpack.c.l.b16 %v738
    %v936 = vunpack.c.h.b16 %v738
    %v937 = vunpack.c.l.b16 %v739
    %v938 = vunpack.c.h.b16 %v739
    %v939 = vunpack.c.l.b16 %v740
    %v940 = vunpack.c.h.b16 %v740
    %v941 = vunpack.c.l.b16 %v741
    %v942 = vunpack.c.h.b16 %v741
    %v943 = vunpack.c.l.b16 %v742
    %v944 = vunpack.c.h.b16 %v742
    %v945 = vunpack.c.l.b16 %v743
    %v946 = vunpack.c.h.b16 %v743
    %v947 = vunpack.c.l.b16 %v744
    %v948 = vunpack.c.h.b16 %v744
    %v949 = vunpack.c.l.b16 %v745
    %v950 = vunpack.c.h.b16 %v745
    %v951 = vunpack.c.l.b16 %v746
    %v952 = vunpack.c.h.b16 %v746
    %v953 = vunpack.c.l.b16 %v747
    %v954 = vunpack.c.h.b16 %v747
    %v955 = vunpack.c.l.b16 %v748
    %v956 = vunpack.c.h.b16 %v748
    %v957 = vunpack.c.l.b16 %v749
    %v958 = vunpack.c.h.b16 %v749
    %v959 = vunpack.c.l.b16 %v750
    %v960 = vunpack.c.h.b16 %v750
    %v961 = vunpack.c.l.b16 %v751
    %v962 = vunpack.c.h.b16 %v751
    %v963 = vunpack.c.l.b16 %v752
    %v964 = vunpack.c.h.b16 %v752
    %v965 = vunpack.c.l.b16 %v753
    %v966 = vunpack.c.h.b16 %v753
    %v967 = vunpack.c.l.b16 %v754
    %v968 = vunpack.c.h.b16 %v754
    %v969 = vunpack.c.l.b16 %v755
    %v970 = vunpack.c.h.b16 %v755
    %v971 = vunpack.c.l.b16 %v756
    %v972 = vunpack.c.h.b16 %v756
    %v973 = vpack.c.b16 %v849, %v845
    %v974 = vpack.c.b16 %v850, %v846
    %v975 = vpack.c.b16 %v851, %v847
    %v976 = vpack.c.b16 %v852, %v848
    %v977 = vpack.c.b16 %v857, %v853
    %v978 = vpack.c.b16 %v858, %v854
    %v979 = vpack.c.b16 %v859, %v855
    %v980 = vpack.c.b16 %v860, %v856
    %v981 = vpack.c.b16 %v865, %v861
    %v982 = vpack.c.b16 %v866, %v862
    %v983 = vpack.c.b16 %v867, %v863
    %v984 = vpack.c.b16 %v868, %v864
    %v985 = vpack.c.b16 %v873, %v869
    %v986 = vpack.c.b16 %v874, %v870
    %v987 = vpack.c.b16 %v875, %v871
    %v988 = vpack.c.b16 %v876, %v872
    %v989 = vpack.c.b16 %v881, %v877
    %v990 = vpack.c.b16 %v882, %v878
    %v991 = vpack.c.b16 %v883, %v879
    %v992 = vpack.c.b16 %v884, %v880
    %v993 = vpack.c.b16 %v889, %v885
    %v994 = vpack.c.b16 %v890, %v886
    %v995 = vpack.c.b16 %v891, %v887
    %v996 = vpack.c.b16 %v892, %v888
    %v997 = vpack.c.b16 %v897, %v893
    %v998 = vpack.c.b16 %v898, %v894
    %v999 = vpack.c.b16 %v899, %v895
    %v1000 = vpack.c.b16 %v900, %v896
    %v1001 = vpack.c.b16 %v905, %v901
    %v1002 = vpack.c.b16 %v906, %v902
    %v1003 = vpack.c.b16 %v907, %v903
    %v1004 = vpack.c.b16 %v908, %v904
    %v1005 = vpack.c.b16 %v913, %v909
    %v1006 = vpack.c.b16 %v914, %v910
    %v1007 = vpack.c.b16 %v915, %v911
    %v1008 = vpack.c.b16 %v916, %v912
    %v1009 = vpack.c.b16 %v921, %v917
    %v1010 = vpack.c.b16 %v922, %v918
    %v1011 = vpack.c.b16 %v923, %v919
    %v1012 = vpack.c.b16 %v924, %v920
    %v1013 = vpack.c.b16 %v929, %v925
    %v1014 = vpack.c.b16 %v930, %v926
    %v1015 = vpack.c.b16 %v931, %v927
    %v1016 = vpack.c.b16 %v932, %v928
    %v1017 = vpack.c.b16 %v937, %v933
    %v1018 = vpack.c.b16 %v938, %v934
    %v1019 = vpack.c.b16 %v939, %v935
    %v1020 = vpack.c.b16 %v940, %v936
    %v1021 = vpack.c.b16 %v945, %v941
    %v1022 = vpack.c.b16 %v946, %v942
    %v1023 = vpack.c.b16 %v947, %v943
    %v1024 = vpack.c.b16 %v948, %v944
    %v1025 = vpack.c.b16 %v953, %v949
    %v1026 = vpack.c.b16 %v954, %v950
    %v1027 = vpack.c.b16 %v955, %v951
    %v1028 = vpack.c.b16 %v956, %v952
    %v1029 = vpack.c.b16 %v961, %v957
    %v1030 = vpack.c.b16 %v962, %v958
    %v1031 = vpack.c.b16 %v963, %v959
    %v1032 = vpack.c.b16 %v964, %v960
    %v1033 = vpack.c.b16 %v969, %v965
    %v1034 = vpack.c.b16 %v970, %v966
    %v1035 = vpack.c.b16 %v971, %v967
    %v1036 = vpack.c.b16 %v972, %v968
    %1101 = vmatprep.subr.bf16.mxu0 %v1002
    %1102 = vmatpush1.bf16.msra.mxu0 %v1001
    %1103 = vmatprep.subr.bf16.mxu0 %v998
    %1104 = vmatpush1.bf16.msra.mxu0 %v997
    %1105 = vmatprep.subr.bf16.mxu0 %v994
    %1106 = vmatpush1.bf16.msra.mxu0 %v993
    %1107 = vmatprep.subr.bf16.mxu0 %v990
    %1108 = vmatpush1.bf16.msra.mxu0 %v989
    %1109 = vmatprep.subr.bf16.mxu0 %v986
    %1110 = vmatpush1.bf16.msra.mxu0 %v985
    %1111 = vmatprep.subr.bf16.mxu0 %v982
    %1112 = vmatpush1.bf16.msra.mxu0 %v981
    %1113 = vmatprep.subr.bf16.mxu0 %v978
    %1114 = vmatpush1.bf16.msra.mxu0 %v977
    %1115 = vmatprep.subr.bf16.mxu0 %v974
    %1116 = vmatpush1.bf16.msra.mxu0 %v973
    %1117 = vmatprep.subr.bf16.mxu0 %v1034
    %1118 = vmatpush2.bf16.msra.mxu0 %v1033
    %1119 = vmatprep.subr.bf16.mxu0 %v1030
    %1120 = vmatpush2.bf16.msra.mxu0 %v1029
    %1121 = vmatprep.subr.bf16.mxu0 %v1026
    %1122 = vmatpush2.bf16.msra.mxu0 %v1025
    %1123 = vmatprep.subr.bf16.mxu0 %v1022
    %1124 = vmatpush2.bf16.msra.mxu0 %v1021
    %1125 = vmatprep.subr.bf16.mxu0 %v1018
    %1126 = vmatpush2.bf16.msra.mxu0 %v1017
    %1127 = vmatprep.subr.bf16.mxu0 %v1014
    %1128 = vmatpush2.bf16.msra.mxu0 %v1013
    %1129 = vmatprep.subr.bf16.mxu0 %v1010
    %1130 = vmatpush2.bf16.msra.mxu0 %v1009
    %1131 = vmatprep.subr.bf16.mxu0 %v1006
    %1132 = vmatpush2.bf16.msra.mxu0 %v1005
    %1133 = vmatprep.mubr.bf16.mxu0 %v758
    %1134 = vmatmul.mubr.bf16.gmra.mxu0 %v757
    %v1135 = vpop.f32.mrf.mxu0
    %v1136 = vadd.f32 %v764, %v1135
    %v1137 = vpop.f32.mrf.mxu0
    %v1138 = vadd.f32 %v768, %v1137
    %v1139 = vpop.f32.mrf.mxu0
    %v1140 = vpop.f32.mrf.mxu0
    %1141 = vdwg.mxu0
    %1142 = vmatprep.subr.bf16.mxu0 %v1004
    %1143 = vmatpush1.bf16.msra.mxu0 %v1003
    %1144 = vmatprep.subr.bf16.mxu0 %v1000
    %1145 = vmatpush1.bf16.msra.mxu0 %v999
    %1146 = vmatprep.subr.bf16.mxu0 %v996
    %1147 = vmatpush1.bf16.msra.mxu0 %v995
    %1148 = vmatprep.subr.bf16.mxu0 %v992
    %1149 = vmatpush1.bf16.msra.mxu0 %v991
    %1150 = vmatprep.subr.bf16.mxu0 %v988
    %1151 = vmatpush1.bf16.msra.mxu0 %v987
    %1152 = vmatprep.subr.bf16.mxu0 %v984
    %1153 = vmatpush1.bf16.msra.mxu0 %v983
    %1154 = vmatprep.subr.bf16.mxu0 %v980
    %1155 = vmatpush1.bf16.msra.mxu0 %v979
    %1156 = vmatprep.subr.bf16.mxu0 %v976
    %1157 = vmatpush1.bf16.msra.mxu0 %v975
    %1158 = vmatprep.subr.bf16.mxu0 %v1036
    %1159 = vmatpush2.bf16.msra.mxu0 %v1035
    %1160 = vmatprep.subr.bf16.mxu0 %v1032
    %1161 = vmatpush2.bf16.msra.mxu0 %v1031
    %1162 = vmatprep.subr.bf16.mxu0 %v1028
    %1163 = vmatpush2.bf16.msra.mxu0 %v1027
    %1164 = vmatprep.subr.bf16.mxu0 %v1024
    %1165 = vmatpush2.bf16.msra.mxu0 %v1023
    %1166 = vmatprep.subr.bf16.mxu0 %v1020
    %1167 = vmatpush2.bf16.msra.mxu0 %v1019
    %1168 = vmatprep.subr.bf16.mxu0 %v1016
    %1169 = vmatpush2.bf16.msra.mxu0 %v1015
    %1170 = vmatprep.subr.bf16.mxu0 %v1012
    %1171 = vmatpush2.bf16.msra.mxu0 %v1011
    %1172 = vmatprep.subr.bf16.mxu0 %v1008
    %1173 = vmatpush2.bf16.msra.mxu0 %v1007
    %1174 = vmatprep.mubr.bf16.mxu0 %v758
    %1175 = vmatmul.mubr.bf16.gmra.mxu0 %v757
    %v1176 = vpop.f32.mrf.mxu0
    %v1177 = vadd.f32 %v772, %v1176
    %v1178 = vpop.f32.mrf.mxu0
    %v1179 = vadd.f32 %v776, %v1178
    %v1180 = vpop.f32.mrf.mxu0
    %v1181 = vpop.f32.mrf.mxu0
    %1182 = vdwg.mxu0
    %v1183 = vrot.slane %v1136, 4
    %v1184 = vadd.f32 %v1136, %v1183
    %v1185 = vrot.slane %v1184, 2
    %v1186 = vadd.f32 %v1184, %v1185
    %v1187 = vrot.slane %v1186, 1
    %v1188 = vadd.f32 %v1186, %v1187
    %v1189 = vrot.slane %v1138, 4
    %v1190 = vadd.f32 %v1138, %v1189
    %v1191 = vrot.slane %v1190, 2
    %v1192 = vadd.f32 %v1190, %v1191
    %v1193 = vrot.slane %v1192, 1
    %v1194 = vadd.f32 %v1192, %v1193
    %v1195 = vrot.slane %v1177, 4
    %v1196 = vadd.f32 %v1177, %v1195
    %v1197 = vrot.slane %v1196, 2
    %v1198 = vadd.f32 %v1196, %v1197
    %v1199 = vrot.slane %v1198, 1
    %v1200 = vadd.f32 %v1198, %v1199
    %v1201 = vrot.slane %v1179, 4
    %v1202 = vadd.f32 %v1179, %v1201
    %v1203 = vrot.slane %v1202, 2
    %v1204 = vadd.f32 %v1202, %v1203
    %v1205 = vrot.slane %v1204, 1
    %v1206 = vadd.f32 %v1204, %v1205
    %v1207 = vmul.f32 %v1188, %v388
    %v1208 = vmul.f32 %v1194, %v388
    %v1209 = vmul.f32 %v1200, %v388
    %v1210 = vmul.f32 %v1206, %v388
    %v1211 = vsub.f32 %v1136, %v1207
    %v1212 = vsub.f32 %v1138, %v1208
    %v1213 = vsub.f32 %v1177, %v1209
    %v1214 = vsub.f32 %v1179, %v1210
    %v1215 = vmul.f32 %v1211, %v1211
    %v1216 = vmul.f32 %v1212, %v1212
    %v1217 = vmul.f32 %v1213, %v1213
    %v1218 = vmul.f32 %v1214, %v1214
    %v1219 = vrot.slane %v1215, 4
    %v1220 = vadd.f32 %v1215, %v1219
    %v1221 = vrot.slane %v1220, 2
    %v1222 = vadd.f32 %v1220, %v1221
    %v1223 = vrot.slane %v1222, 1
    %v1224 = vadd.f32 %v1222, %v1223
    %v1225 = vrot.slane %v1216, 4
    %v1226 = vadd.f32 %v1216, %v1225
    %v1227 = vrot.slane %v1226, 2
    %v1228 = vadd.f32 %v1226, %v1227
    %v1229 = vrot.slane %v1228, 1
    %v1230 = vadd.f32 %v1228, %v1229
    %v1231 = vrot.slane %v1217, 4
    %v1232 = vadd.f32 %v1217, %v1231
    %v1233 = vrot.slane %v1232, 2
    %v1234 = vadd.f32 %v1232, %v1233
    %v1235 = vrot.slane %v1234, 1
    %v1236 = vadd.f32 %v1234, %v1235
    %v1237 = vrot.slane %v1218, 4
    %v1238 = vadd.f32 %v1218, %v1237
    %v1239 = vrot.slane %v1238, 2
    %v1240 = vadd.f32 %v1238, %v1239
    %v1241 = vrot.slane %v1240, 1
    %v1242 = vadd.f32 %v1240, %v1241
    %v1243 = vmul.f32 %v1224, %v388
    %v1244 = vmul.f32 %v1230, %v388
    %v1245 = vmul.f32 %v1236, %v388
    %v1246 = vmul.f32 %v1242, %v388
    %v1247 = vld [vmem:[#allocation22] sm:$0xf]
    %v1248 = vadd.f32 %v1243, 1e-05
    %v1249 = vadd.f32 %v1244, 1e-05
    %v1250 = vadd.f32 %v1245, 1e-05
    %v1251 = vadd.f32 %v1246, 1e-05
    %v1252 = vrsqrt.pop %v1248
    %v1253 = vrsqrt.pop %v1249
    %v1254 = vrsqrt.pop %v1250
    %v1255 = vrsqrt.pop %v1251
    %v1260 = vcombine.low %v1252, %v1253
    %v1261 = vcombine.low %v1254, %v1255
    %v1263 = vunpack.c.l.s4 1966171168
    %v1264 = vunpack.c.0.s8 %v1263
    %v1265 = vlaneseq
    %v1266 = vshrl.u32 %v1265, 7
    %v1267 = vsub.s32 %v1264, %v1266
    %v1268 = vrot.slane %v1260, %v1267
    %v1270 = vunpack.c.l.s4 1966171168
    %v1271 = vunpack.c.0.s8 %v1270
    %v1272 = vlaneseq
    %v1273 = vshrl.u32 %v1272, 7
    %v1274 = vsub.s32 %v1271, %v1273
    %v1275 = vrot.slane %v1261, %v1274
    %v1276 = vcombine.low %v1268, %v1275
    %v1278 = vunpack.c.l.s4 1966171168
    %v1279 = vunpack.c.0.s8 %v1278
    %v1280 = vlaneseq
    %v1281 = vshrl.u32 %v1280, 7
    %v1282 = vsub.s32 %v1279, %v1281
    %v1283 = vrot.slane %v1276, %v1282
    %v1285 = vmul.f32 %v1247, %v1283
    %v1286 = vld [vmem:[#allocation23] sm:$0xf]
    %v1288 = vlaneseq
    %v1289 = vshrl.u32 %v1288, 7
    %v1290 = vsub.s32 0, %v1289
    %v1291 = vrot.slane %v1285, %v1290
    %v1292 = vlaneseq
    %v1293 = vshrl.u32 %v1292, 7
    %v1294 = vsub.s32 1, %v1293
    %v1295 = vrot.slane %v1285, %v1294
    %v1296 = vlaneseq
    %v1297 = vshrl.u32 %v1296, 7
    %v1298 = vsub.s32 2, %v1297
    %v1299 = vrot.slane %v1285, %v1298
    %v1300 = vlaneseq
    %v1301 = vshrl.u32 %v1300, 7
    %v1302 = vsub.s32 3, %v1301
    %v1303 = vrot.slane %v1285, %v1302
    %v1308 = vmul.f32 %v1207, %v1291
    %v1309 = vmul.f32 %v1208, %v1295
    %v1310 = vmul.f32 %v1209, %v1299
    %v1311 = vmul.f32 %v1210, %v1303
    %v1316 = vcombine.low %v1308, %v1309
    %v1317 = vcombine.low %v1310, %v1311
    %v1319 = vunpack.c.l.s4 1966171168
    %v1320 = vunpack.c.0.s8 %v1319
    %v1321 = vlaneseq
    %v1322 = vshrl.u32 %v1321, 7
    %v1323 = vsub.s32 %v1320, %v1322
    %v1324 = vrot.slane %v1316, %v1323
    %v1326 = vunpack.c.l.s4 1966171168
    %v1327 = vunpack.c.0.s8 %v1326
    %v1328 = vlaneseq
    %v1329 = vshrl.u32 %v1328, 7
    %v1330 = vsub.s32 %v1327, %v1329
    %v1331 = vrot.slane %v1317, %v1330
    %v1332 = vcombine.low %v1324, %v1331
    %v1334 = vunpack.c.l.s4 1966171168
    %v1335 = vunpack.c.0.s8 %v1334
    %v1336 = vlaneseq
    %v1337 = vshrl.u32 %v1336, 7
    %v1338 = vsub.s32 %v1335, %v1337
    %v1339 = vrot.slane %v1332, %v1338
    %v1341 = vsub.f32 %v1286, %v1339
    %v1342 = vmul.f32 %v1136, %v1291
    %v1343 = vmul.f32 %v1138, %v1295
    %v1344 = vmul.f32 %v1177, %v1299
    %v1345 = vmul.f32 %v1179, %v1303
    %v1347 = vlaneseq
    %v1348 = vshrl.u32 %v1347, 7
    %v1349 = vsub.s32 0, %v1348
    %v1350 = vrot.slane %v1341, %v1349
    %v1351 = vlaneseq
    %v1352 = vshrl.u32 %v1351, 7
    %v1353 = vsub.s32 1, %v1352
    %v1354 = vrot.slane %v1341, %v1353
    %v1355 = vlaneseq
    %v1356 = vshrl.u32 %v1355, 7
    %v1357 = vsub.s32 2, %v1356
    %v1358 = vrot.slane %v1341, %v1357
    %v1359 = vlaneseq
    %v1360 = vshrl.u32 %v1359, 7
    %v1361 = vsub.s32 3, %v1360
    %v1362 = vrot.slane %v1341, %v1361
    %v1367 = vadd.f32 %v1342, %v1350
    %v1368 = vadd.f32 %v1343, %v1354
    %v1369 = vadd.f32 %v1344, %v1358
    %v1370 = vadd.f32 %v1345, %v1362
    %v1371 = vmul.f32 %v1367, 0.5
    %v1372 = vmul.f32 %v1368, 0.5
    %v1373 = vmul.f32 %v1369, 0.5
    %v1374 = vmul.f32 %v1370, 0.5
    %v1375 = vmul.f32 %v1367, 0.70710677
    %v1376 = vmul.f32 %v1368, 0.70710677
    %v1377 = vmul.f32 %v1369, 0.70710677
    %v1378 = vmul.f32 %v1370, 0.70710677
    %v1379 = verf.f32.pop %v1375
    %v1380 = verf.f32.pop %v1376
    %v1381 = verf.f32.pop %v1377
    %v1382 = verf.f32.pop %v1378
    %v1383 = vadd.f32 %v1379, 1.0
    %v1384 = vadd.f32 %v1380, 1.0
    %v1385 = vadd.f32 %v1381, 1.0
    %v1386 = vadd.f32 %v1382, 1.0
    %v1387 = vmul.f32 %v1371, %v1383
    %v1388 = vmul.f32 %v1372, %v1384
    %v1389 = vmul.f32 %v1373, %v1385
    %v1390 = vmul.f32 %v1374, %v1386
    %s1391 = smul.u32 4, 64
    %s1392 = smul.u32 %s1391, 8
    %s1393 = sshll.u32 %s1392, 4
    %1394 = dma.done %s257, %s1393
    %v1395 = vld [vmem:[#allocation3] sm:$0xff]
    %v1396 = vld [vmem:[#allocation3 + $0x8] sm:$0xff]
    %v1397 = vld [vmem:[#allocation3 + $0x10] sm:$0xff]
    %v1398 = vld [vmem:[#allocation3 + $0x18] sm:$0xff]
    %v1399 = vld [vmem:[#allocation3 + $0x20] sm:$0xff]
    %v1400 = vld [vmem:[#allocation3 + $0x28] sm:$0xff]
    %v1401 = vld [vmem:[#allocation3 + $0x30] sm:$0xff]
    %v1402 = vld [vmem:[#allocation3 + $0x38] sm:$0xff]
    %v1403 = vld [vmem:[#allocation3 + $0x40] sm:$0xff]
    %v1404 = vld [vmem:[#allocation3 + $0x48] sm:$0xff]
    %v1405 = vld [vmem:[#allocation3 + $0x50] sm:$0xff]
    %v1406 = vld [vmem:[#allocation3 + $0x58] sm:$0xff]
    %v1407 = vld [vmem:[#allocation3 + $0x60] sm:$0xff]
    %v1408 = vld [vmem:[#allocation3 + $0x68] sm:$0xff]
    %v1409 = vld [vmem:[#allocation3 + $0x70] sm:$0xff]
    %v1410 = vld [vmem:[#allocation3 + $0x78] sm:$0xff]
    %v1411 = vld [vmem:[#allocation3 + $0x80] sm:$0xff]
    %v1412 = vld [vmem:[#allocation3 + $0x88] sm:$0xff]
    %v1413 = vld [vmem:[#allocation3 + $0x90] sm:$0xff]
    %v1414 = vld [vmem:[#allocation3 + $0x98] sm:$0xff]
    %v1415 = vld [vmem:[#allocation3 + $0xa0] sm:$0xff]
    %v1416 = vld [vmem:[#allocation3 + $0xa8] sm:$0xff]
    %v1417 = vld [vmem:[#allocation3 + $0xb0] sm:$0xff]
    %v1418 = vld [vmem:[#allocation3 + $0xb8] sm:$0xff]
    %v1419 = vld [vmem:[#allocation3 + $0xc0] sm:$0xff]
    %v1420 = vld [vmem:[#allocation3 + $0xc8] sm:$0xff]
    %v1421 = vld [vmem:[#allocation3 + $0xd0] sm:$0xff]
    %v1422 = vld [vmem:[#allocation3 + $0xd8] sm:$0xff]
    %v1423 = vld [vmem:[#allocation3 + $0xe0] sm:$0xff]
    %v1424 = vld [vmem:[#allocation3 + $0xe8] sm:$0xff]
    %v1425 = vld [vmem:[#allocation3 + $0xf0] sm:$0xff]
    %v1426 = vld [vmem:[#allocation3 + $0xf8] sm:$0xff]
    %v1427 = vld [vmem:[#allocation3 + $0x100] sm:$0xff]
    %v1428 = vld [vmem:[#allocation3 + $0x108] sm:$0xff]
    %v1429 = vld [vmem:[#allocation3 + $0x110] sm:$0xff]
    %v1430 = vld [vmem:[#allocation3 + $0x118] sm:$0xff]
    %v1431 = vld [vmem:[#allocation3 + $0x120] sm:$0xff]
    %v1432 = vld [vmem:[#allocation3 + $0x128] sm:$0xff]
    %v1433 = vld [vmem:[#allocation3 + $0x130] sm:$0xff]
    %v1434 = vld [vmem:[#allocation3 + $0x138] sm:$0xff]
    %v1435 = vld [vmem:[#allocation3 + $0x140] sm:$0xff]
    %v1436 = vld [vmem:[#allocation3 + $0x148] sm:$0xff]
    %v1437 = vld [vmem:[#allocation3 + $0x150] sm:$0xff]
    %v1438 = vld [vmem:[#allocation3 + $0x158] sm:$0xff]
    %v1439 = vld [vmem:[#allocation3 + $0x160] sm:$0xff]
    %v1440 = vld [vmem:[#allocation3 + $0x168] sm:$0xff]
    %v1441 = vld [vmem:[#allocation3 + $0x170] sm:$0xff]
    %v1442 = vld [vmem:[#allocation3 + $0x178] sm:$0xff]
    %v1443 = vld [vmem:[#allocation3 + $0x180] sm:$0xff]
    %v1444 = vld [vmem:[#allocation3 + $0x188] sm:$0xff]
    %v1445 = vld [vmem:[#allocation3 + $0x190] sm:$0xff]
    %v1446 = vld [vmem:[#allocation3 + $0x198] sm:$0xff]
    %v1447 = vld [vmem:[#allocation3 + $0x1a0] sm:$0xff]
    %v1448 = vld [vmem:[#allocation3 + $0x1a8] sm:$0xff]
    %v1449 = vld [vmem:[#allocation3 + $0x1b0] sm:$0xff]
    %v1450 = vld [vmem:[#allocation3 + $0x1b8] sm:$0xff]
    %v1451 = vld [vmem:[#allocation3 + $0x1c0] sm:$0xff]
    %v1452 = vld [vmem:[#allocation3 + $0x1c8] sm:$0xff]
    %v1453 = vld [vmem:[#allocation3 + $0x1d0] sm:$0xff]
    %v1454 = vld [vmem:[#allocation3 + $0x1d8] sm:$0xff]
    %v1455 = vld [vmem:[#allocation3 + $0x1e0] sm:$0xff]
    %v1456 = vld [vmem:[#allocation3 + $0x1e8] sm:$0xff]
    %v1457 = vld [vmem:[#allocation3 + $0x1f0] sm:$0xff]
    %v1458 = vld [vmem:[#allocation3 + $0x1f8] sm:$0xff]
    %v1459 = vld [vmem:[#allocation3 + $0x200] sm:$0xff]
    %v1460 = vld [vmem:[#allocation3 + $0x208] sm:$0xff]
    %v1461 = vld [vmem:[#allocation3 + $0x210] sm:$0xff]
    %v1462 = vld [vmem:[#allocation3 + $0x218] sm:$0xff]
    %v1463 = vld [vmem:[#allocation3 + $0x220] sm:$0xff]
    %v1464 = vld [vmem:[#allocation3 + $0x228] sm:$0xff]
    %v1465 = vld [vmem:[#allocation3 + $0x230] sm:$0xff]
    %v1466 = vld [vmem:[#allocation3 + $0x238] sm:$0xff]
    %v1467 = vld [vmem:[#allocation3 + $0x240] sm:$0xff]
    %v1468 = vld [vmem:[#allocation3 + $0x248] sm:$0xff]
    %v1469 = vld [vmem:[#allocation3 + $0x250] sm:$0xff]
    %v1470 = vld [vmem:[#allocation3 + $0x258] sm:$0xff]
    %v1471 = vld [vmem:[#allocation3 + $0x260] sm:$0xff]
    %v1472 = vld [vmem:[#allocation3 + $0x268] sm:$0xff]
    %v1473 = vld [vmem:[#allocation3 + $0x270] sm:$0xff]
    %v1474 = vld [vmem:[#allocation3 + $0x278] sm:$0xff]
    %v1475 = vld [vmem:[#allocation3 + $0x280] sm:$0xff]
    %v1476 = vld [vmem:[#allocation3 + $0x288] sm:$0xff]
    %v1477 = vld [vmem:[#allocation3 + $0x290] sm:$0xff]
    %v1478 = vld [vmem:[#allocation3 + $0x298] sm:$0xff]
    %v1479 = vld [vmem:[#allocation3 + $0x2a0] sm:$0xff]
    %v1480 = vld [vmem:[#allocation3 + $0x2a8] sm:$0xff]
    %v1481 = vld [vmem:[#allocation3 + $0x2b0] sm:$0xff]
    %v1482 = vld [vmem:[#allocation3 + $0x2b8] sm:$0xff]
    %v1483 = vld [vmem:[#allocation3 + $0x2c0] sm:$0xff]
    %v1484 = vld [vmem:[#allocation3 + $0x2c8] sm:$0xff]
    %v1485 = vld [vmem:[#allocation3 + $0x2d0] sm:$0xff]
    %v1486 = vld [vmem:[#allocation3 + $0x2d8] sm:$0xff]
    %v1487 = vld [vmem:[#allocation3 + $0x2e0] sm:$0xff]
    %v1488 = vld [vmem:[#allocation3 + $0x2e8] sm:$0xff]
    %v1489 = vld [vmem:[#allocation3 + $0x2f0] sm:$0xff]
    %v1490 = vld [vmem:[#allocation3 + $0x2f8] sm:$0xff]
    %v1491 = vld [vmem:[#allocation3 + $0x300] sm:$0xff]
    %v1492 = vld [vmem:[#allocation3 + $0x308] sm:$0xff]
    %v1493 = vld [vmem:[#allocation3 + $0x310] sm:$0xff]
    %v1494 = vld [vmem:[#allocation3 + $0x318] sm:$0xff]
    %v1495 = vld [vmem:[#allocation3 + $0x320] sm:$0xff]
    %v1496 = vld [vmem:[#allocation3 + $0x328] sm:$0xff]
    %v1497 = vld [vmem:[#allocation3 + $0x330] sm:$0xff]
    %v1498 = vld [vmem:[#allocation3 + $0x338] sm:$0xff]
    %v1499 = vld [vmem:[#allocation3 + $0x340] sm:$0xff]
    %v1500 = vld [vmem:[#allocation3 + $0x348] sm:$0xff]
    %v1501 = vld [vmem:[#allocation3 + $0x350] sm:$0xff]
    %v1502 = vld [vmem:[#allocation3 + $0x358] sm:$0xff]
    %v1503 = vld [vmem:[#allocation3 + $0x360] sm:$0xff]
    %v1504 = vld [vmem:[#allocation3 + $0x368] sm:$0xff]
    %v1505 = vld [vmem:[#allocation3 + $0x370] sm:$0xff]
    %v1506 = vld [vmem:[#allocation3 + $0x378] sm:$0xff]
    %v1507 = vld [vmem:[#allocation3 + $0x380] sm:$0xff]
    %v1508 = vld [vmem:[#allocation3 + $0x388] sm:$0xff]
    %v1509 = vld [vmem:[#allocation3 + $0x390] sm:$0xff]
    %v1510 = vld [vmem:[#allocation3 + $0x398] sm:$0xff]
    %v1511 = vld [vmem:[#allocation3 + $0x3a0] sm:$0xff]
    %v1512 = vld [vmem:[#allocation3 + $0x3a8] sm:$0xff]
    %v1513 = vld [vmem:[#allocation3 + $0x3b0] sm:$0xff]
    %v1514 = vld [vmem:[#allocation3 + $0x3b8] sm:$0xff]
    %v1515 = vld [vmem:[#allocation3 + $0x3c0] sm:$0xff]
    %v1516 = vld [vmem:[#allocation3 + $0x3c8] sm:$0xff]
    %v1517 = vld [vmem:[#allocation3 + $0x3d0] sm:$0xff]
    %v1518 = vld [vmem:[#allocation3 + $0x3d8] sm:$0xff]
    %v1519 = vld [vmem:[#allocation3 + $0x3e0] sm:$0xff]
    %v1520 = vld [vmem:[#allocation3 + $0x3e8] sm:$0xff]
    %v1521 = vld [vmem:[#allocation3 + $0x3f0] sm:$0xff]
    %v1522 = vld [vmem:[#allocation3 + $0x3f8] sm:$0xff]
    %v1523 = vld [vmem:[#allocation3 + $0x400] sm:$0xff]
    %v1524 = vld [vmem:[#allocation3 + $0x408] sm:$0xff]
    %v1525 = vld [vmem:[#allocation3 + $0x410] sm:$0xff]
    %v1526 = vld [vmem:[#allocation3 + $0x418] sm:$0xff]
    %v1527 = vld [vmem:[#allocation3 + $0x420] sm:$0xff]
    %v1528 = vld [vmem:[#allocation3 + $0x428] sm:$0xff]
    %v1529 = vld [vmem:[#allocation3 + $0x430] sm:$0xff]
    %v1530 = vld [vmem:[#allocation3 + $0x438] sm:$0xff]
    %v1531 = vld [vmem:[#allocation3 + $0x440] sm:$0xff]
    %v1532 = vld [vmem:[#allocation3 + $0x448] sm:$0xff]
    %v1533 = vld [vmem:[#allocation3 + $0x450] sm:$0xff]
    %v1534 = vld [vmem:[#allocation3 + $0x458] sm:$0xff]
    %v1535 = vld [vmem:[#allocation3 + $0x460] sm:$0xff]
    %v1536 = vld [vmem:[#allocation3 + $0x468] sm:$0xff]
    %v1537 = vld [vmem:[#allocation3 + $0x470] sm:$0xff]
    %v1538 = vld [vmem:[#allocation3 + $0x478] sm:$0xff]
    %v1539 = vld [vmem:[#allocation3 + $0x480] sm:$0xff]
    %v1540 = vld [vmem:[#allocation3 + $0x488] sm:$0xff]
    %v1541 = vld [vmem:[#allocation3 + $0x490] sm:$0xff]
    %v1542 = vld [vmem:[#allocation3 + $0x498] sm:$0xff]
    %v1543 = vld [vmem:[#allocation3 + $0x4a0] sm:$0xff]
    %v1544 = vld [vmem:[#allocation3 + $0x4a8] sm:$0xff]
    %v1545 = vld [vmem:[#allocation3 + $0x4b0] sm:$0xff]
    %v1546 = vld [vmem:[#allocation3 + $0x4b8] sm:$0xff]
    %v1547 = vld [vmem:[#allocation3 + $0x4c0] sm:$0xff]
    %v1548 = vld [vmem:[#allocation3 + $0x4c8] sm:$0xff]
    %v1549 = vld [vmem:[#allocation3 + $0x4d0] sm:$0xff]
    %v1550 = vld [vmem:[#allocation3 + $0x4d8] sm:$0xff]
    %v1551 = vld [vmem:[#allocation3 + $0x4e0] sm:$0xff]
    %v1552 = vld [vmem:[#allocation3 + $0x4e8] sm:$0xff]
    %v1553 = vld [vmem:[#allocation3 + $0x4f0] sm:$0xff]
    %v1554 = vld [vmem:[#allocation3 + $0x4f8] sm:$0xff]
    %v1555 = vld [vmem:[#allocation3 + $0x500] sm:$0xff]
    %v1556 = vld [vmem:[#allocation3 + $0x508] sm:$0xff]
    %v1557 = vld [vmem:[#allocation3 + $0x510] sm:$0xff]
    %v1558 = vld [vmem:[#allocation3 + $0x518] sm:$0xff]
    %v1559 = vld [vmem:[#allocation3 + $0x520] sm:$0xff]
    %v1560 = vld [vmem:[#allocation3 + $0x528] sm:$0xff]
    %v1561 = vld [vmem:[#allocation3 + $0x530] sm:$0xff]
    %v1562 = vld [vmem:[#allocation3 + $0x538] sm:$0xff]
    %v1563 = vld [vmem:[#allocation3 + $0x540] sm:$0xff]
    %v1564 = vld [vmem:[#allocation3 + $0x548] sm:$0xff]
    %v1565 = vld [vmem:[#allocation3 + $0x550] sm:$0xff]
    %v1566 = vld [vmem:[#allocation3 + $0x558] sm:$0xff]
    %v1567 = vld [vmem:[#allocation3 + $0x560] sm:$0xff]
    %v1568 = vld [vmem:[#allocation3 + $0x568] sm:$0xff]
    %v1569 = vld [vmem:[#allocation3 + $0x570] sm:$0xff]
    %v1570 = vld [vmem:[#allocation3 + $0x578] sm:$0xff]
    %v1571 = vld [vmem:[#allocation3 + $0x580] sm:$0xff]
    %v1572 = vld [vmem:[#allocation3 + $0x588] sm:$0xff]
    %v1573 = vld [vmem:[#allocation3 + $0x590] sm:$0xff]
    %v1574 = vld [vmem:[#allocation3 + $0x598] sm:$0xff]
    %v1575 = vld [vmem:[#allocation3 + $0x5a0] sm:$0xff]
    %v1576 = vld [vmem:[#allocation3 + $0x5a8] sm:$0xff]
    %v1577 = vld [vmem:[#allocation3 + $0x5b0] sm:$0xff]
    %v1578 = vld [vmem:[#allocation3 + $0x5b8] sm:$0xff]
    %v1579 = vld [vmem:[#allocation3 + $0x5c0] sm:$0xff]
    %v1580 = vld [vmem:[#allocation3 + $0x5c8] sm:$0xff]
    %v1581 = vld [vmem:[#allocation3 + $0x5d0] sm:$0xff]
    %v1582 = vld [vmem:[#allocation3 + $0x5d8] sm:$0xff]
    %v1583 = vld [vmem:[#allocation3 + $0x5e0] sm:$0xff]
    %v1584 = vld [vmem:[#allocation3 + $0x5e8] sm:$0xff]
    %v1585 = vld [vmem:[#allocation3 + $0x5f0] sm:$0xff]
    %v1586 = vld [vmem:[#allocation3 + $0x5f8] sm:$0xff]
    %v1587 = vld [vmem:[#allocation3 + $0x600] sm:$0xff]
    %v1588 = vld [vmem:[#allocation3 + $0x608] sm:$0xff]
    %v1589 = vld [vmem:[#allocation3 + $0x610] sm:$0xff]
    %v1590 = vld [vmem:[#allocation3 + $0x618] sm:$0xff]
    %v1591 = vld [vmem:[#allocation3 + $0x620] sm:$0xff]
    %v1592 = vld [vmem:[#allocation3 + $0x628] sm:$0xff]
    %v1593 = vld [vmem:[#allocation3 + $0x630] sm:$0xff]
    %v1594 = vld [vmem:[#allocation3 + $0x638] sm:$0xff]
    %v1595 = vld [vmem:[#allocation3 + $0x640] sm:$0xff]
    %v1596 = vld [vmem:[#allocation3 + $0x648] sm:$0xff]
    %v1597 = vld [vmem:[#allocation3 + $0x650] sm:$0xff]
    %v1598 = vld [vmem:[#allocation3 + $0x658] sm:$0xff]
    %v1599 = vld [vmem:[#allocation3 + $0x660] sm:$0xff]
    %v1600 = vld [vmem:[#allocation3 + $0x668] sm:$0xff]
    %v1601 = vld [vmem:[#allocation3 + $0x670] sm:$0xff]
    %v1602 = vld [vmem:[#allocation3 + $0x678] sm:$0xff]
    %v1603 = vld [vmem:[#allocation3 + $0x680] sm:$0xff]
    %v1604 = vld [vmem:[#allocation3 + $0x688] sm:$0xff]
    %v1605 = vld [vmem:[#allocation3 + $0x690] sm:$0xff]
    %v1606 = vld [vmem:[#allocation3 + $0x698] sm:$0xff]
    %v1607 = vld [vmem:[#allocation3 + $0x6a0] sm:$0xff]
    %v1608 = vld [vmem:[#allocation3 + $0x6a8] sm:$0xff]
    %v1609 = vld [vmem:[#allocation3 + $0x6b0] sm:$0xff]
    %v1610 = vld [vmem:[#allocation3 + $0x6b8] sm:$0xff]
    %v1611 = vld [vmem:[#allocation3 + $0x6c0] sm:$0xff]
    %v1612 = vld [vmem:[#allocation3 + $0x6c8] sm:$0xff]
    %v1613 = vld [vmem:[#allocation3 + $0x6d0] sm:$0xff]
    %v1614 = vld [vmem:[#allocation3 + $0x6d8] sm:$0xff]
    %v1615 = vld [vmem:[#allocation3 + $0x6e0] sm:$0xff]
    %v1616 = vld [vmem:[#allocation3 + $0x6e8] sm:$0xff]
    %v1617 = vld [vmem:[#allocation3 + $0x6f0] sm:$0xff]
    %v1618 = vld [vmem:[#allocation3 + $0x6f8] sm:$0xff]
    %v1619 = vld [vmem:[#allocation3 + $0x700] sm:$0xff]
    %v1620 = vld [vmem:[#allocation3 + $0x708] sm:$0xff]
    %v1621 = vld [vmem:[#allocation3 + $0x710] sm:$0xff]
    %v1622 = vld [vmem:[#allocation3 + $0x718] sm:$0xff]
    %v1623 = vld [vmem:[#allocation3 + $0x720] sm:$0xff]
    %v1624 = vld [vmem:[#allocation3 + $0x728] sm:$0xff]
    %v1625 = vld [vmem:[#allocation3 + $0x730] sm:$0xff]
    %v1626 = vld [vmem:[#allocation3 + $0x738] sm:$0xff]
    %v1627 = vld [vmem:[#allocation3 + $0x740] sm:$0xff]
    %v1628 = vld [vmem:[#allocation3 + $0x748] sm:$0xff]
    %v1629 = vld [vmem:[#allocation3 + $0x750] sm:$0xff]
    %v1630 = vld [vmem:[#allocation3 + $0x758] sm:$0xff]
    %v1631 = vld [vmem:[#allocation3 + $0x760] sm:$0xff]
    %v1632 = vld [vmem:[#allocation3 + $0x768] sm:$0xff]
    %v1633 = vld [vmem:[#allocation3 + $0x770] sm:$0xff]
    %v1634 = vld [vmem:[#allocation3 + $0x778] sm:$0xff]
    %v1635 = vld [vmem:[#allocation3 + $0x780] sm:$0xff]
    %v1636 = vld [vmem:[#allocation3 + $0x788] sm:$0xff]
    %v1637 = vld [vmem:[#allocation3 + $0x790] sm:$0xff]
    %v1638 = vld [vmem:[#allocation3 + $0x798] sm:$0xff]
    %v1639 = vld [vmem:[#allocation3 + $0x7a0] sm:$0xff]
    %v1640 = vld [vmem:[#allocation3 + $0x7a8] sm:$0xff]
    %v1641 = vld [vmem:[#allocation3 + $0x7b0] sm:$0xff]
    %v1642 = vld [vmem:[#allocation3 + $0x7b8] sm:$0xff]
    %v1643 = vld [vmem:[#allocation3 + $0x7c0] sm:$0xff]
    %v1644 = vld [vmem:[#allocation3 + $0x7c8] sm:$0xff]
    %v1645 = vld [vmem:[#allocation3 + $0x7d0] sm:$0xff]
    %v1646 = vld [vmem:[#allocation3 + $0x7d8] sm:$0xff]
    %v1647 = vld [vmem:[#allocation3 + $0x7e0] sm:$0xff]
    %v1648 = vld [vmem:[#allocation3 + $0x7e8] sm:$0xff]
    %v1649 = vld [vmem:[#allocation3 + $0x7f0] sm:$0xff]
    %v1650 = vld [vmem:[#allocation3 + $0x7f8] sm:$0xff]
    %v1651 = vpack.c.bf16 %v1387, %v1387
    %v1652 = vpack.c.bf16 %v1388, %v1388
    %v1653 = vpack.c.bf16 %v1389, %v1389
    %v1654 = vpack.c.bf16 %v1390, %v1390
    %v1655 = vld [vmem:[#allocation25] sm:$0xff]
    %v1657 = vlaneseq
    %v1658 = vshrl.u32 %v1657, 7
    %v1659 = vsub.s32 0, %v1658
    %v1660 = vrot.slane %v1655, %v1659
    %v1661 = vlaneseq
    %v1662 = vshrl.u32 %v1661, 7
    %v1663 = vsub.s32 1, %v1662
    %v1664 = vrot.slane %v1655, %v1663
    %v1665 = vlaneseq
    %v1666 = vshrl.u32 %v1665, 7
    %v1667 = vsub.s32 2, %v1666
    %v1668 = vrot.slane %v1655, %v1667
    %v1669 = vlaneseq
    %v1670 = vshrl.u32 %v1669, 7
    %v1671 = vsub.s32 3, %v1670
    %v1672 = vrot.slane %v1655, %v1671
    %v1673 = vlaneseq
    %v1674 = vshrl.u32 %v1673, 7
    %v1675 = vsub.s32 4, %v1674
    %v1676 = vrot.slane %v1655, %v1675
    %v1677 = vlaneseq
    %v1678 = vshrl.u32 %v1677, 7
    %v1679 = vsub.s32 5, %v1678
    %v1680 = vrot.slane %v1655, %v1679
    %v1681 = vlaneseq
    %v1682 = vshrl.u32 %v1681, 7
    %v1683 = vsub.s32 6, %v1682
    %v1684 = vrot.slane %v1655, %v1683
    %v1685 = vlaneseq
    %v1686 = vshrl.u32 %v1685, 7
    %v1687 = vsub.s32 7, %v1686
    %v1688 = vrot.slane %v1655, %v1687
    %v1953 = vunpack.c.l.b16 %v1395
    %v1954 = vunpack.c.h.b16 %v1395
    %v1955 = vunpack.c.l.b16 %v1396
    %v1956 = vunpack.c.h.b16 %v1396
    %v1957 = vunpack.c.l.b16 %v1397
    %v1958 = vunpack.c.h.b16 %v1397
    %v1959 = vunpack.c.l.b16 %v1398
    %v1960 = vunpack.c.h.b16 %v1398
    %v1961 = vunpack.c.l.b16 %v1399
    %v1962 = vunpack.c.h.b16 %v1399
    %v1963 = vunpack.c.l.b16 %v1400
    %v1964 = vunpack.c.h.b16 %v1400
    %v1965 = vunpack.c.l.b16 %v1401
    %v1966 = vunpack.c.h.b16 %v1401
    %v1967 = vunpack.c.l.b16 %v1402
    %v1968 = vunpack.c.h.b16 %v1402
    %v1969 = vunpack.c.l.b16 %v1403
    %v1970 = vunpack.c.h.b16 %v1403
    %v1971 = vunpack.c.l.b16 %v1404
    %v1972 = vunpack.c.h.b16 %v1404
    %v1973 = vunpack.c.l.b16 %v1405
    %v1974 = vunpack.c.h.b16 %v1405
    %v1975 = vunpack.c.l.b16 %v1406
    %v1976 = vunpack.c.h.b16 %v1406
    %v1977 = vunpack.c.l.b16 %v1407
    %v1978 = vunpack.c.h.b16 %v1407
    %v1979 = vunpack.c.l.b16 %v1408
    %v1980 = vunpack.c.h.b16 %v1408
    %v1981 = vunpack.c.l.b16 %v1409
    %v1982 = vunpack.c.h.b16 %v1409
    %v1983 = vunpack.c.l.b16 %v1410
    %v1984 = vunpack.c.h.b16 %v1410
    %v1985 = vunpack.c.l.b16 %v1411
    %v1986 = vunpack.c.h.b16 %v1411
    %v1987 = vunpack.c.l.b16 %v1412
    %v1988 = vunpack.c.h.b16 %v1412
    %v1989 = vunpack.c.l.b16 %v1413
    %v1990 = vunpack.c.h.b16 %v1413
    %v1991 = vunpack.c.l.b16 %v1414
    %v1992 = vunpack.c.h.b16 %v1414
    %v1993 = vunpack.c.l.b16 %v1415
    %v1994 = vunpack.c.h.b16 %v1415
    %v1995 = vunpack.c.l.b16 %v1416
    %v1996 = vunpack.c.h.b16 %v1416
    %v1997 = vunpack.c.l.b16 %v1417
    %v1998 = vunpack.c.h.b16 %v1417
    %v1999 = vunpack.c.l.b16 %v1418
    %v2000 = vunpack.c.h.b16 %v1418
    %v2001 = vunpack.c.l.b16 %v1419
    %v2002 = vunpack.c.h.b16 %v1419
    %v2003 = vunpack.c.l.b16 %v1420
    %v2004 = vunpack.c.h.b16 %v1420
    %v2005 = vunpack.c.l.b16 %v1421
    %v2006 = vunpack.c.h.b16 %v1421
    %v2007 = vunpack.c.l.b16 %v1422
    %v2008 = vunpack.c.h.b16 %v1422
    %v2009 = vunpack.c.l.b16 %v1423
    %v2010 = vunpack.c.h.b16 %v1423
    %v2011 = vunpack.c.l.b16 %v1424
    %v2012 = vunpack.c.h.b16 %v1424
    %v2013 = vunpack.c.l.b16 %v1425
    %v2014 = vunpack.c.h.b16 %v1425
    %v2015 = vunpack.c.l.b16 %v1426
    %v2016 = vunpack.c.h.b16 %v1426
    %v2017 = vunpack.c.l.b16 %v1427
    %v2018 = vunpack.c.h.b16 %v1427
    %v2019 = vunpack.c.l.b16 %v1428
    %v2020 = vunpack.c.h.b16 %v1428
    %v2021 = vunpack.c.l.b16 %v1429
    %v2022 = vunpack.c.h.b16 %v1429
    %v2023 = vunpack.c.l.b16 %v1430
    %v2024 = vunpack.c.h.b16 %v1430
    %v2025 = vunpack.c.l.b16 %v1431
    %v2026 = vunpack.c.h.b16 %v1431
    %v2027 = vunpack.c.l.b16 %v1432
    %v2028 = vunpack.c.h.b16 %v1432
    %v2029 = vunpack.c.l.b16 %v1433
    %v2030 = vunpack.c.h.b16 %v1433
    %v2031 = vunpack.c.l.b16 %v1434
    %v2032 = vunpack.c.h.b16 %v1434
    %v2033 = vunpack.c.l.b16 %v1435
    %v2034 = vunpack.c.h.b16 %v1435
    %v2035 = vunpack.c.l.b16 %v1436
    %v2036 = vunpack.c.h.b16 %v1436
    %v2037 = vunpack.c.l.b16 %v1437
    %v2038 = vunpack.c.h.b16 %v1437
    %v2039 = vunpack.c.l.b16 %v1438
    %v2040 = vunpack.c.h.b16 %v1438
    %v2041 = vunpack.c.l.b16 %v1439
    %v2042 = vunpack.c.h.b16 %v1439
    %v2043 = vunpack.c.l.b16 %v1440
    %v2044 = vunpack.c.h.b16 %v1440
    %v2045 = vunpack.c.l.b16 %v1441
    %v2046 = vunpack.c.h.b16 %v1441
    %v2047 = vunpack.c.l.b16 %v1442
    %v2048 = vunpack.c.h.b16 %v1442
    %v2049 = vunpack.c.l.b16 %v1443
    %v2050 = vunpack.c.h.b16 %v1443
    %v2051 = vunpack.c.l.b16 %v1444
    %v2052 = vunpack.c.h.b16 %v1444
    %v2053 = vunpack.c.l.b16 %v1445
    %v2054 = vunpack.c.h.b16 %v1445
    %v2055 = vunpack.c.l.b16 %v1446
    %v2056 = vunpack.c.h.b16 %v1446
    %v2057 = vunpack.c.l.b16 %v1447
    %v2058 = vunpack.c.h.b16 %v1447
    %v2059 = vunpack.c.l.b16 %v1448
    %v2060 = vunpack.c.h.b16 %v1448
    %v2061 = vunpack.c.l.b16 %v1449
    %v2062 = vunpack.c.h.b16 %v1449
    %v2063 = vunpack.c.l.b16 %v1450
    %v2064 = vunpack.c.h.b16 %v1450
    %v2065 = vunpack.c.l.b16 %v1451
    %v2066 = vunpack.c.h.b16 %v1451
    %v2067 = vunpack.c.l.b16 %v1452
    %v2068 = vunpack.c.h.b16 %v1452
    %v2069 = vunpack.c.l.b16 %v1453
    %v2070 = vunpack.c.h.b16 %v1453
    %v2071 = vunpack.c.l.b16 %v1454
    %v2072 = vunpack.c.h.b16 %v1454
    %v2073 = vunpack.c.l.b16 %v1455
    %v2074 = vunpack.c.h.b16 %v1455
    %v2075 = vunpack.c.l.b16 %v1456
    %v2076 = vunpack.c.h.b16 %v1456
    %v2077 = vunpack.c.l.b16 %v1457
    %v2078 = vunpack.c.h.b16 %v1457
    %v2079 = vunpack.c.l.b16 %v1458
    %v2080 = vunpack.c.h.b16 %v1458
    %v2081 = vunpack.c.l.b16 %v1459
    %v2082 = vunpack.c.h.b16 %v1459
    %v2083 = vunpack.c.l.b16 %v1460
    %v2084 = vunpack.c.h.b16 %v1460
    %v2085 = vunpack.c.l.b16 %v1461
    %v2086 = vunpack.c.h.b16 %v1461
    %v2087 = vunpack.c.l.b16 %v1462
    %v2088 = vunpack.c.h.b16 %v1462
    %v2089 = vunpack.c.l.b16 %v1463
    %v2090 = vunpack.c.h.b16 %v1463
    %v2091 = vunpack.c.l.b16 %v1464
    %v2092 = vunpack.c.h.b16 %v1464
    %v2093 = vunpack.c.l.b16 %v1465
    %v2094 = vunpack.c.h.b16 %v1465
    %v2095 = vunpack.c.l.b16 %v1466
    %v2096 = vunpack.c.h.b16 %v1466
    %v2097 = vunpack.c.l.b16 %v1467
    %v2098 = vunpack.c.h.b16 %v1467
    %v2099 = vunpack.c.l.b16 %v1468
    %v2100 = vunpack.c.h.b16 %v1468
    %v2101 = vunpack.c.l.b16 %v1469
    %v2102 = vunpack.c.h.b16 %v1469
    %v2103 = vunpack.c.l.b16 %v1470
    %v2104 = vunpack.c.h.b16 %v1470
    %v2105 = vunpack.c.l.b16 %v1471
    %v2106 = vunpack.c.h.b16 %v1471
    %v2107 = vunpack.c.l.b16 %v1472
    %v2108 = vunpack.c.h.b16 %v1472
    %v2109 = vunpack.c.l.b16 %v1473
    %v2110 = vunpack.c.h.b16 %v1473
    %v2111 = vunpack.c.l.b16 %v1474
    %v2112 = vunpack.c.h.b16 %v1474
    %v2113 = vunpack.c.l.b16 %v1475
    %v2114 = vunpack.c.h.b16 %v1475
    %v2115 = vunpack.c.l.b16 %v1476
    %v2116 = vunpack.c.h.b16 %v1476
    %v2117 = vunpack.c.l.b16 %v1477
    %v2118 = vunpack.c.h.b16 %v1477
    %v2119 = vunpack.c.l.b16 %v1478
    %v2120 = vunpack.c.h.b16 %v1478
    %v2121 = vunpack.c.l.b16 %v1479
    %v2122 = vunpack.c.h.b16 %v1479
    %v2123 = vunpack.c.l.b16 %v1480
    %v2124 = vunpack.c.h.b16 %v1480
    %v2125 = vunpack.c.l.b16 %v1481
    %v2126 = vunpack.c.h.b16 %v1481
    %v2127 = vunpack.c.l.b16 %v1482
    %v2128 = vunpack.c.h.b16 %v1482
    %v2129 = vunpack.c.l.b16 %v1483
    %v2130 = vunpack.c.h.b16 %v1483
    %v2131 = vunpack.c.l.b16 %v1484
    %v2132 = vunpack.c.h.b16 %v1484
    %v2133 = vunpack.c.l.b16 %v1485
    %v2134 = vunpack.c.h.b16 %v1485
    %v2135 = vunpack.c.l.b16 %v1486
    %v2136 = vunpack.c.h.b16 %v1486
    %v2137 = vunpack.c.l.b16 %v1487
    %v2138 = vunpack.c.h.b16 %v1487
    %v2139 = vunpack.c.l.b16 %v1488
    %v2140 = vunpack.c.h.b16 %v1488
    %v2141 = vunpack.c.l.b16 %v1489
    %v2142 = vunpack.c.h.b16 %v1489
    %v2143 = vunpack.c.l.b16 %v1490
    %v2144 = vunpack.c.h.b16 %v1490
    %v2145 = vunpack.c.l.b16 %v1491
    %v2146 = vunpack.c.h.b16 %v1491
    %v2147 = vunpack.c.l.b16 %v1492
    %v2148 = vunpack.c.h.b16 %v1492
    %v2149 = vunpack.c.l.b16 %v1493
    %v2150 = vunpack.c.h.b16 %v1493
    %v2151 = vunpack.c.l.b16 %v1494
    %v2152 = vunpack.c.h.b16 %v1494
    %v2153 = vunpack.c.l.b16 %v1495
    %v2154 = vunpack.c.h.b16 %v1495
    %v2155 = vunpack.c.l.b16 %v1496
    %v2156 = vunpack.c.h.b16 %v1496
    %v2157 = vunpack.c.l.b16 %v1497
    %v2158 = vunpack.c.h.b16 %v1497
    %v2159 = vunpack.c.l.b16 %v1498
    %v2160 = vunpack.c.h.b16 %v1498
    %v2161 = vunpack.c.l.b16 %v1499
    %v2162 = vunpack.c.h.b16 %v1499
    %v2163 = vunpack.c.l.b16 %v1500
    %v2164 = vunpack.c.h.b16 %v1500
    %v2165 = vunpack.c.l.b16 %v1501
    %v2166 = vunpack.c.h.b16 %v1501
    %v2167 = vunpack.c.l.b16 %v1502
    %v2168 = vunpack.c.h.b16 %v1502
    %v2169 = vunpack.c.l.b16 %v1503
    %v2170 = vunpack.c.h.b16 %v1503
    %v2171 = vunpack.c.l.b16 %v1504
    %v2172 = vunpack.c.h.b16 %v1504
    %v2173 = vunpack.c.l.b16 %v1505
    %v2174 = vunpack.c.h.b16 %v1505
    %v2175 = vunpack.c.l.b16 %v1506
    %v2176 = vunpack.c.h.b16 %v1506
    %v2177 = vunpack.c.l.b16 %v1507
    %v2178 = vunpack.c.h.b16 %v1507
    %v2179 = vunpack.c.l.b16 %v1508
    %v2180 = vunpack.c.h.b16 %v1508
    %v2181 = vunpack.c.l.b16 %v1509
    %v2182 = vunpack.c.h.b16 %v1509
    %v2183 = vunpack.c.l.b16 %v1510
    %v2184 = vunpack.c.h.b16 %v1510
    %v2185 = vunpack.c.l.b16 %v1511
    %v2186 = vunpack.c.h.b16 %v1511
    %v2187 = vunpack.c.l.b16 %v1512
    %v2188 = vunpack.c.h.b16 %v1512
    %v2189 = vunpack.c.l.b16 %v1513
    %v2190 = vunpack.c.h.b16 %v1513
    %v2191 = vunpack.c.l.b16 %v1514
    %v2192 = vunpack.c.h.b16 %v1514
    %v2193 = vunpack.c.l.b16 %v1515
    %v2194 = vunpack.c.h.b16 %v1515
    %v2195 = vunpack.c.l.b16 %v1516
    %v2196 = vunpack.c.h.b16 %v1516
    %v2197 = vunpack.c.l.b16 %v1517
    %v2198 = vunpack.c.h.b16 %v1517
    %v2199 = vunpack.c.l.b16 %v1518
    %v2200 = vunpack.c.h.b16 %v1518
    %v2201 = vunpack.c.l.b16 %v1519
    %v2202 = vunpack.c.h.b16 %v1519
    %v2203 = vunpack.c.l.b16 %v1520
    %v2204 = vunpack.c.h.b16 %v1520
    %v2205 = vunpack.c.l.b16 %v1521
    %v2206 = vunpack.c.h.b16 %v1521
    %v2207 = vunpack.c.l.b16 %v1522
    %v2208 = vunpack.c.h.b16 %v1522
    %v2209 = vunpack.c.l.b16 %v1523
    %v2210 = vunpack.c.h.b16 %v1523
    %v2211 = vunpack.c.l.b16 %v1524
    %v2212 = vunpack.c.h.b16 %v1524
    %v2213 = vunpack.c.l.b16 %v1525
    %v2214 = vunpack.c.h.b16 %v1525
    %v2215 = vunpack.c.l.b16 %v1526
    %v2216 = vunpack.c.h.b16 %v1526
    %v2217 = vunpack.c.l.b16 %v1527
    %v2218 = vunpack.c.h.b16 %v1527
    %v2219 = vunpack.c.l.b16 %v1528
    %v2220 = vunpack.c.h.b16 %v1528
    %v2221 = vunpack.c.l.b16 %v1529
    %v2222 = vunpack.c.h.b16 %v1529
    %v2223 = vunpack.c.l.b16 %v1530
    %v2224 = vunpack.c.h.b16 %v1530
    %v2225 = vunpack.c.l.b16 %v1531
    %v2226 = vunpack.c.h.b16 %v1531
    %v2227 = vunpack.c.l.b16 %v1532
    %v2228 = vunpack.c.h.b16 %v1532
    %v2229 = vunpack.c.l.b16 %v1533
    %v2230 = vunpack.c.h.b16 %v1533
    %v2231 = vunpack.c.l.b16 %v1534
    %v2232 = vunpack.c.h.b16 %v1534
    %v2233 = vunpack.c.l.b16 %v1535
    %v2234 = vunpack.c.h.b16 %v1535
    %v2235 = vunpack.c.l.b16 %v1536
    %v2236 = vunpack.c.h.b16 %v1536
    %v2237 = vunpack.c.l.b16 %v1537
    %v2238 = vunpack.c.h.b16 %v1537
    %v2239 = vunpack.c.l.b16 %v1538
    %v2240 = vunpack.c.h.b16 %v1538
    %v2241 = vunpack.c.l.b16 %v1539
    %v2242 = vunpack.c.h.b16 %v1539
    %v2243 = vunpack.c.l.b16 %v1540
    %v2244 = vunpack.c.h.b16 %v1540
    %v2245 = vunpack.c.l.b16 %v1541
    %v2246 = vunpack.c.h.b16 %v1541
    %v2247 = vunpack.c.l.b16 %v1542
    %v2248 = vunpack.c.h.b16 %v1542
    %v2249 = vunpack.c.l.b16 %v1543
    %v2250 = vunpack.c.h.b16 %v1543
    %v2251 = vunpack.c.l.b16 %v1544
    %v2252 = vunpack.c.h.b16 %v1544
    %v2253 = vunpack.c.l.b16 %v1545
    %v2254 = vunpack.c.h.b16 %v1545
    %v2255 = vunpack.c.l.b16 %v1546
    %v2256 = vunpack.c.h.b16 %v1546
    %v2257 = vunpack.c.l.b16 %v1547
    %v2258 = vunpack.c.h.b16 %v1547
    %v2259 = vunpack.c.l.b16 %v1548
    %v2260 = vunpack.c.h.b16 %v1548
    %v2261 = vunpack.c.l.b16 %v1549
    %v2262 = vunpack.c.h.b16 %v1549
    %v2263 = vunpack.c.l.b16 %v1550
    %v2264 = vunpack.c.h.b16 %v1550
    %v2265 = vunpack.c.l.b16 %v1551
    %v2266 = vunpack.c.h.b16 %v1551
    %v2267 = vunpack.c.l.b16 %v1552
    %v2268 = vunpack.c.h.b16 %v1552
    %v2269 = vunpack.c.l.b16 %v1553
    %v2270 = vunpack.c.h.b16 %v1553
    %v2271 = vunpack.c.l.b16 %v1554
    %v2272 = vunpack.c.h.b16 %v1554
    %v2273 = vunpack.c.l.b16 %v1555
    %v2274 = vunpack.c.h.b16 %v1555
    %v2275 = vunpack.c.l.b16 %v1556
    %v2276 = vunpack.c.h.b16 %v1556
    %v2277 = vunpack.c.l.b16 %v1557
    %v2278 = vunpack.c.h.b16 %v1557
    %v2279 = vunpack.c.l.b16 %v1558
    %v2280 = vunpack.c.h.b16 %v1558
    %v2281 = vunpack.c.l.b16 %v1559
    %v2282 = vunpack.c.h.b16 %v1559
    %v2283 = vunpack.c.l.b16 %v1560
    %v2284 = vunpack.c.h.b16 %v1560
    %v2285 = vunpack.c.l.b16 %v1561
    %v2286 = vunpack.c.h.b16 %v1561
    %v2287 = vunpack.c.l.b16 %v1562
    %v2288 = vunpack.c.h.b16 %v1562
    %v2289 = vunpack.c.l.b16 %v1563
    %v2290 = vunpack.c.h.b16 %v1563
    %v2291 = vunpack.c.l.b16 %v1564
    %v2292 = vunpack.c.h.b16 %v1564
    %v2293 = vunpack.c.l.b16 %v1565
    %v2294 = vunpack.c.h.b16 %v1565
    %v2295 = vunpack.c.l.b16 %v1566
    %v2296 = vunpack.c.h.b16 %v1566
    %v2297 = vunpack.c.l.b16 %v1567
    %v2298 = vunpack.c.h.b16 %v1567
    %v2299 = vunpack.c.l.b16 %v1568
    %v2300 = vunpack.c.h.b16 %v1568
    %v2301 = vunpack.c.l.b16 %v1569
    %v2302 = vunpack.c.h.b16 %v1569
    %v2303 = vunpack.c.l.b16 %v1570
    %v2304 = vunpack.c.h.b16 %v1570
    %v2305 = vunpack.c.l.b16 %v1571
    %v2306 = vunpack.c.h.b16 %v1571
    %v2307 = vunpack.c.l.b16 %v1572
    %v2308 = vunpack.c.h.b16 %v1572
    %v2309 = vunpack.c.l.b16 %v1573
    %v2310 = vunpack.c.h.b16 %v1573
    %v2311 = vunpack.c.l.b16 %v1574
    %v2312 = vunpack.c.h.b16 %v1574
    %v2313 = vunpack.c.l.b16 %v1575
    %v2314 = vunpack.c.h.b16 %v1575
    %v2315 = vunpack.c.l.b16 %v1576
    %v2316 = vunpack.c.h.b16 %v1576
    %v2317 = vunpack.c.l.b16 %v1577
    %v2318 = vunpack.c.h.b16 %v1577
    %v2319 = vunpack.c.l.b16 %v1578
    %v2320 = vunpack.c.h.b16 %v1578
    %v2321 = vunpack.c.l.b16 %v1579
    %v2322 = vunpack.c.h.b16 %v1579
    %v2323 = vunpack.c.l.b16 %v1580
    %v2324 = vunpack.c.h.b16 %v1580
    %v2325 = vunpack.c.l.b16 %v1581
    %v2326 = vunpack.c.h.b16 %v1581
    %v2327 = vunpack.c.l.b16 %v1582
    %v2328 = vunpack.c.h.b16 %v1582
    %v2329 = vunpack.c.l.b16 %v1583
    %v2330 = vunpack.c.h.b16 %v1583
    %v2331 = vunpack.c.l.b16 %v1584
    %v2332 = vunpack.c.h.b16 %v1584
    %v2333 = vunpack.c.l.b16 %v1585
    %v2334 = vunpack.c.h.b16 %v1585
    %v2335 = vunpack.c.l.b16 %v1586
    %v2336 = vunpack.c.h.b16 %v1586
    %v2337 = vunpack.c.l.b16 %v1587
    %v2338 = vunpack.c.h.b16 %v1587
    %v2339 = vunpack.c.l.b16 %v1588
    %v2340 = vunpack.c.h.b16 %v1588
    %v2341 = vunpack.c.l.b16 %v1589
    %v2342 = vunpack.c.h.b16 %v1589
    %v2343 = vunpack.c.l.b16 %v1590
    %v2344 = vunpack.c.h.b16 %v1590
    %v2345 = vunpack.c.l.b16 %v1591
    %v2346 = vunpack.c.h.b16 %v1591
    %v2347 = vunpack.c.l.b16 %v1592
    %v2348 = vunpack.c.h.b16 %v1592
    %v2349 = vunpack.c.l.b16 %v1593
    %v2350 = vunpack.c.h.b16 %v1593
    %v2351 = vunpack.c.l.b16 %v1594
    %v2352 = vunpack.c.h.b16 %v1594
    %v2353 = vunpack.c.l.b16 %v1595
    %v2354 = vunpack.c.h.b16 %v1595
    %v2355 = vunpack.c.l.b16 %v1596
    %v2356 = vunpack.c.h.b16 %v1596
    %v2357 = vunpack.c.l.b16 %v1597
    %v2358 = vunpack.c.h.b16 %v1597
    %v2359 = vunpack.c.l.b16 %v1598
    %v2360 = vunpack.c.h.b16 %v1598
    %v2361 = vunpack.c.l.b16 %v1599
    %v2362 = vunpack.c.h.b16 %v1599
    %v2363 = vunpack.c.l.b16 %v1600
    %v2364 = vunpack.c.h.b16 %v1600
    %v2365 = vunpack.c.l.b16 %v1601
    %v2366 = vunpack.c.h.b16 %v1601
    %v2367 = vunpack.c.l.b16 %v1602
    %v2368 = vunpack.c.h.b16 %v1602
    %v2369 = vunpack.c.l.b16 %v1603
    %v2370 = vunpack.c.h.b16 %v1603
    %v2371 = vunpack.c.l.b16 %v1604
    %v2372 = vunpack.c.h.b16 %v1604
    %v2373 = vunpack.c.l.b16 %v1605
    %v2374 = vunpack.c.h.b16 %v1605
    %v2375 = vunpack.c.l.b16 %v1606
    %v2376 = vunpack.c.h.b16 %v1606
    %v2377 = vunpack.c.l.b16 %v1607
    %v2378 = vunpack.c.h.b16 %v1607
    %v2379 = vunpack.c.l.b16 %v1608
    %v2380 = vunpack.c.h.b16 %v1608
    %v2381 = vunpack.c.l.b16 %v1609
    %v2382 = vunpack.c.h.b16 %v1609
    %v2383 = vunpack.c.l.b16 %v1610
    %v2384 = vunpack.c.h.b16 %v1610
    %v2385 = vunpack.c.l.b16 %v1611
    %v2386 = vunpack.c.h.b16 %v1611
    %v2387 = vunpack.c.l.b16 %v1612
    %v2388 = vunpack.c.h.b16 %v1612
    %v2389 = vunpack.c.l.b16 %v1613
    %v2390 = vunpack.c.h.b16 %v1613
    %v2391 = vunpack.c.l.b16 %v1614
    %v2392 = vunpack.c.h.b16 %v1614
    %v2393 = vunpack.c.l.b16 %v1615
    %v2394 = vunpack.c.h.b16 %v1615
    %v2395 = vunpack.c.l.b16 %v1616
    %v2396 = vunpack.c.h.b16 %v1616
    %v2397 = vunpack.c.l.b16 %v1617
    %v2398 = vunpack.c.h.b16 %v1617
    %v2399 = vunpack.c.l.b16 %v1618
    %v2400 = vunpack.c.h.b16 %v1618
    %v2401 = vunpack.c.l.b16 %v1619
    %v2402 = vunpack.c.h.b16 %v1619
    %v2403 = vunpack.c.l.b16 %v1620
    %v2404 = vunpack.c.h.b16 %v1620
    %v2405 = vunpack.c.l.b16 %v1621
    %v2406 = vunpack.c.h.b16 %v1621
    %v2407 = vunpack.c.l.b16 %v1622
    %v2408 = vunpack.c.h.b16 %v1622
    %v2409 = vunpack.c.l.b16 %v1623
    %v2410 = vunpack.c.h.b16 %v1623
    %v2411 = vunpack.c.l.b16 %v1624
    %v2412 = vunpack.c.h.b16 %v1624
    %v2413 = vunpack.c.l.b16 %v1625
    %v2414 = vunpack.c.h.b16 %v1625
    %v2415 = vunpack.c.l.b16 %v1626
    %v2416 = vunpack.c.h.b16 %v1626
    %v2417 = vunpack.c.l.b16 %v1627
    %v2418 = vunpack.c.h.b16 %v1627
    %v2419 = vunpack.c.l.b16 %v1628
    %v2420 = vunpack.c.h.b16 %v1628
    %v2421 = vunpack.c.l.b16 %v1629
    %v2422 = vunpack.c.h.b16 %v1629
    %v2423 = vunpack.c.l.b16 %v1630
    %v2424 = vunpack.c.h.b16 %v1630
    %v2425 = vunpack.c.l.b16 %v1631
    %v2426 = vunpack.c.h.b16 %v1631
    %v2427 = vunpack.c.l.b16 %v1632
    %v2428 = vunpack.c.h.b16 %v1632
    %v2429 = vunpack.c.l.b16 %v1633
    %v2430 = vunpack.c.h.b16 %v1633
    %v2431 = vunpack.c.l.b16 %v1634
    %v2432 = vunpack.c.h.b16 %v1634
    %v2433 = vunpack.c.l.b16 %v1635
    %v2434 = vunpack.c.h.b16 %v1635
    %v2435 = vunpack.c.l.b16 %v1636
    %v2436 = vunpack.c.h.b16 %v1636
    %v2437 = vunpack.c.l.b16 %v1637
    %v2438 = vunpack.c.h.b16 %v1637
    %v2439 = vunpack.c.l.b16 %v1638
    %v2440 = vunpack.c.h.b16 %v1638
    %v2441 = vunpack.c.l.b16 %v1639
    %v2442 = vunpack.c.h.b16 %v1639
    %v2443 = vunpack.c.l.b16 %v1640
    %v2444 = vunpack.c.h.b16 %v1640
    %v2445 = vunpack.c.l.b16 %v1641
    %v2446 = vunpack.c.h.b16 %v1641
    %v2447 = vunpack.c.l.b16 %v1642
    %v2448 = vunpack.c.h.b16 %v1642
    %v2449 = vunpack.c.l.b16 %v1643
    %v2450 = vunpack.c.h.b16 %v1643
    %v2451 = vunpack.c.l.b16 %v1644
    %v2452 = vunpack.c.h.b16 %v1644
    %v2453 = vunpack.c.l.b16 %v1645
    %v2454 = vunpack.c.h.b16 %v1645
    %v2455 = vunpack.c.l.b16 %v1646
    %v2456 = vunpack.c.h.b16 %v1646
    %v2457 = vunpack.c.l.b16 %v1647
    %v2458 = vunpack.c.h.b16 %v1647
    %v2459 = vunpack.c.l.b16 %v1648
    %v2460 = vunpack.c.h.b16 %v1648
    %v2461 = vunpack.c.l.b16 %v1649
    %v2462 = vunpack.c.h.b16 %v1649
    %v2463 = vunpack.c.l.b16 %v1650
    %v2464 = vunpack.c.h.b16 %v1650
    %v2465 = vpack.c.b16 %v1961, %v1953
    %v2466 = vpack.c.b16 %v1962, %v1954
    %v2467 = vpack.c.b16 %v1963, %v1955
    %v2468 = vpack.c.b16 %v1964, %v1956
    %v2469 = vpack.c.b16 %v1965, %v1957
    %v2470 = vpack.c.b16 %v1966, %v1958
    %v2471 = vpack.c.b16 %v1967, %v1959
    %v2472 = vpack.c.b16 %v1968, %v1960
    %v2473 = vpack.c.b16 %v1977, %v1969
    %v2474 = vpack.c.b16 %v1978, %v1970
    %v2475 = vpack.c.b16 %v1979, %v1971
    %v2476 = vpack.c.b16 %v1980, %v1972
    %v2477 = vpack.c.b16 %v1981, %v1973
    %v2478 = vpack.c.b16 %v1982, %v1974
    %v2479 = vpack.c.b16 %v1983, %v1975
    %v2480 = vpack.c.b16 %v1984, %v1976
    %v2481 = vpack.c.b16 %v1993, %v1985
    %v2482 = vpack.c.b16 %v1994, %v1986
    %v2483 = vpack.c.b16 %v1995, %v1987
    %v2484 = vpack.c.b16 %v1996, %v1988
    %v2485 = vpack.c.b16 %v1997, %v1989
    %v2486 = vpack.c.b16 %v1998, %v1990
    %v2487 = vpack.c.b16 %v1999, %v1991
    %v2488 = vpack.c.b16 %v2000, %v1992
    %v2489 = vpack.c.b16 %v2009, %v2001
    %v2490 = vpack.c.b16 %v2010, %v2002
    %v2491 = vpack.c.b16 %v2011, %v2003
    %v2492 = vpack.c.b16 %v2012, %v2004
    %v2493 = vpack.c.b16 %v2013, %v2005
    %v2494 = vpack.c.b16 %v2014, %v2006
    %v2495 = vpack.c.b16 %v2015, %v2007
    %v2496 = vpack.c.b16 %v2016, %v2008
    %v2497 = vpack.c.b16 %v2025, %v2017
    %v2498 = vpack.c.b16 %v2026, %v2018
    %v2499 = vpack.c.b16 %v2027, %v2019
    %v2500 = vpack.c.b16 %v2028, %v2020
    %v2501 = vpack.c.b16 %v2029, %v2021
    %v2502 = vpack.c.b16 %v2030, %v2022
    %v2503 = vpack.c.b16 %v2031, %v2023
    %v2504 = vpack.c.b16 %v2032, %v2024
    %v2505 = vpack.c.b16 %v2041, %v2033
    %v2506 = vpack.c.b16 %v2042, %v2034
    %v2507 = vpack.c.b16 %v2043, %v2035
    %v2508 = vpack.c.b16 %v2044, %v2036
    %v2509 = vpack.c.b16 %v2045, %v2037
    %v2510 = vpack.c.b16 %v2046, %v2038
    %v2511 = vpack.c.b16 %v2047, %v2039
    %v2512 = vpack.c.b16 %v2048, %v2040
    %v2513 = vpack.c.b16 %v2057, %v2049
    %v2514 = vpack.c.b16 %v2058, %v2050
    %v2515 = vpack.c.b16 %v2059, %v2051
    %v2516 = vpack.c.b16 %v2060, %v2052
    %v2517 = vpack.c.b16 %v2061, %v2053
    %v2518 = vpack.c.b16 %v2062, %v2054
    %v2519 = vpack.c.b16 %v2063, %v2055
    %v2520 = vpack.c.b16 %v2064, %v2056
    %v2521 = vpack.c.b16 %v2073, %v2065
    %v2522 = vpack.c.b16 %v2074, %v2066
    %v2523 = vpack.c.b16 %v2075, %v2067
    %v2524 = vpack.c.b16 %v2076, %v2068
    %v2525 = vpack.c.b16 %v2077, %v2069
    %v2526 = vpack.c.b16 %v2078, %v2070
    %v2527 = vpack.c.b16 %v2079, %v2071
    %v2528 = vpack.c.b16 %v2080, %v2072
    %v2529 = vpack.c.b16 %v2089, %v2081
    %v2530 = vpack.c.b16 %v2090, %v2082
    %v2531 = vpack.c.b16 %v2091, %v2083
    %v2532 = vpack.c.b16 %v2092, %v2084
    %v2533 = vpack.c.b16 %v2093, %v2085
    %v2534 = vpack.c.b16 %v2094, %v2086
    %v2535 = vpack.c.b16 %v2095, %v2087
    %v2536 = vpack.c.b16 %v2096, %v2088
    %v2537 = vpack.c.b16 %v2105, %v2097
    %v2538 = vpack.c.b16 %v2106, %v2098
    %v2539 = vpack.c.b16 %v2107, %v2099
    %v2540 = vpack.c.b16 %v2108, %v2100
    %v2541 = vpack.c.b16 %v2109, %v2101
    %v2542 = vpack.c.b16 %v2110, %v2102
    %v2543 = vpack.c.b16 %v2111, %v2103
    %v2544 = vpack.c.b16 %v2112, %v2104
    %v2545 = vpack.c.b16 %v2121, %v2113
    %v2546 = vpack.c.b16 %v2122, %v2114
    %v2547 = vpack.c.b16 %v2123, %v2115
    %v2548 = vpack.c.b16 %v2124, %v2116
    %v2549 = vpack.c.b16 %v2125, %v2117
    %v2550 = vpack.c.b16 %v2126, %v2118
    %v2551 = vpack.c.b16 %v2127, %v2119
    %v2552 = vpack.c.b16 %v2128, %v2120
    %v2553 = vpack.c.b16 %v2137, %v2129
    %v2554 = vpack.c.b16 %v2138, %v2130
    %v2555 = vpack.c.b16 %v2139, %v2131
    %v2556 = vpack.c.b16 %v2140, %v2132
    %v2557 = vpack.c.b16 %v2141, %v2133
    %v2558 = vpack.c.b16 %v2142, %v2134
    %v2559 = vpack.c.b16 %v2143, %v2135
    %v2560 = vpack.c.b16 %v2144, %v2136
    %v2561 = vpack.c.b16 %v2153, %v2145
    %v2562 = vpack.c.b16 %v2154, %v2146
    %v2563 = vpack.c.b16 %v2155, %v2147
    %v2564 = vpack.c.b16 %v2156, %v2148
    %v2565 = vpack.c.b16 %v2157, %v2149
    %v2566 = vpack.c.b16 %v2158, %v2150
    %v2567 = vpack.c.b16 %v2159, %v2151
    %v2568 = vpack.c.b16 %v2160, %v2152
    %v2569 = vpack.c.b16 %v2169, %v2161
    %v2570 = vpack.c.b16 %v2170, %v2162
    %v2571 = vpack.c.b16 %v2171, %v2163
    %v2572 = vpack.c.b16 %v2172, %v2164
    %v2573 = vpack.c.b16 %v2173, %v2165
    %v2574 = vpack.c.b16 %v2174, %v2166
    %v2575 = vpack.c.b16 %v2175, %v2167
    %v2576 = vpack.c.b16 %v2176, %v2168
    %v2577 = vpack.c.b16 %v2185, %v2177
    %v2578 = vpack.c.b16 %v2186, %v2178
    %v2579 = vpack.c.b16 %v2187, %v2179
    %v2580 = vpack.c.b16 %v2188, %v2180
    %v2581 = vpack.c.b16 %v2189, %v2181
    %v2582 = vpack.c.b16 %v2190, %v2182
    %v2583 = vpack.c.b16 %v2191, %v2183
    %v2584 = vpack.c.b16 %v2192, %v2184
    %v2585 = vpack.c.b16 %v2201, %v2193
    %v2586 = vpack.c.b16 %v2202, %v2194
    %v2587 = vpack.c.b16 %v2203, %v2195
    %v2588 = vpack.c.b16 %v2204, %v2196
    %v2589 = vpack.c.b16 %v2205, %v2197
    %v2590 = vpack.c.b16 %v2206, %v2198
    %v2591 = vpack.c.b16 %v2207, %v2199
    %v2592 = vpack.c.b16 %v2208, %v2200
    %v2593 = vpack.c.b16 %v2217, %v2209
    %v2594 = vpack.c.b16 %v2218, %v2210
    %v2595 = vpack.c.b16 %v2219, %v2211
    %v2596 = vpack.c.b16 %v2220, %v2212
    %v2597 = vpack.c.b16 %v2221, %v2213
    %v2598 = vpack.c.b16 %v2222, %v2214
    %v2599 = vpack.c.b16 %v2223, %v2215
    %v2600 = vpack.c.b16 %v2224, %v2216
    %v2601 = vpack.c.b16 %v2233, %v2225
    %v2602 = vpack.c.b16 %v2234, %v2226
    %v2603 = vpack.c.b16 %v2235, %v2227
    %v2604 = vpack.c.b16 %v2236, %v2228
    %v2605 = vpack.c.b16 %v2237, %v2229
    %v2606 = vpack.c.b16 %v2238, %v2230
    %v2607 = vpack.c.b16 %v2239, %v2231
    %v2608 = vpack.c.b16 %v2240, %v2232
    %v2609 = vpack.c.b16 %v2249, %v2241
    %v2610 = vpack.c.b16 %v2250, %v2242
    %v2611 = vpack.c.b16 %v2251, %v2243
    %v2612 = vpack.c.b16 %v2252, %v2244
    %v2613 = vpack.c.b16 %v2253, %v2245
    %v2614 = vpack.c.b16 %v2254, %v2246
    %v2615 = vpack.c.b16 %v2255, %v2247
    %v2616 = vpack.c.b16 %v2256, %v2248
    %v2617 = vpack.c.b16 %v2265, %v2257
    %v2618 = vpack.c.b16 %v2266, %v2258
    %v2619 = vpack.c.b16 %v2267, %v2259
    %v2620 = vpack.c.b16 %v2268, %v2260
    %v2621 = vpack.c.b16 %v2269, %v2261
    %v2622 = vpack.c.b16 %v2270, %v2262
    %v2623 = vpack.c.b16 %v2271, %v2263
    %v2624 = vpack.c.b16 %v2272, %v2264
    %v2625 = vpack.c.b16 %v2281, %v2273
    %v2626 = vpack.c.b16 %v2282, %v2274
    %v2627 = vpack.c.b16 %v2283, %v2275
    %v2628 = vpack.c.b16 %v2284, %v2276
    %v2629 = vpack.c.b16 %v2285, %v2277
    %v2630 = vpack.c.b16 %v2286, %v2278
    %v2631 = vpack.c.b16 %v2287, %v2279
    %v2632 = vpack.c.b16 %v2288, %v2280
    %v2633 = vpack.c.b16 %v2297, %v2289
    %v2634 = vpack.c.b16 %v2298, %v2290
    %v2635 = vpack.c.b16 %v2299, %v2291
    %v2636 = vpack.c.b16 %v2300, %v2292
    %v2637 = vpack.c.b16 %v2301, %v2293
    %v2638 = vpack.c.b16 %v2302, %v2294
    %v2639 = vpack.c.b16 %v2303, %v2295
    %v2640 = vpack.c.b16 %v2304, %v2296
    %v2641 = vpack.c.b16 %v2313, %v2305
    %v2642 = vpack.c.b16 %v2314, %v2306
    %v2643 = vpack.c.b16 %v2315, %v2307
    %v2644 = vpack.c.b16 %v2316, %v2308
    %v2645 = vpack.c.b16 %v2317, %v2309
    %v2646 = vpack.c.b16 %v2318, %v2310
    %v2647 = vpack.c.b16 %v2319, %v2311
    %v2648 = vpack.c.b16 %v2320, %v2312
    %v2649 = vpack.c.b16 %v2329, %v2321
    %v2650 = vpack.c.b16 %v2330, %v2322
    %v2651 = vpack.c.b16 %v2331, %v2323
    %v2652 = vpack.c.b16 %v2332, %v2324
    %v2653 = vpack.c.b16 %v2333, %v2325
    %v2654 = vpack.c.b16 %v2334, %v2326
    %v2655 = vpack.c.b16 %v2335, %v2327
    %v2656 = vpack.c.b16 %v2336, %v2328
    %v2657 = vpack.c.b16 %v2345, %v2337
    %v2658 = vpack.c.b16 %v2346, %v2338
    %v2659 = vpack.c.b16 %v2347, %v2339
    %v2660 = vpack.c.b16 %v2348, %v2340
    %v2661 = vpack.c.b16 %v2349, %v2341
    %v2662 = vpack.c.b16 %v2350, %v2342
    %v2663 = vpack.c.b16 %v2351, %v2343
    %v2664 = vpack.c.b16 %v2352, %v2344
    %v2665 = vpack.c.b16 %v2361, %v2353
    %v2666 = vpack.c.b16 %v2362, %v2354
    %v2667 = vpack.c.b16 %v2363, %v2355
    %v2668 = vpack.c.b16 %v2364, %v2356
    %v2669 = vpack.c.b16 %v2365, %v2357
    %v2670 = vpack.c.b16 %v2366, %v2358
    %v2671 = vpack.c.b16 %v2367, %v2359
    %v2672 = vpack.c.b16 %v2368, %v2360
    %v2673 = vpack.c.b16 %v2377, %v2369
    %v2674 = vpack.c.b16 %v2378, %v2370
    %v2675 = vpack.c.b16 %v2379, %v2371
    %v2676 = vpack.c.b16 %v2380, %v2372
    %v2677 = vpack.c.b16 %v2381, %v2373
    %v2678 = vpack.c.b16 %v2382, %v2374
    %v2679 = vpack.c.b16 %v2383, %v2375
    %v2680 = vpack.c.b16 %v2384, %v2376
    %v2681 = vpack.c.b16 %v2393, %v2385
    %v2682 = vpack.c.b16 %v2394, %v2386
    %v2683 = vpack.c.b16 %v2395, %v2387
    %v2684 = vpack.c.b16 %v2396, %v2388
    %v2685 = vpack.c.b16 %v2397, %v2389
    %v2686 = vpack.c.b16 %v2398, %v2390
    %v2687 = vpack.c.b16 %v2399, %v2391
    %v2688 = vpack.c.b16 %v2400, %v2392
    %v2689 = vpack.c.b16 %v2409, %v2401
    %v2690 = vpack.c.b16 %v2410, %v2402
    %v2691 = vpack.c.b16 %v2411, %v2403
    %v2692 = vpack.c.b16 %v2412, %v2404
    %v2693 = vpack.c.b16 %v2413, %v2405
    %v2694 = vpack.c.b16 %v2414, %v2406
    %v2695 = vpack.c.b16 %v2415, %v2407
    %v2696 = vpack.c.b16 %v2416, %v2408
    %v2697 = vpack.c.b16 %v2425, %v2417
    %v2698 = vpack.c.b16 %v2426, %v2418
    %v2699 = vpack.c.b16 %v2427, %v2419
    %v2700 = vpack.c.b16 %v2428, %v2420
    %v2701 = vpack.c.b16 %v2429, %v2421
    %v2702 = vpack.c.b16 %v2430, %v2422
    %v2703 = vpack.c.b16 %v2431, %v2423
    %v2704 = vpack.c.b16 %v2432, %v2424
    %v2705 = vpack.c.b16 %v2441, %v2433
    %v2706 = vpack.c.b16 %v2442, %v2434
    %v2707 = vpack.c.b16 %v2443, %v2435
    %v2708 = vpack.c.b16 %v2444, %v2436
    %v2709 = vpack.c.b16 %v2445, %v2437
    %v2710 = vpack.c.b16 %v2446, %v2438
    %v2711 = vpack.c.b16 %v2447, %v2439
    %v2712 = vpack.c.b16 %v2448, %v2440
    %v2713 = vpack.c.b16 %v2457, %v2449
    %v2714 = vpack.c.b16 %v2458, %v2450
    %v2715 = vpack.c.b16 %v2459, %v2451
    %v2716 = vpack.c.b16 %v2460, %v2452
    %v2717 = vpack.c.b16 %v2461, %v2453
    %v2718 = vpack.c.b16 %v2462, %v2454
    %v2719 = vpack.c.b16 %v2463, %v2455
    %v2720 = vpack.c.b16 %v2464, %v2456
    %2977 = vmatprep.subr.bf16.mxu0 %v2522
    %2978 = vmatpush1.bf16.msra.mxu0 %v2521
    %2979 = vmatprep.subr.bf16.mxu0 %v2514
    %2980 = vmatpush1.bf16.msra.mxu0 %v2513
    %2981 = vmatprep.subr.bf16.mxu0 %v2506
    %2982 = vmatpush1.bf16.msra.mxu0 %v2505
    %2983 = vmatprep.subr.bf16.mxu0 %v2498
    %2984 = vmatpush1.bf16.msra.mxu0 %v2497
    %2985 = vmatprep.subr.bf16.mxu0 %v2490
    %2986 = vmatpush1.bf16.msra.mxu0 %v2489
    %2987 = vmatprep.subr.bf16.mxu0 %v2482
    %2988 = vmatpush1.bf16.msra.mxu0 %v2481
    %2989 = vmatprep.subr.bf16.mxu0 %v2474
    %2990 = vmatpush1.bf16.msra.mxu0 %v2473
    %2991 = vmatprep.subr.bf16.mxu0 %v2466
    %2992 = vmatpush1.bf16.msra.mxu0 %v2465
    %2993 = vmatprep.subr.bf16.mxu0 %v2586
    %2994 = vmatpush2.bf16.msra.mxu0 %v2585
    %2995 = vmatprep.subr.bf16.mxu0 %v2578
    %2996 = vmatpush2.bf16.msra.mxu0 %v2577
    %2997 = vmatprep.subr.bf16.mxu0 %v2570
    %2998 = vmatpush2.bf16.msra.mxu0 %v2569
    %2999 = vmatprep.subr.bf16.mxu0 %v2562
    %3000 = vmatpush2.bf16.msra.mxu0 %v2561
    %3001 = vmatprep.subr.bf16.mxu0 %v2554
    %3002 = vmatpush2.bf16.msra.mxu0 %v2553
    %3003 = vmatprep.subr.bf16.mxu0 %v2546
    %3004 = vmatpush2.bf16.msra.mxu0 %v2545
    %3005 = vmatprep.subr.bf16.mxu0 %v2538
    %3006 = vmatpush2.bf16.msra.mxu0 %v2537
    %3007 = vmatprep.subr.bf16.mxu0 %v2530
    %3008 = vmatpush2.bf16.msra.mxu0 %v2529
    %3009 = vmatprep.mubr.bf16.mxu0 %v1652
    %3010 = vmatmul.mubr.bf16.gmra.mxu0 %v1651
    %v3011 = vpop.f32.mrf.mxu0
    %v3012 = vadd.f32 %v1660, %v3011
    %v3013 = vpop.f32.mrf.mxu0
    %v3014 = vadd.f32 %v1664, %v3013
    %v3015 = vpop.f32.mrf.mxu0
    %v3016 = vpop.f32.mrf.mxu0
    %3017 = vdwg.mxu0
    %3018 = vmatprep.subr.bf16.mxu0 %v2650
    %3019 = vmatpush1.bf16.msra.mxu0 %v2649
    %3020 = vmatprep.subr.bf16.mxu0 %v2642
    %3021 = vmatpush1.bf16.msra.mxu0 %v2641
    %3022 = vmatprep.subr.bf16.mxu0 %v2634
    %3023 = vmatpush1.bf16.msra.mxu0 %v2633
    %3024 = vmatprep.subr.bf16.mxu0 %v2626
    %3025 = vmatpush1.bf16.msra.mxu0 %v2625
    %3026 = vmatprep.subr.bf16.mxu0 %v2618
    %3027 = vmatpush1.bf16.msra.mxu0 %v2617
    %3028 = vmatprep.subr.bf16.mxu0 %v2610
    %3029 = vmatpush1.bf16.msra.mxu0 %v2609
    %3030 = vmatprep.subr.bf16.mxu0 %v2602
    %3031 = vmatpush1.bf16.msra.mxu0 %v2601
    %3032 = vmatprep.subr.bf16.mxu0 %v2594
    %3033 = vmatpush1.bf16.msra.mxu0 %v2593
    %3034 = vmatprep.subr.bf16.mxu0 %v2714
    %3035 = vmatpush2.bf16.msra.mxu0 %v2713
    %3036 = vmatprep.subr.bf16.mxu0 %v2706
    %3037 = vmatpush2.bf16.msra.mxu0 %v2705
    %3038 = vmatprep.subr.bf16.mxu0 %v2698
    %3039 = vmatpush2.bf16.msra.mxu0 %v2697
    %3040 = vmatprep.subr.bf16.mxu0 %v2690
    %3041 = vmatpush2.bf16.msra.mxu0 %v2689
    %3042 = vmatprep.subr.bf16.mxu0 %v2682
    %3043 = vmatpush2.bf16.msra.mxu0 %v2681
    %3044 = vmatprep.subr.bf16.mxu0 %v2674
    %3045 = vmatpush2.bf16.msra.mxu0 %v2673
    %3046 = vmatprep.subr.bf16.mxu0 %v2666
    %3047 = vmatpush2.bf16.msra.mxu0 %v2665
    %3048 = vmatprep.subr.bf16.mxu0 %v2658
    %3049 = vmatpush2.bf16.msra.mxu0 %v2657
    %3050 = vmatprep.mubr.bf16.mxu0 %v1654
    %3051 = vmatmul.mubr.bf16.gmra.mxu0 %v1653
    %v3052 = vpop.f32.mrf.mxu0
    %v3053 = vadd.f32 %v3012, %v3052
    %v3054 = vpop.f32.mrf.mxu0
    %v3055 = vadd.f32 %v3014, %v3054
    %v3056 = vpop.f32.mrf.mxu0
    %v3057 = vpop.f32.mrf.mxu0
    %3058 = vdwg.mxu0
    %3059 = vmatprep.subr.bf16.mxu0 %v2524
    %3060 = vmatpush1.bf16.msra.mxu0 %v2523
    %3061 = vmatprep.subr.bf16.mxu0 %v2516
    %3062 = vmatpush1.bf16.msra.mxu0 %v2515
    %3063 = vmatprep.subr.bf16.mxu0 %v2508
    %3064 = vmatpush1.bf16.msra.mxu0 %v2507
    %3065 = vmatprep.subr.bf16.mxu0 %v2500
    %3066 = vmatpush1.bf16.msra.mxu0 %v2499
    %3067 = vmatprep.subr.bf16.mxu0 %v2492
    %3068 = vmatpush1.bf16.msra.mxu0 %v2491
    %3069 = vmatprep.subr.bf16.mxu0 %v2484
    %3070 = vmatpush1.bf16.msra.mxu0 %v2483
    %3071 = vmatprep.subr.bf16.mxu0 %v2476
    %3072 = vmatpush1.bf16.msra.mxu0 %v2475
    %3073 = vmatprep.subr.bf16.mxu0 %v2468
    %3074 = vmatpush1.bf16.msra.mxu0 %v2467
    %3075 = vmatprep.subr.bf16.mxu0 %v2588
    %3076 = vmatpush2.bf16.msra.mxu0 %v2587
    %3077 = vmatprep.subr.bf16.mxu0 %v2580
    %3078 = vmatpush2.bf16.msra.mxu0 %v2579
    %3079 = vmatprep.subr.bf16.mxu0 %v2572
    %3080 = vmatpush2.bf16.msra.mxu0 %v2571
    %3081 = vmatprep.subr.bf16.mxu0 %v2564
    %3082 = vmatpush2.bf16.msra.mxu0 %v2563
    %3083 = vmatprep.subr.bf16.mxu0 %v2556
    %3084 = vmatpush2.bf16.msra.mxu0 %v2555
    %3085 = vmatprep.subr.bf16.mxu0 %v2548
    %3086 = vmatpush2.bf16.msra.mxu0 %v2547
    %3087 = vmatprep.subr.bf16.mxu0 %v2540
    %3088 = vmatpush2.bf16.msra.mxu0 %v2539
    %3089 = vmatprep.subr.bf16.mxu0 %v2532
    %3090 = vmatpush2.bf16.msra.mxu0 %v2531
    %3091 = vmatprep.mubr.bf16.mxu0 %v1652
    %3092 = vmatmul.mubr.bf16.gmra.mxu0 %v1651
    %v3093 = vpop.f32.mrf.mxu0
    %v3094 = vadd.f32 %v1668, %v3093
    %v3095 = vpop.f32.mrf.mxu0
    %v3096 = vadd.f32 %v1672, %v3095
    %v3097 = vpop.f32.mrf.mxu0
    %v3098 = vpop.f32.mrf.mxu0
    %3099 = vdwg.mxu0
    %3100 = vmatprep.subr.bf16.mxu0 %v2652
    %3101 = vmatpush1.bf16.msra.mxu0 %v2651
    %3102 = vmatprep.subr.bf16.mxu0 %v2644
    %3103 = vmatpush1.bf16.msra.mxu0 %v2643
    %3104 = vmatprep.subr.bf16.mxu0 %v2636
    %3105 = vmatpush1.bf16.msra.mxu0 %v2635
    %3106 = vmatprep.subr.bf16.mxu0 %v2628
    %3107 = vmatpush1.bf16.msra.mxu0 %v2627
    %3108 = vmatprep.subr.bf16.mxu0 %v2620
    %3109 = vmatpush1.bf16.msra.mxu0 %v2619
    %3110 = vmatprep.subr.bf16.mxu0 %v2612
    %3111 = vmatpush1.bf16.msra.mxu0 %v2611
    %3112 = vmatprep.subr.bf16.mxu0 %v2604
    %3113 = vmatpush1.bf16.msra.mxu0 %v2603
    %3114 = vmatprep.subr.bf16.mxu0 %v2596
    %3115 = vmatpush1.bf16.msra.mxu0 %v2595
    %3116 = vmatprep.subr.bf16.mxu0 %v2716
    %3117 = vmatpush2.bf16.msra.mxu0 %v2715
    %3118 = vmatprep.subr.bf16.mxu0 %v2708
    %3119 = vmatpush2.bf16.msra.mxu0 %v2707
    %3120 = vmatprep.subr.bf16.mxu0 %v2700
    %3121 = vmatpush2.bf16.msra.mxu0 %v2699
    %3122 = vmatprep.subr.bf16.mxu0 %v2692
    %3123 = vmatpush2.bf16.msra.mxu0 %v2691
    %3124 = vmatprep.subr.bf16.mxu0 %v2684
    %3125 = vmatpush2.bf16.msra.mxu0 %v2683
    %3126 = vmatprep.subr.bf16.mxu0 %v2676
    %3127 = vmatpush2.bf16.msra.mxu0 %v2675
    %3128 = vmatprep.subr.bf16.mxu0 %v2668
    %3129 = vmatpush2.bf16.msra.mxu0 %v2667
    %3130 = vmatprep.subr.bf16.mxu0 %v2660
    %3131 = vmatpush2.bf16.msra.mxu0 %v2659
    %3132 = vmatprep.mubr.bf16.mxu0 %v1654
    %3133 = vmatmul.mubr.bf16.gmra.mxu0 %v1653
    %v3134 = vpop.f32.mrf.mxu0
    %v3135 = vadd.f32 %v3094, %v3134
    %v3136 = vpop.f32.mrf.mxu0
    %v3137 = vadd.f32 %v3096, %v3136
    %v3138 = vpop.f32.mrf.mxu0
    %v3139 = vpop.f32.mrf.mxu0
    %3140 = vdwg.mxu0
    %3141 = vmatprep.subr.bf16.mxu0 %v2526
    %3142 = vmatpush1.bf16.msra.mxu0 %v2525
    %3143 = vmatprep.subr.bf16.mxu0 %v2518
    %3144 = vmatpush1.bf16.msra.mxu0 %v2517
    %3145 = vmatprep.subr.bf16.mxu0 %v2510
    %3146 = vmatpush1.bf16.msra.mxu0 %v2509
    %3147 = vmatprep.subr.bf16.mxu0 %v2502
    %3148 = vmatpush1.bf16.msra.mxu0 %v2501
    %3149 = vmatprep.subr.bf16.mxu0 %v2494
    %3150 = vmatpush1.bf16.msra.mxu0 %v2493
    %3151 = vmatprep.subr.bf16.mxu0 %v2486
    %3152 = vmatpush1.bf16.msra.mxu0 %v2485
    %3153 = vmatprep.subr.bf16.mxu0 %v2478
    %3154 = vmatpush1.bf16.msra.mxu0 %v2477
    %3155 = vmatprep.subr.bf16.mxu0 %v2470
    %3156 = vmatpush1.bf16.msra.mxu0 %v2469
    %3157 = vmatprep.subr.bf16.mxu0 %v2590
    %3158 = vmatpush2.bf16.msra.mxu0 %v2589
    %3159 = vmatprep.subr.bf16.mxu0 %v2582
    %3160 = vmatpush2.bf16.msra.mxu0 %v2581
    %3161 = vmatprep.subr.bf16.mxu0 %v2574
    %3162 = vmatpush2.bf16.msra.mxu0 %v2573
    %3163 = vmatprep.subr.bf16.mxu0 %v2566
    %3164 = vmatpush2.bf16.msra.mxu0 %v2565
    %3165 = vmatprep.subr.bf16.mxu0 %v2558
    %3166 = vmatpush2.bf16.msra.mxu0 %v2557
    %3167 = vmatprep.subr.bf16.mxu0 %v2550
    %3168 = vmatpush2.bf16.msra.mxu0 %v2549
    %3169 = vmatprep.subr.bf16.mxu0 %v2542
    %3170 = vmatpush2.bf16.msra.mxu0 %v2541
    %3171 = vmatprep.subr.bf16.mxu0 %v2534
    %3172 = vmatpush2.bf16.msra.mxu0 %v2533
    %3173 = vmatprep.mubr.bf16.mxu0 %v1652
    %3174 = vmatmul.mubr.bf16.gmra.mxu0 %v1651
    %v3175 = vpop.f32.mrf.mxu0
    %v3176 = vadd.f32 %v1676, %v3175
    %v3177 = vpop.f32.mrf.mxu0
    %v3178 = vadd.f32 %v1680, %v3177
    %v3179 = vpop.f32.mrf.mxu0
    %v3180 = vpop.f32.mrf.mxu0
    %3181 = vdwg.mxu0
    %3182 = vmatprep.subr.bf16.mxu0 %v2654
    %3183 = vmatpush1.bf16.msra.mxu0 %v2653
    %3184 = vmatprep.subr.bf16.mxu0 %v2646
    %3185 = vmatpush1.bf16.msra.mxu0 %v2645
    %3186 = vmatprep.subr.bf16.mxu0 %v2638
    %3187 = vmatpush1.bf16.msra.mxu0 %v2637
    %3188 = vmatprep.subr.bf16.mxu0 %v2630
    %3189 = vmatpush1.bf16.msra.mxu0 %v2629
    %3190 = vmatprep.subr.bf16.mxu0 %v2622
    %3191 = vmatpush1.bf16.msra.mxu0 %v2621
    %3192 = vmatprep.subr.bf16.mxu0 %v2614
    %3193 = vmatpush1.bf16.msra.mxu0 %v2613
    %3194 = vmatprep.subr.bf16.mxu0 %v2606
    %3195 = vmatpush1.bf16.msra.mxu0 %v2605
    %3196 = vmatprep.subr.bf16.mxu0 %v2598
    %3197 = vmatpush1.bf16.msra.mxu0 %v2597
    %3198 = vmatprep.subr.bf16.mxu0 %v2718
    %3199 = vmatpush2.bf16.msra.mxu0 %v2717
    %3200 = vmatprep.subr.bf16.mxu0 %v2710
    %3201 = vmatpush2.bf16.msra.mxu0 %v2709
    %3202 = vmatprep.subr.bf16.mxu0 %v2702
    %3203 = vmatpush2.bf16.msra.mxu0 %v2701
    %3204 = vmatprep.subr.bf16.mxu0 %v2694
    %3205 = vmatpush2.bf16.msra.mxu0 %v2693
    %3206 = vmatprep.subr.bf16.mxu0 %v2686
    %3207 = vmatpush2.bf16.msra.mxu0 %v2685
    %3208 = vmatprep.subr.bf16.mxu0 %v2678
    %3209 = vmatpush2.bf16.msra.mxu0 %v2677
    %3210 = vmatprep.subr.bf16.mxu0 %v2670
    %3211 = vmatpush2.bf16.msra.mxu0 %v2669
    %3212 = vmatprep.subr.bf16.mxu0 %v2662
    %3213 = vmatpush2.bf16.msra.mxu0 %v2661
    %3214 = vmatprep.mubr.bf16.mxu0 %v1654
    %3215 = vmatmul.mubr.bf16.gmra.mxu0 %v1653
    %v3216 = vpop.f32.mrf.mxu0
    %v3217 = vadd.f32 %v3176, %v3216
    %v3218 = vpop.f32.mrf.mxu0
    %v3219 = vadd.f32 %v3178, %v3218
    %v3220 = vpop.f32.mrf.mxu0
    %v3221 = vpop.f32.mrf.mxu0
    %3222 = vdwg.mxu0
    %3223 = vmatprep.subr.bf16.mxu0 %v2528
    %3224 = vmatpush1.bf16.msra.mxu0 %v2527
    %3225 = vmatprep.subr.bf16.mxu0 %v2520
    %3226 = vmatpush1.bf16.msra.mxu0 %v2519
    %3227 = vmatprep.subr.bf16.mxu0 %v2512
    %3228 = vmatpush1.bf16.msra.mxu0 %v2511
    %3229 = vmatprep.subr.bf16.mxu0 %v2504
    %3230 = vmatpush1.bf16.msra.mxu0 %v2503
    %3231 = vmatprep.subr.bf16.mxu0 %v2496
    %3232 = vmatpush1.bf16.msra.mxu0 %v2495
    %3233 = vmatprep.subr.bf16.mxu0 %v2488
    %3234 = vmatpush1.bf16.msra.mxu0 %v2487
    %3235 = vmatprep.subr.bf16.mxu0 %v2480
    %3236 = vmatpush1.bf16.msra.mxu0 %v2479
    %3237 = vmatprep.subr.bf16.mxu0 %v2472
    %3238 = vmatpush1.bf16.msra.mxu0 %v2471
    %3239 = vmatprep.subr.bf16.mxu0 %v2592
    %3240 = vmatpush2.bf16.msra.mxu0 %v2591
    %3241 = vmatprep.subr.bf16.mxu0 %v2584
    %3242 = vmatpush2.bf16.msra.mxu0 %v2583
    %3243 = vmatprep.subr.bf16.mxu0 %v2576
    %3244 = vmatpush2.bf16.msra.mxu0 %v2575
    %3245 = vmatprep.subr.bf16.mxu0 %v2568
    %3246 = vmatpush2.bf16.msra.mxu0 %v2567
    %3247 = vmatprep.subr.bf16.mxu0 %v2560
    %3248 = vmatpush2.bf16.msra.mxu0 %v2559
    %3249 = vmatprep.subr.bf16.mxu0 %v2552
    %3250 = vmatpush2.bf16.msra.mxu0 %v2551
    %3251 = vmatprep.subr.bf16.mxu0 %v2544
    %3252 = vmatpush2.bf16.msra.mxu0 %v2543
    %3253 = vmatprep.subr.bf16.mxu0 %v2536
    %3254 = vmatpush2.bf16.msra.mxu0 %v2535
    %3255 = vmatprep.mubr.bf16.mxu0 %v1652
    %3256 = vmatmul.mubr.bf16.gmra.mxu0 %v1651
    %v3257 = vpop.f32.mrf.mxu0
    %v3258 = vadd.f32 %v1684, %v3257
    %v3259 = vpop.f32.mrf.mxu0
    %v3260 = vadd.f32 %v1688, %v3259
    %v3261 = vpop.f32.mrf.mxu0
    %v3262 = vpop.f32.mrf.mxu0
    %3263 = vdwg.mxu0
    %3264 = vmatprep.subr.bf16.mxu0 %v2656
    %3265 = vmatpush1.bf16.msra.mxu0 %v2655
    %3266 = vmatprep.subr.bf16.mxu0 %v2648
    %3267 = vmatpush1.bf16.msra.mxu0 %v2647
    %3268 = vmatprep.subr.bf16.mxu0 %v2640
    %3269 = vmatpush1.bf16.msra.mxu0 %v2639
    %3270 = vmatprep.subr.bf16.mxu0 %v2632
    %3271 = vmatpush1.bf16.msra.mxu0 %v2631
    %3272 = vmatprep.subr.bf16.mxu0 %v2624
    %3273 = vmatpush1.bf16.msra.mxu0 %v2623
    %3274 = vmatprep.subr.bf16.mxu0 %v2616
    %3275 = vmatpush1.bf16.msra.mxu0 %v2615
    %3276 = vmatprep.subr.bf16.mxu0 %v2608
    %3277 = vmatpush1.bf16.msra.mxu0 %v2607
    %3278 = vmatprep.subr.bf16.mxu0 %v2600
    %3279 = vmatpush1.bf16.msra.mxu0 %v2599
    %3280 = vmatprep.subr.bf16.mxu0 %v2720
    %3281 = vmatpush2.bf16.msra.mxu0 %v2719
    %3282 = vmatprep.subr.bf16.mxu0 %v2712
    %3283 = vmatpush2.bf16.msra.mxu0 %v2711
    %3284 = vmatprep.subr.bf16.mxu0 %v2704
    %3285 = vmatpush2.bf16.msra.mxu0 %v2703
    %3286 = vmatprep.subr.bf16.mxu0 %v2696
    %3287 = vmatpush2.bf16.msra.mxu0 %v2695
    %3288 = vmatprep.subr.bf16.mxu0 %v2688
    %3289 = vmatpush2.bf16.msra.mxu0 %v2687
    %3290 = vmatprep.subr.bf16.mxu0 %v2680
    %3291 = vmatpush2.bf16.msra.mxu0 %v2679
    %3292 = vmatprep.subr.bf16.mxu0 %v2672
    %3293 = vmatpush2.bf16.msra.mxu0 %v2671
    %3294 = vmatprep.subr.bf16.mxu0 %v2664
    %3295 = vmatpush2.bf16.msra.mxu0 %v2663
    %3296 = vmatprep.mubr.bf16.mxu0 %v1654
    %3297 = vmatmul.mubr.bf16.gmra.mxu0 %v1653
    %v3298 = vpop.f32.mrf.mxu0
    %v3299 = vadd.f32 %v3258, %v3298
    %v3300 = vpop.f32.mrf.mxu0
    %v3301 = vadd.f32 %v3260, %v3300
    %v3302 = vpop.f32.mrf.mxu0
    %v3303 = vpop.f32.mrf.mxu0
    %3304 = vdwg.mxu0
    %v3305 = vrot.slane %v3053, 4
    %v3306 = vadd.f32 %v3053, %v3305
    %v3307 = vrot.slane %v3306, 2
    %v3308 = vadd.f32 %v3306, %v3307
    %v3309 = vrot.slane %v3308, 1
    %v3310 = vadd.f32 %v3308, %v3309
    %v3311 = vrot.slane %v3055, 4
    %v3312 = vadd.f32 %v3055, %v3311
    %v3313 = vrot.slane %v3312, 2
    %v3314 = vadd.f32 %v3312, %v3313
    %v3315 = vrot.slane %v3314, 1
    %v3316 = vadd.f32 %v3314, %v3315
    %v3317 = vrot.slane %v3135, 4
    %v3318 = vadd.f32 %v3135, %v3317
    %v3319 = vrot.slane %v3318, 2
    %v3320 = vadd.f32 %v3318, %v3319
    %v3321 = vrot.slane %v3320, 1
    %v3322 = vadd.f32 %v3320, %v3321
    %v3323 = vrot.slane %v3137, 4
    %v3324 = vadd.f32 %v3137, %v3323
    %v3325 = vrot.slane %v3324, 2
    %v3326 = vadd.f32 %v3324, %v3325
    %v3327 = vrot.slane %v3326, 1
    %v3328 = vadd.f32 %v3326, %v3327
    %v3329 = vrot.slane %v3217, 4
    %v3330 = vadd.f32 %v3217, %v3329
    %v3331 = vrot.slane %v3330, 2
    %v3332 = vadd.f32 %v3330, %v3331
    %v3333 = vrot.slane %v3332, 1
    %v3334 = vadd.f32 %v3332, %v3333
    %v3335 = vrot.slane %v3219, 4
    %v3336 = vadd.f32 %v3219, %v3335
    %v3337 = vrot.slane %v3336, 2
    %v3338 = vadd.f32 %v3336, %v3337
    %v3339 = vrot.slane %v3338, 1
    %v3340 = vadd.f32 %v3338, %v3339
    %v3341 = vrot.slane %v3299, 4
    %v3342 = vadd.f32 %v3299, %v3341
    %v3343 = vrot.slane %v3342, 2
    %v3344 = vadd.f32 %v3342, %v3343
    %v3345 = vrot.slane %v3344, 1
    %v3346 = vadd.f32 %v3344, %v3345
    %v3347 = vrot.slane %v3301, 4
    %v3348 = vadd.f32 %v3301, %v3347
    %v3349 = vrot.slane %v3348, 2
    %v3350 = vadd.f32 %v3348, %v3349
    %v3351 = vrot.slane %v3350, 1
    %v3352 = vadd.f32 %v3350, %v3351
    %v3353 = vmul.f32 %v3310, %v388
    %v3354 = vmul.f32 %v3316, %v388
    %v3355 = vmul.f32 %v3322, %v388
    %v3356 = vmul.f32 %v3328, %v388
    %v3357 = vmul.f32 %v3334, %v388
    %v3358 = vmul.f32 %v3340, %v388
    %v3359 = vmul.f32 %v3346, %v388
    %v3360 = vmul.f32 %v3352, %v388
    %v3361 = vsub.f32 %v3053, %v3353
    %v3362 = vsub.f32 %v3055, %v3354
    %v3363 = vsub.f32 %v3135, %v3355
    %v3364 = vsub.f32 %v3137, %v3356
    %v3365 = vsub.f32 %v3217, %v3357
    %v3366 = vsub.f32 %v3219, %v3358
    %v3367 = vsub.f32 %v3299, %v3359
    %v3368 = vsub.f32 %v3301, %v3360
    %v3369 = vmul.f32 %v3361, %v3361
    %v3370 = vmul.f32 %v3362, %v3362
    %v3371 = vmul.f32 %v3363, %v3363
    %v3372 = vmul.f32 %v3364, %v3364
    %v3373 = vmul.f32 %v3365, %v3365
    %v3374 = vmul.f32 %v3366, %v3366
    %v3375 = vmul.f32 %v3367, %v3367
    %v3376 = vmul.f32 %v3368, %v3368
    %v3377 = vrot.slane %v3369, 4
    %v3378 = vadd.f32 %v3369, %v3377
    %v3379 = vrot.slane %v3378, 2
    %v3380 = vadd.f32 %v3378, %v3379
    %v3381 = vrot.slane %v3380, 1
    %v3382 = vadd.f32 %v3380, %v3381
    %v3383 = vrot.slane %v3370, 4
    %v3384 = vadd.f32 %v3370, %v3383
    %v3385 = vrot.slane %v3384, 2
    %v3386 = vadd.f32 %v3384, %v3385
    %v3387 = vrot.slane %v3386, 1
    %v3388 = vadd.f32 %v3386, %v3387
    %v3389 = vrot.slane %v3371, 4
    %v3390 = vadd.f32 %v3371, %v3389
    %v3391 = vrot.slane %v3390, 2
    %v3392 = vadd.f32 %v3390, %v3391
    %v3393 = vrot.slane %v3392, 1
    %v3394 = vadd.f32 %v3392, %v3393
    %v3395 = vrot.slane %v3372, 4
    %v3396 = vadd.f32 %v3372, %v3395
    %v3397 = vrot.slane %v3396, 2
    %v3398 = vadd.f32 %v3396, %v3397
    %v3399 = vrot.slane %v3398, 1
    %v3400 = vadd.f32 %v3398, %v3399
    %v3401 = vrot.slane %v3373, 4
    %v3402 = vadd.f32 %v3373, %v3401
    %v3403 = vrot.slane %v3402, 2
    %v3404 = vadd.f32 %v3402, %v3403
    %v3405 = vrot.slane %v3404, 1
    %v3406 = vadd.f32 %v3404, %v3405
    %v3407 = vrot.slane %v3374, 4
    %v3408 = vadd.f32 %v3374, %v3407
    %v3409 = vrot.slane %v3408, 2
    %v3410 = vadd.f32 %v3408, %v3409
    %v3411 = vrot.slane %v3410, 1
    %v3412 = vadd.f32 %v3410, %v3411
    %v3413 = vrot.slane %v3375, 4
    %v3414 = vadd.f32 %v3375, %v3413
    %v3415 = vrot.slane %v3414, 2
    %v3416 = vadd.f32 %v3414, %v3415
    %v3417 = vrot.slane %v3416, 1
    %v3418 = vadd.f32 %v3416, %v3417
    %v3419 = vrot.slane %v3376, 4
    %v3420 = vadd.f32 %v3376, %v3419
    %v3421 = vrot.slane %v3420, 2
    %v3422 = vadd.f32 %v3420, %v3421
    %v3423 = vrot.slane %v3422, 1
    %v3424 = vadd.f32 %v3422, %v3423
    %v3425 = vmul.f32 %v3382, %v388
    %v3426 = vmul.f32 %v3388, %v388
    %v3427 = vmul.f32 %v3394, %v388
    %v3428 = vmul.f32 %v3400, %v388
    %v3429 = vmul.f32 %v3406, %v388
    %v3430 = vmul.f32 %v3412, %v388
    %v3431 = vmul.f32 %v3418, %v388
    %v3432 = vmul.f32 %v3424, %v388
    %v3433 = vld [vmem:[#allocation26] sm:$0xff]
    %v3434 = vadd.f32 %v3425, 1e-05
    %v3435 = vadd.f32 %v3426, 1e-05
    %v3436 = vadd.f32 %v3427, 1e-05
    %v3437 = vadd.f32 %v3428, 1e-05
    %v3438 = vadd.f32 %v3429, 1e-05
    %v3439 = vadd.f32 %v3430, 1e-05
    %v3440 = vadd.f32 %v3431, 1e-05
    %v3441 = vadd.f32 %v3432, 1e-05
    %v3442 = vrsqrt.pop %v3434
    %v3443 = vrsqrt.pop %v3435
    %v3444 = vrsqrt.pop %v3436
    %v3445 = vrsqrt.pop %v3437
    %v3446 = vrsqrt.pop %v3438
    %v3447 = vrsqrt.pop %v3439
    %v3448 = vrsqrt.pop %v3440
    %v3449 = vrsqrt.pop %v3441
    %v3458 = vcombine.low %v3442, %v3443
    %v3459 = vcombine.low %v3444, %v3445
    %v3460 = vcombine.low %v3446, %v3447
    %v3461 = vcombine.low %v3448, %v3449
    %v3463 = vunpack.c.l.s4 1966171168
    %v3464 = vunpack.c.0.s8 %v3463
    %v3465 = vlaneseq
    %v3466 = vshrl.u32 %v3465, 7
    %v3467 = vsub.s32 %v3464, %v3466
    %v3468 = vrot.slane %v3458, %v3467
    %v3470 = vunpack.c.l.s4 1966171168
    %v3471 = vunpack.c.0.s8 %v3470
    %v3472 = vlaneseq
    %v3473 = vshrl.u32 %v3472, 7
    %v3474 = vsub.s32 %v3471, %v3473
    %v3475 = vrot.slane %v3459, %v3474
    %v3477 = vunpack.c.l.s4 1966171168
    %v3478 = vunpack.c.0.s8 %v3477
    %v3479 = vlaneseq
    %v3480 = vshrl.u32 %v3479, 7
    %v3481 = vsub.s32 %v3478, %v3480
    %v3482 = vrot.slane %v3460, %v3481
    %v3484 = vunpack.c.l.s4 1966171168
    %v3485 = vunpack.c.0.s8 %v3484
    %v3486 = vlaneseq
    %v3487 = vshrl.u32 %v3486, 7
    %v3488 = vsub.s32 %v3485, %v3487
    %v3489 = vrot.slane %v3461, %v3488
    %v3490 = vcombine.low %v3468, %v3475
    %v3491 = vcombine.low %v3482, %v3489
    %v3493 = vunpack.c.l.s4 1966171168
    %v3494 = vunpack.c.0.s8 %v3493
    %v3495 = vlaneseq
    %v3496 = vshrl.u32 %v3495, 7
    %v3497 = vsub.s32 %v3494, %v3496
    %v3498 = vrot.slane %v3490, %v3497
    %v3500 = vunpack.c.l.s4 1966171168
    %v3501 = vunpack.c.0.s8 %v3500
    %v3502 = vlaneseq
    %v3503 = vshrl.u32 %v3502, 7
    %v3504 = vsub.s32 %v3501, %v3503
    %v3505 = vrot.slane %v3491, %v3504
    %v3506 = vcombine.low %v3498, %v3505
    %v3508 = vmul.f32 %v3433, %v3506
    %v3509 = vld [vmem:[#allocation28] sm:$0xff]
    %v3511 = vlaneseq
    %v3512 = vshrl.u32 %v3511, 7
    %v3513 = vsub.s32 0, %v3512
    %v3514 = vrot.slane %v3508, %v3513
    %v3515 = vlaneseq
    %v3516 = vshrl.u32 %v3515, 7
    %v3517 = vsub.s32 1, %v3516
    %v3518 = vrot.slane %v3508, %v3517
    %v3519 = vlaneseq
    %v3520 = vshrl.u32 %v3519, 7
    %v3521 = vsub.s32 2, %v3520
    %v3522 = vrot.slane %v3508, %v3521
    %v3523 = vlaneseq
    %v3524 = vshrl.u32 %v3523, 7
    %v3525 = vsub.s32 3, %v3524
    %v3526 = vrot.slane %v3508, %v3525
    %v3527 = vlaneseq
    %v3528 = vshrl.u32 %v3527, 7
    %v3529 = vsub.s32 4, %v3528
    %v3530 = vrot.slane %v3508, %v3529
    %v3531 = vlaneseq
    %v3532 = vshrl.u32 %v3531, 7
    %v3533 = vsub.s32 5, %v3532
    %v3534 = vrot.slane %v3508, %v3533
    %v3535 = vlaneseq
    %v3536 = vshrl.u32 %v3535, 7
    %v3537 = vsub.s32 6, %v3536
    %v3538 = vrot.slane %v3508, %v3537
    %v3539 = vlaneseq
    %v3540 = vshrl.u32 %v3539, 7
    %v3541 = vsub.s32 7, %v3540
    %v3542 = vrot.slane %v3508, %v3541
    %v3551 = vmul.f32 %v3353, %v3514
    %v3552 = vmul.f32 %v3354, %v3518
    %v3553 = vmul.f32 %v3355, %v3522
    %v3554 = vmul.f32 %v3356, %v3526
    %v3555 = vmul.f32 %v3357, %v3530
    %v3556 = vmul.f32 %v3358, %v3534
    %v3557 = vmul.f32 %v3359, %v3538
    %v3558 = vmul.f32 %v3360, %v3542
    %v3567 = vcombine.low %v3551, %v3552
    %v3568 = vcombine.low %v3553, %v3554
    %v3569 = vcombine.low %v3555, %v3556
    %v3570 = vcombine.low %v3557, %v3558
    %v3572 = vunpack.c.l.s4 1966171168
    %v3573 = vunpack.c.0.s8 %v3572
    %v3574 = vlaneseq
    %v3575 = vshrl.u32 %v3574, 7
    %v3576 = vsub.s32 %v3573, %v3575
    %v3577 = vrot.slane %v3567, %v3576
    %v3579 = vunpack.c.l.s4 1966171168
    %v3580 = vunpack.c.0.s8 %v3579
    %v3581 = vlaneseq
    %v3582 = vshrl.u32 %v3581, 7
    %v3583 = vsub.s32 %v3580, %v3582
    %v3584 = vrot.slane %v3568, %v3583
    %v3586 = vunpack.c.l.s4 1966171168
    %v3587 = vunpack.c.0.s8 %v3586
    %v3588 = vlaneseq
    %v3589 = vshrl.u32 %v3588, 7
    %v3590 = vsub.s32 %v3587, %v3589
    %v3591 = vrot.slane %v3569, %v3590
    %v3593 = vunpack.c.l.s4 1966171168
    %v3594 = vunpack.c.0.s8 %v3593
    %v3595 = vlaneseq
    %v3596 = vshrl.u32 %v3595, 7
    %v3597 = vsub.s32 %v3594, %v3596
    %v3598 = vrot.slane %v3570, %v3597
    %v3599 = vcombine.low %v3577, %v3584
    %v3600 = vcombine.low %v3591, %v3598
    %v3602 = vunpack.c.l.s4 1966171168
    %v3603 = vunpack.c.0.s8 %v3602
    %v3604 = vlaneseq
    %v3605 = vshrl.u32 %v3604, 7
    %v3606 = vsub.s32 %v3603, %v3605
    %v3607 = vrot.slane %v3599, %v3606
    %v3609 = vunpack.c.l.s4 1966171168
    %v3610 = vunpack.c.0.s8 %v3609
    %v3611 = vlaneseq
    %v3612 = vshrl.u32 %v3611, 7
    %v3613 = vsub.s32 %v3610, %v3612
    %v3614 = vrot.slane %v3600, %v3613
    %v3615 = vcombine.low %v3607, %v3614
    %v3617 = vsub.f32 %v3509, %v3615
    %v3618 = vmul.f32 %v3053, %v3514
    %v3619 = vmul.f32 %v3055, %v3518
    %v3620 = vmul.f32 %v3135, %v3522
    %v3621 = vmul.f32 %v3137, %v3526
    %v3622 = vmul.f32 %v3217, %v3530
    %v3623 = vmul.f32 %v3219, %v3534
    %v3624 = vmul.f32 %v3299, %v3538
    %v3625 = vmul.f32 %v3301, %v3542
    %v3627 = vlaneseq
    %v3628 = vshrl.u32 %v3627, 7
    %v3629 = vsub.s32 0, %v3628
    %v3630 = vrot.slane %v3617, %v3629
    %v3631 = vlaneseq
    %v3632 = vshrl.u32 %v3631, 7
    %v3633 = vsub.s32 1, %v3632
    %v3634 = vrot.slane %v3617, %v3633
    %v3635 = vlaneseq
    %v3636 = vshrl.u32 %v3635, 7
    %v3637 = vsub.s32 2, %v3636
    %v3638 = vrot.slane %v3617, %v3637
    %v3639 = vlaneseq
    %v3640 = vshrl.u32 %v3639, 7
    %v3641 = vsub.s32 3, %v3640
    %v3642 = vrot.slane %v3617, %v3641
    %v3643 = vlaneseq
    %v3644 = vshrl.u32 %v3643, 7
    %v3645 = vsub.s32 4, %v3644
    %v3646 = vrot.slane %v3617, %v3645
    %v3647 = vlaneseq
    %v3648 = vshrl.u32 %v3647, 7
    %v3649 = vsub.s32 5, %v3648
    %v3650 = vrot.slane %v3617, %v3649
    %v3651 = vlaneseq
    %v3652 = vshrl.u32 %v3651, 7
    %v3653 = vsub.s32 6, %v3652
    %v3654 = vrot.slane %v3617, %v3653
    %v3655 = vlaneseq
    %v3656 = vshrl.u32 %v3655, 7
    %v3657 = vsub.s32 7, %v3656
    %v3658 = vrot.slane %v3617, %v3657
    %v3667 = vadd.f32 %v3618, %v3630
    %v3668 = vadd.f32 %v3619, %v3634
    %v3669 = vadd.f32 %v3620, %v3638
    %v3670 = vadd.f32 %v3621, %v3642
    %v3671 = vadd.f32 %v3622, %v3646
    %v3672 = vadd.f32 %v3623, %v3650
    %v3673 = vadd.f32 %v3624, %v3654
    %v3674 = vadd.f32 %v3625, %v3658
    %v3675 = vmul.f32 %v3667, 0.5
    %v3676 = vmul.f32 %v3668, 0.5
    %v3677 = vmul.f32 %v3669, 0.5
    %v3678 = vmul.f32 %v3670, 0.5
    %v3679 = vmul.f32 %v3671, 0.5
    %v3680 = vmul.f32 %v3672, 0.5
    %v3681 = vmul.f32 %v3673, 0.5
    %v3682 = vmul.f32 %v3674, 0.5
    %v3683 = vmul.f32 %v3667, 0.70710677
    %v3684 = vmul.f32 %v3668, 0.70710677
    %v3685 = vmul.f32 %v3669, 0.70710677
    %v3686 = vmul.f32 %v3670, 0.70710677
    %v3687 = vmul.f32 %v3671, 0.70710677
    %v3688 = vmul.f32 %v3672, 0.70710677
    %v3689 = vmul.f32 %v3673, 0.70710677
    %v3690 = vmul.f32 %v3674, 0.70710677
    %v3691 = verf.f32.pop %v3683
    %v3692 = verf.f32.pop %v3684
    %v3693 = verf.f32.pop %v3685
    %v3694 = verf.f32.pop %v3686
    %v3695 = verf.f32.pop %v3687
    %v3696 = verf.f32.pop %v3688
    %v3697 = verf.f32.pop %v3689
    %v3698 = verf.f32.pop %v3690
    %v3699 = vadd.f32 %v3691, 1.0
    %v3700 = vadd.f32 %v3692, 1.0
    %v3701 = vadd.f32 %v3693, 1.0
    %v3702 = vadd.f32 %v3694, 1.0
    %v3703 = vadd.f32 %v3695, 1.0
    %v3704 = vadd.f32 %v3696, 1.0
    %v3705 = vadd.f32 %v3697, 1.0
    %v3706 = vadd.f32 %v3698, 1.0
    %v3707 = vmul.f32 %v3675, %v3699
    %v3708 = vmul.f32 %v3676, %v3700
    %v3709 = vmul.f32 %v3677, %v3701
    %v3710 = vmul.f32 %v3678, %v3702
    %v3711 = vmul.f32 %v3679, %v3703
    %v3712 = vmul.f32 %v3680, %v3704
    %v3713 = vmul.f32 %v3681, %v3705
    %v3714 = vmul.f32 %v3682, %v3706
    %s3715 = smul.u32 4, 128
    %s3716 = smul.u32 %s3715, 7
    %s3717 = sshll.u32 %s3716, 4
    %3718 = dma.done %s269, %s3717
    %v3719 = vld [vmem:[#allocation4] sm:$0xff]
    %v3720 = vld [vmem:[#allocation4 + $0x8] sm:$0xff]
    %v3721 = vld [vmem:[#allocation4 + $0x10] sm:$0xff]
    %v3722 = vld [vmem:[#allocation4 + $0x18] sm:$0xf]
    %v3723 = vld [vmem:[#allocation4 + $0x1c] sm:$0xff]
    %v3724 = vld [vmem:[#allocation4 + $0x24] sm:$0xff]
    %v3725 = vld [vmem:[#allocation4 + $0x2c] sm:$0xff]
    %v3726 = vld [vmem:[#allocation4 + $0x34] sm:$0xf]
    %v3727 = vld [vmem:[#allocation4 + $0x38] sm:$0xff]
    %v3728 = vld [vmem:[#allocation4 + $0x40] sm:$0xff]
    %v3729 = vld [vmem:[#allocation4 + $0x48] sm:$0xff]
    %v3730 = vld [vmem:[#allocation4 + $0x50] sm:$0xf]
    %v3731 = vld [vmem:[#allocation4 + $0x54] sm:$0xff]
    %v3732 = vld [vmem:[#allocation4 + $0x5c] sm:$0xff]
    %v3733 = vld [vmem:[#allocation4 + $0x64] sm:$0xff]
    %v3734 = vld [vmem:[#allocation4 + $0x6c] sm:$0xf]
    %v3735 = vld [vmem:[#allocation4 + $0x70] sm:$0xff]
    %v3736 = vld [vmem:[#allocation4 + $0x78] sm:$0xff]
    %v3737 = vld [vmem:[#allocation4 + $0x80] sm:$0xff]
    %v3738 = vld [vmem:[#allocation4 + $0x88] sm:$0xf]
    %v3739 = vld [vmem:[#allocation4 + $0x8c] sm:$0xff]
    %v3740 = vld [vmem:[#allocation4 + $0x94] sm:$0xff]
    %v3741 = vld [vmem:[#allocation4 + $0x9c] sm:$0xff]
    %v3742 = vld [vmem:[#allocation4 + $0xa4] sm:$0xf]
    %v3743 = vld [vmem:[#allocation4 + $0xa8] sm:$0xff]
    %v3744 = vld [vmem:[#allocation4 + $0xb0] sm:$0xff]
    %v3745 = vld [vmem:[#allocation4 + $0xb8] sm:$0xff]
    %v3746 = vld [vmem:[#allocation4 + $0xc0] sm:$0xf]
    %v3747 = vld [vmem:[#allocation4 + $0xc4] sm:$0xff]
    %v3748 = vld [vmem:[#allocation4 + $0xcc] sm:$0xff]
    %v3749 = vld [vmem:[#allocation4 + $0xd4] sm:$0xff]
    %v3750 = vld [vmem:[#allocation4 + $0xdc] sm:$0xf]
    %v3751 = vld [vmem:[#allocation4 + $0xe0] sm:$0xff]
    %v3752 = vld [vmem:[#allocation4 + $0xe8] sm:$0xff]
    %v3753 = vld [vmem:[#allocation4 + $0xf0] sm:$0xff]
    %v3754 = vld [vmem:[#allocation4 + $0xf8] sm:$0xf]
    %v3755 = vld [vmem:[#allocation4 + $0xfc] sm:$0xff]
    %v3756 = vld [vmem:[#allocation4 + $0x104] sm:$0xff]
    %v3757 = vld [vmem:[#allocation4 + $0x10c] sm:$0xff]
    %v3758 = vld [vmem:[#allocation4 + $0x114] sm:$0xf]
    %v3759 = vld [vmem:[#allocation4 + $0x118] sm:$0xff]
    %v3760 = vld [vmem:[#allocation4 + $0x120] sm:$0xff]
    %v3761 = vld [vmem:[#allocation4 + $0x128] sm:$0xff]
    %v3762 = vld [vmem:[#allocation4 + $0x130] sm:$0xf]
    %v3763 = vld [vmem:[#allocation4 + $0x134] sm:$0xff]
    %v3764 = vld [vmem:[#allocation4 + $0x13c] sm:$0xff]
    %v3765 = vld [vmem:[#allocation4 + $0x144] sm:$0xff]
    %v3766 = vld [vmem:[#allocation4 + $0x14c] sm:$0xf]
    %v3767 = vld [vmem:[#allocation4 + $0x150] sm:$0xff]
    %v3768 = vld [vmem:[#allocation4 + $0x158] sm:$0xff]
    %v3769 = vld [vmem:[#allocation4 + $0x160] sm:$0xff]
    %v3770 = vld [vmem:[#allocation4 + $0x168] sm:$0xf]
    %v3771 = vld [vmem:[#allocation4 + $0x16c] sm:$0xff]
    %v3772 = vld [vmem:[#allocation4 + $0x174] sm:$0xff]
    %v3773 = vld [vmem:[#allocation4 + $0x17c] sm:$0xff]
    %v3774 = vld [vmem:[#allocation4 + $0x184] sm:$0xf]
    %v3775 = vld [vmem:[#allocation4 + $0x188] sm:$0xff]
    %v3776 = vld [vmem:[#allocation4 + $0x190] sm:$0xff]
    %v3777 = vld [vmem:[#allocation4 + $0x198] sm:$0xff]
    %v3778 = vld [vmem:[#allocation4 + $0x1a0] sm:$0xf]
    %v3779 = vld [vmem:[#allocation4 + $0x1a4] sm:$0xff]
    %v3780 = vld [vmem:[#allocation4 + $0x1ac] sm:$0xff]
    %v3781 = vld [vmem:[#allocation4 + $0x1b4] sm:$0xff]
    %v3782 = vld [vmem:[#allocation4 + $0x1bc] sm:$0xf]
    %v3783 = vld [vmem:[#allocation4 + $0x1c0] sm:$0xff]
    %v3784 = vld [vmem:[#allocation4 + $0x1c8] sm:$0xff]
    %v3785 = vld [vmem:[#allocation4 + $0x1d0] sm:$0xff]
    %v3786 = vld [vmem:[#allocation4 + $0x1d8] sm:$0xf]
    %v3787 = vld [vmem:[#allocation4 + $0x1dc] sm:$0xff]
    %v3788 = vld [vmem:[#allocation4 + $0x1e4] sm:$0xff]
    %v3789 = vld [vmem:[#allocation4 + $0x1ec] sm:$0xff]
    %v3790 = vld [vmem:[#allocation4 + $0x1f4] sm:$0xf]
    %v3791 = vld [vmem:[#allocation4 + $0x1f8] sm:$0xff]
    %v3792 = vld [vmem:[#allocation4 + $0x200] sm:$0xff]
    %v3793 = vld [vmem:[#allocation4 + $0x208] sm:$0xff]
    %v3794 = vld [vmem:[#allocation4 + $0x210] sm:$0xf]
    %v3795 = vld [vmem:[#allocation4 + $0x214] sm:$0xff]
    %v3796 = vld [vmem:[#allocation4 + $0x21c] sm:$0xff]
    %v3797 = vld [vmem:[#allocation4 + $0x224] sm:$0xff]
    %v3798 = vld [vmem:[#allocation4 + $0x22c] sm:$0xf]
    %v3799 = vld [vmem:[#allocation4 + $0x230] sm:$0xff]
    %v3800 = vld [vmem:[#allocation4 + $0x238] sm:$0xff]
    %v3801 = vld [vmem:[#allocation4 + $0x240] sm:$0xff]
    %v3802 = vld [vmem:[#allocation4 + $0x248] sm:$0xf]
    %v3803 = vld [vmem:[#allocation4 + $0x24c] sm:$0xff]
    %v3804 = vld [vmem:[#allocation4 + $0x254] sm:$0xff]
    %v3805 = vld [vmem:[#allocation4 + $0x25c] sm:$0xff]
    %v3806 = vld [vmem:[#allocation4 + $0x264] sm:$0xf]
    %v3807 = vld [vmem:[#allocation4 + $0x268] sm:$0xff]
    %v3808 = vld [vmem:[#allocation4 + $0x270] sm:$0xff]
    %v3809 = vld [vmem:[#allocation4 + $0x278] sm:$0xff]
    %v3810 = vld [vmem:[#allocation4 + $0x280] sm:$0xf]
    %v3811 = vld [vmem:[#allocation4 + $0x284] sm:$0xff]
    %v3812 = vld [vmem:[#allocation4 + $0x28c] sm:$0xff]
    %v3813 = vld [vmem:[#allocation4 + $0x294] sm:$0xff]
    %v3814 = vld [vmem:[#allocation4 + $0x29c] sm:$0xf]
    %v3815 = vld [vmem:[#allocation4 + $0x2a0] sm:$0xff]
    %v3816 = vld [vmem:[#allocation4 + $0x2a8] sm:$0xff]
    %v3817 = vld [vmem:[#allocation4 + $0x2b0] sm:$0xff]
    %v3818 = vld [vmem:[#allocation4 + $0x2b8] sm:$0xf]
    %v3819 = vld [vmem:[#allocation4 + $0x2bc] sm:$0xff]
    %v3820 = vld [vmem:[#allocation4 + $0x2c4] sm:$0xff]
    %v3821 = vld [vmem:[#allocation4 + $0x2cc] sm:$0xff]
    %v3822 = vld [vmem:[#allocation4 + $0x2d4] sm:$0xf]
    %v3823 = vld [vmem:[#allocation4 + $0x2d8] sm:$0xff]
    %v3824 = vld [vmem:[#allocation4 + $0x2e0] sm:$0xff]
    %v3825 = vld [vmem:[#allocation4 + $0x2e8] sm:$0xff]
    %v3826 = vld [vmem:[#allocation4 + $0x2f0] sm:$0xf]
    %v3827 = vld [vmem:[#allocation4 + $0x2f4] sm:$0xff]
    %v3828 = vld [vmem:[#allocation4 + $0x2fc] sm:$0xff]
    %v3829 = vld [vmem:[#allocation4 + $0x304] sm:$0xff]
    %v3830 = vld [vmem:[#allocation4 + $0x30c] sm:$0xf]
    %v3831 = vld [vmem:[#allocation4 + $0x310] sm:$0xff]
    %v3832 = vld [vmem:[#allocation4 + $0x318] sm:$0xff]
    %v3833 = vld [vmem:[#allocation4 + $0x320] sm:$0xff]
    %v3834 = vld [vmem:[#allocation4 + $0x328] sm:$0xf]
    %v3835 = vld [vmem:[#allocation4 + $0x32c] sm:$0xff]
    %v3836 = vld [vmem:[#allocation4 + $0x334] sm:$0xff]
    %v3837 = vld [vmem:[#allocation4 + $0x33c] sm:$0xff]
    %v3838 = vld [vmem:[#allocation4 + $0x344] sm:$0xf]
    %v3839 = vld [vmem:[#allocation4 + $0x348] sm:$0xff]
    %v3840 = vld [vmem:[#allocation4 + $0x350] sm:$0xff]
    %v3841 = vld [vmem:[#allocation4 + $0x358] sm:$0xff]
    %v3842 = vld [vmem:[#allocation4 + $0x360] sm:$0xf]
    %v3843 = vld [vmem:[#allocation4 + $0x364] sm:$0xff]
    %v3844 = vld [vmem:[#allocation4 + $0x36c] sm:$0xff]
    %v3845 = vld [vmem:[#allocation4 + $0x374] sm:$0xff]
    %v3846 = vld [vmem:[#allocation4 + $0x37c] sm:$0xf]
    %v3847 = vld [vmem:[#allocation4 + $0x380] sm:$0xff]
    %v3848 = vld [vmem:[#allocation4 + $0x388] sm:$0xff]
    %v3849 = vld [vmem:[#allocation4 + $0x390] sm:$0xff]
    %v3850 = vld [vmem:[#allocation4 + $0x398] sm:$0xf]
    %v3851 = vld [vmem:[#allocation4 + $0x39c] sm:$0xff]
    %v3852 = vld [vmem:[#allocation4 + $0x3a4] sm:$0xff]
    %v3853 = vld [vmem:[#allocation4 + $0x3ac] sm:$0xff]
    %v3854 = vld [vmem:[#allocation4 + $0x3b4] sm:$0xf]
    %v3855 = vld [vmem:[#allocation4 + $0x3b8] sm:$0xff]
    %v3856 = vld [vmem:[#allocation4 + $0x3c0] sm:$0xff]
    %v3857 = vld [vmem:[#allocation4 + $0x3c8] sm:$0xff]
    %v3858 = vld [vmem:[#allocation4 + $0x3d0] sm:$0xf]
    %v3859 = vld [vmem:[#allocation4 + $0x3d4] sm:$0xff]
    %v3860 = vld [vmem:[#allocation4 + $0x3dc] sm:$0xff]
    %v3861 = vld [vmem:[#allocation4 + $0x3e4] sm:$0xff]
    %v3862 = vld [vmem:[#allocation4 + $0x3ec] sm:$0xf]
    %v3863 = vld [vmem:[#allocation4 + $0x3f0] sm:$0xff]
    %v3864 = vld [vmem:[#allocation4 + $0x3f8] sm:$0xff]
    %v3865 = vld [vmem:[#allocation4 + $0x400] sm:$0xff]
    %v3866 = vld [vmem:[#allocation4 + $0x408] sm:$0xf]
    %v3867 = vld [vmem:[#allocation4 + $0x40c] sm:$0xff]
    %v3868 = vld [vmem:[#allocation4 + $0x414] sm:$0xff]
    %v3869 = vld [vmem:[#allocation4 + $0x41c] sm:$0xff]
    %v3870 = vld [vmem:[#allocation4 + $0x424] sm:$0xf]
    %v3871 = vld [vmem:[#allocation4 + $0x428] sm:$0xff]
    %v3872 = vld [vmem:[#allocation4 + $0x430] sm:$0xff]
    %v3873 = vld [vmem:[#allocation4 + $0x438] sm:$0xff]
    %v3874 = vld [vmem:[#allocation4 + $0x440] sm:$0xf]
    %v3875 = vld [vmem:[#allocation4 + $0x444] sm:$0xff]
    %v3876 = vld [vmem:[#allocation4 + $0x44c] sm:$0xff]
    %v3877 = vld [vmem:[#allocation4 + $0x454] sm:$0xff]
    %v3878 = vld [vmem:[#allocation4 + $0x45c] sm:$0xf]
    %v3879 = vld [vmem:[#allocation4 + $0x460] sm:$0xff]
    %v3880 = vld [vmem:[#allocation4 + $0x468] sm:$0xff]
    %v3881 = vld [vmem:[#allocation4 + $0x470] sm:$0xff]
    %v3882 = vld [vmem:[#allocation4 + $0x478] sm:$0xf]
    %v3883 = vld [vmem:[#allocation4 + $0x47c] sm:$0xff]
    %v3884 = vld [vmem:[#allocation4 + $0x484] sm:$0xff]
    %v3885 = vld [vmem:[#allocation4 + $0x48c] sm:$0xff]
    %v3886 = vld [vmem:[#allocation4 + $0x494] sm:$0xf]
    %v3887 = vld [vmem:[#allocation4 + $0x498] sm:$0xff]
    %v3888 = vld [vmem:[#allocation4 + $0x4a0] sm:$0xff]
    %v3889 = vld [vmem:[#allocation4 + $0x4a8] sm:$0xff]
    %v3890 = vld [vmem:[#allocation4 + $0x4b0] sm:$0xf]
    %v3891 = vld [vmem:[#allocation4 + $0x4b4] sm:$0xff]
    %v3892 = vld [vmem:[#allocation4 + $0x4bc] sm:$0xff]
    %v3893 = vld [vmem:[#allocation4 + $0x4c4] sm:$0xff]
    %v3894 = vld [vmem:[#allocation4 + $0x4cc] sm:$0xf]
    %v3895 = vld [vmem:[#allocation4 + $0x4d0] sm:$0xff]
    %v3896 = vld [vmem:[#allocation4 + $0x4d8] sm:$0xff]
    %v3897 = vld [vmem:[#allocation4 + $0x4e0] sm:$0xff]
    %v3898 = vld [vmem:[#allocation4 + $0x4e8] sm:$0xf]
    %v3899 = vld [vmem:[#allocation4 + $0x4ec] sm:$0xff]
    %v3900 = vld [vmem:[#allocation4 + $0x4f4] sm:$0xff]
    %v3901 = vld [vmem:[#allocation4 + $0x4fc] sm:$0xff]
    %v3902 = vld [vmem:[#allocation4 + $0x504] sm:$0xf]
    %v3903 = vld [vmem:[#allocation4 + $0x508] sm:$0xff]
    %v3904 = vld [vmem:[#allocation4 + $0x510] sm:$0xff]
    %v3905 = vld [vmem:[#allocation4 + $0x518] sm:$0xff]
    %v3906 = vld [vmem:[#allocation4 + $0x520] sm:$0xf]
    %v3907 = vld [vmem:[#allocation4 + $0x524] sm:$0xff]
    %v3908 = vld [vmem:[#allocation4 + $0x52c] sm:$0xff]
    %v3909 = vld [vmem:[#allocation4 + $0x534] sm:$0xff]
    %v3910 = vld [vmem:[#allocation4 + $0x53c] sm:$0xf]
    %v3911 = vld [vmem:[#allocation4 + $0x540] sm:$0xff]
    %v3912 = vld [vmem:[#allocation4 + $0x548] sm:$0xff]
    %v3913 = vld [vmem:[#allocation4 + $0x550] sm:$0xff]
    %v3914 = vld [vmem:[#allocation4 + $0x558] sm:$0xf]
    %v3915 = vld [vmem:[#allocation4 + $0x55c] sm:$0xff]
    %v3916 = vld [vmem:[#allocation4 + $0x564] sm:$0xff]
    %v3917 = vld [vmem:[#allocation4 + $0x56c] sm:$0xff]
    %v3918 = vld [vmem:[#allocation4 + $0x574] sm:$0xf]
    %v3919 = vld [vmem:[#allocation4 + $0x578] sm:$0xff]
    %v3920 = vld [vmem:[#allocation4 + $0x580] sm:$0xff]
    %v3921 = vld [vmem:[#allocation4 + $0x588] sm:$0xff]
    %v3922 = vld [vmem:[#allocation4 + $0x590] sm:$0xf]
    %v3923 = vld [vmem:[#allocation4 + $0x594] sm:$0xff]
    %v3924 = vld [vmem:[#allocation4 + $0x59c] sm:$0xff]
    %v3925 = vld [vmem:[#allocation4 + $0x5a4] sm:$0xff]
    %v3926 = vld [vmem:[#allocation4 + $0x5ac] sm:$0xf]
    %v3927 = vld [vmem:[#allocation4 + $0x5b0] sm:$0xff]
    %v3928 = vld [vmem:[#allocation4 + $0x5b8] sm:$0xff]
    %v3929 = vld [vmem:[#allocation4 + $0x5c0] sm:$0xff]
    %v3930 = vld [vmem:[#allocation4 + $0x5c8] sm:$0xf]
    %v3931 = vld [vmem:[#allocation4 + $0x5cc] sm:$0xff]
    %v3932 = vld [vmem:[#allocation4 + $0x5d4] sm:$0xff]
    %v3933 = vld [vmem:[#allocation4 + $0x5dc] sm:$0xff]
    %v3934 = vld [vmem:[#allocation4 + $0x5e4] sm:$0xf]
    %v3935 = vld [vmem:[#allocation4 + $0x5e8] sm:$0xff]
    %v3936 = vld [vmem:[#allocation4 + $0x5f0] sm:$0xff]
    %v3937 = vld [vmem:[#allocation4 + $0x5f8] sm:$0xff]
    %v3938 = vld [vmem:[#allocation4 + $0x600] sm:$0xf]
    %v3939 = vld [vmem:[#allocation4 + $0x604] sm:$0xff]
    %v3940 = vld [vmem:[#allocation4 + $0x60c] sm:$0xff]
    %v3941 = vld [vmem:[#allocation4 + $0x614] sm:$0xff]
    %v3942 = vld [vmem:[#allocation4 + $0x61c] sm:$0xf]
    %v3943 = vld [vmem:[#allocation4 + $0x620] sm:$0xff]
    %v3944 = vld [vmem:[#allocation4 + $0x628] sm:$0xff]
    %v3945 = vld [vmem:[#allocation4 + $0x630] sm:$0xff]
    %v3946 = vld [vmem:[#allocation4 + $0x638] sm:$0xf]
    %v3947 = vld [vmem:[#allocation4 + $0x63c] sm:$0xff]
    %v3948 = vld [vmem:[#allocation4 + $0x644] sm:$0xff]
    %v3949 = vld [vmem:[#allocation4 + $0x64c] sm:$0xff]
    %v3950 = vld [vmem:[#allocation4 + $0x654] sm:$0xf]
    %v3951 = vld [vmem:[#allocation4 + $0x658] sm:$0xff]
    %v3952 = vld [vmem:[#allocation4 + $0x660] sm:$0xff]
    %v3953 = vld [vmem:[#allocation4 + $0x668] sm:$0xff]
    %v3954 = vld [vmem:[#allocation4 + $0x670] sm:$0xf]
    %v3955 = vld [vmem:[#allocation4 + $0x674] sm:$0xff]
    %v3956 = vld [vmem:[#allocation4 + $0x67c] sm:$0xff]
    %v3957 = vld [vmem:[#allocation4 + $0x684] sm:$0xff]
    %v3958 = vld [vmem:[#allocation4 + $0x68c] sm:$0xf]
    %v3959 = vld [vmem:[#allocation4 + $0x690] sm:$0xff]
    %v3960 = vld [vmem:[#allocation4 + $0x698] sm:$0xff]
    %v3961 = vld [vmem:[#allocation4 + $0x6a0] sm:$0xff]
    %v3962 = vld [vmem:[#allocation4 + $0x6a8] sm:$0xf]
    %v3963 = vld [vmem:[#allocation4 + $0x6ac] sm:$0xff]
    %v3964 = vld [vmem:[#allocation4 + $0x6b4] sm:$0xff]
    %v3965 = vld [vmem:[#allocation4 + $0x6bc] sm:$0xff]
    %v3966 = vld [vmem:[#allocation4 + $0x6c4] sm:$0xf]
    %v3967 = vld [vmem:[#allocation4 + $0x6c8] sm:$0xff]
    %v3968 = vld [vmem:[#allocation4 + $0x6d0] sm:$0xff]
    %v3969 = vld [vmem:[#allocation4 + $0x6d8] sm:$0xff]
    %v3970 = vld [vmem:[#allocation4 + $0x6e0] sm:$0xf]
    %v3971 = vld [vmem:[#allocation4 + $0x6e4] sm:$0xff]
    %v3972 = vld [vmem:[#allocation4 + $0x6ec] sm:$0xff]
    %v3973 = vld [vmem:[#allocation4 + $0x6f4] sm:$0xff]
    %v3974 = vld [vmem:[#allocation4 + $0x6fc] sm:$0xf]
    %v3975 = vld [vmem:[#allocation4 + $0x700] sm:$0xff]
    %v3976 = vld [vmem:[#allocation4 + $0x708] sm:$0xff]
    %v3977 = vld [vmem:[#allocation4 + $0x710] sm:$0xff]
    %v3978 = vld [vmem:[#allocation4 + $0x718] sm:$0xf]
    %v3979 = vld [vmem:[#allocation4 + $0x71c] sm:$0xff]
    %v3980 = vld [vmem:[#allocation4 + $0x724] sm:$0xff]
    %v3981 = vld [vmem:[#allocation4 + $0x72c] sm:$0xff]
    %v3982 = vld [vmem:[#allocation4 + $0x734] sm:$0xf]
    %v3983 = vld [vmem:[#allocation4 + $0x738] sm:$0xff]
    %v3984 = vld [vmem:[#allocation4 + $0x740] sm:$0xff]
    %v3985 = vld [vmem:[#allocation4 + $0x748] sm:$0xff]
    %v3986 = vld [vmem:[#allocation4 + $0x750] sm:$0xf]
    %v3987 = vld [vmem:[#allocation4 + $0x754] sm:$0xff]
    %v3988 = vld [vmem:[#allocation4 + $0x75c] sm:$0xff]
    %v3989 = vld [vmem:[#allocation4 + $0x764] sm:$0xff]
    %v3990 = vld [vmem:[#allocation4 + $0x76c] sm:$0xf]
    %v3991 = vld [vmem:[#allocation4 + $0x770] sm:$0xff]
    %v3992 = vld [vmem:[#allocation4 + $0x778] sm:$0xff]
    %v3993 = vld [vmem:[#allocation4 + $0x780] sm:$0xff]
    %v3994 = vld [vmem:[#allocation4 + $0x788] sm:$0xf]
    %v3995 = vld [vmem:[#allocation4 + $0x78c] sm:$0xff]
    %v3996 = vld [vmem:[#allocation4 + $0x794] sm:$0xff]
    %v3997 = vld [vmem:[#allocation4 + $0x79c] sm:$0xff]
    %v3998 = vld [vmem:[#allocation4 + $0x7a4] sm:$0xf]
    %v3999 = vld [vmem:[#allocation4 + $0x7a8] sm:$0xff]
    %v4000 = vld [vmem:[#allocation4 + $0x7b0] sm:$0xff]
    %v4001 = vld [vmem:[#allocation4 + $0x7b8] sm:$0xff]
    %v4002 = vld [vmem:[#allocation4 + $0x7c0] sm:$0xf]
    %v4003 = vld [vmem:[#allocation4 + $0x7c4] sm:$0xff]
    %v4004 = vld [vmem:[#allocation4 + $0x7cc] sm:$0xff]
    %v4005 = vld [vmem:[#allocation4 + $0x7d4] sm:$0xff]
    %v4006 = vld [vmem:[#allocation4 + $0x7dc] sm:$0xf]
    %v4007 = vld [vmem:[#allocation4 + $0x7e0] sm:$0xff]
    %v4008 = vld [vmem:[#allocation4 + $0x7e8] sm:$0xff]
    %v4009 = vld [vmem:[#allocation4 + $0x7f0] sm:$0xff]
    %v4010 = vld [vmem:[#allocation4 + $0x7f8] sm:$0xf]
    %v4011 = vld [vmem:[#allocation4 + $0x7fc] sm:$0xff]
    %v4012 = vld [vmem:[#allocation4 + $0x804] sm:$0xff]
    %v4013 = vld [vmem:[#allocation4 + $0x80c] sm:$0xff]
    %v4014 = vld [vmem:[#allocation4 + $0x814] sm:$0xf]
    %v4015 = vld [vmem:[#allocation4 + $0x818] sm:$0xff]
    %v4016 = vld [vmem:[#allocation4 + $0x820] sm:$0xff]
    %v4017 = vld [vmem:[#allocation4 + $0x828] sm:$0xff]
    %v4018 = vld [vmem:[#allocation4 + $0x830] sm:$0xf]
    %v4019 = vld [vmem:[#allocation4 + $0x834] sm:$0xff]
    %v4020 = vld [vmem:[#allocation4 + $0x83c] sm:$0xff]
    %v4021 = vld [vmem:[#allocation4 + $0x844] sm:$0xff]
    %v4022 = vld [vmem:[#allocation4 + $0x84c] sm:$0xf]
    %v4023 = vld [vmem:[#allocation4 + $0x850] sm:$0xff]
    %v4024 = vld [vmem:[#allocation4 + $0x858] sm:$0xff]
    %v4025 = vld [vmem:[#allocation4 + $0x860] sm:$0xff]
    %v4026 = vld [vmem:[#allocation4 + $0x868] sm:$0xf]
    %v4027 = vld [vmem:[#allocation4 + $0x86c] sm:$0xff]
    %v4028 = vld [vmem:[#allocation4 + $0x874] sm:$0xff]
    %v4029 = vld [vmem:[#allocation4 + $0x87c] sm:$0xff]
    %v4030 = vld [vmem:[#allocation4 + $0x884] sm:$0xf]
    %v4031 = vld [vmem:[#allocation4 + $0x888] sm:$0xff]
    %v4032 = vld [vmem:[#allocation4 + $0x890] sm:$0xff]
    %v4033 = vld [vmem:[#allocation4 + $0x898] sm:$0xff]
    %v4034 = vld [vmem:[#allocation4 + $0x8a0] sm:$0xf]
    %v4035 = vld [vmem:[#allocation4 + $0x8a4] sm:$0xff]
    %v4036 = vld [vmem:[#allocation4 + $0x8ac] sm:$0xff]
    %v4037 = vld [vmem:[#allocation4 + $0x8b4] sm:$0xff]
    %v4038 = vld [vmem:[#allocation4 + $0x8bc] sm:$0xf]
    %v4039 = vld [vmem:[#allocation4 + $0x8c0] sm:$0xff]
    %v4040 = vld [vmem:[#allocation4 + $0x8c8] sm:$0xff]
    %v4041 = vld [vmem:[#allocation4 + $0x8d0] sm:$0xff]
    %v4042 = vld [vmem:[#allocation4 + $0x8d8] sm:$0xf]
    %v4043 = vld [vmem:[#allocation4 + $0x8dc] sm:$0xff]
    %v4044 = vld [vmem:[#allocation4 + $0x8e4] sm:$0xff]
    %v4045 = vld [vmem:[#allocation4 + $0x8ec] sm:$0xff]
    %v4046 = vld [vmem:[#allocation4 + $0x8f4] sm:$0xf]
    %v4047 = vld [vmem:[#allocation4 + $0x8f8] sm:$0xff]
    %v4048 = vld [vmem:[#allocation4 + $0x900] sm:$0xff]
    %v4049 = vld [vmem:[#allocation4 + $0x908] sm:$0xff]
    %v4050 = vld [vmem:[#allocation4 + $0x910] sm:$0xf]
    %v4051 = vld [vmem:[#allocation4 + $0x914] sm:$0xff]
    %v4052 = vld [vmem:[#allocation4 + $0x91c] sm:$0xff]
    %v4053 = vld [vmem:[#allocation4 + $0x924] sm:$0xff]
    %v4054 = vld [vmem:[#allocation4 + $0x92c] sm:$0xf]
    %v4055 = vld [vmem:[#allocation4 + $0x930] sm:$0xff]
    %v4056 = vld [vmem:[#allocation4 + $0x938] sm:$0xff]
    %v4057 = vld [vmem:[#allocation4 + $0x940] sm:$0xff]
    %v4058 = vld [vmem:[#allocation4 + $0x948] sm:$0xf]
    %v4059 = vld [vmem:[#allocation4 + $0x94c] sm:$0xff]
    %v4060 = vld [vmem:[#allocation4 + $0x954] sm:$0xff]
    %v4061 = vld [vmem:[#allocation4 + $0x95c] sm:$0xff]
    %v4062 = vld [vmem:[#allocation4 + $0x964] sm:$0xf]
    %v4063 = vld [vmem:[#allocation4 + $0x968] sm:$0xff]
    %v4064 = vld [vmem:[#allocation4 + $0x970] sm:$0xff]
    %v4065 = vld [vmem:[#allocation4 + $0x978] sm:$0xff]
    %v4066 = vld [vmem:[#allocation4 + $0x980] sm:$0xf]
    %v4067 = vld [vmem:[#allocation4 + $0x984] sm:$0xff]
    %v4068 = vld [vmem:[#allocation4 + $0x98c] sm:$0xff]
    %v4069 = vld [vmem:[#allocation4 + $0x994] sm:$0xff]
    %v4070 = vld [vmem:[#allocation4 + $0x99c] sm:$0xf]
    %v4071 = vld [vmem:[#allocation4 + $0x9a0] sm:$0xff]
    %v4072 = vld [vmem:[#allocation4 + $0x9a8] sm:$0xff]
    %v4073 = vld [vmem:[#allocation4 + $0x9b0] sm:$0xff]
    %v4074 = vld [vmem:[#allocation4 + $0x9b8] sm:$0xf]
    %v4075 = vld [vmem:[#allocation4 + $0x9bc] sm:$0xff]
    %v4076 = vld [vmem:[#allocation4 + $0x9c4] sm:$0xff]
    %v4077 = vld [vmem:[#allocation4 + $0x9cc] sm:$0xff]
    %v4078 = vld [vmem:[#allocation4 + $0x9d4] sm:$0xf]
    %v4079 = vld [vmem:[#allocation4 + $0x9d8] sm:$0xff]
    %v4080 = vld [vmem:[#allocation4 + $0x9e0] sm:$0xff]
    %v4081 = vld [vmem:[#allocation4 + $0x9e8] sm:$0xff]
    %v4082 = vld [vmem:[#allocation4 + $0x9f0] sm:$0xf]
    %v4083 = vld [vmem:[#allocation4 + $0x9f4] sm:$0xff]
    %v4084 = vld [vmem:[#allocation4 + $0x9fc] sm:$0xff]
    %v4085 = vld [vmem:[#allocation4 + $0xa04] sm:$0xff]
    %v4086 = vld [vmem:[#allocation4 + $0xa0c] sm:$0xf]
    %v4087 = vld [vmem:[#allocation4 + $0xa10] sm:$0xff]
    %v4088 = vld [vmem:[#allocation4 + $0xa18] sm:$0xff]
    %v4089 = vld [vmem:[#allocation4 + $0xa20] sm:$0xff]
    %v4090 = vld [vmem:[#allocation4 + $0xa28] sm:$0xf]
    %v4091 = vld [vmem:[#allocation4 + $0xa2c] sm:$0xff]
    %v4092 = vld [vmem:[#allocation4 + $0xa34] sm:$0xff]
    %v4093 = vld [vmem:[#allocation4 + $0xa3c] sm:$0xff]
    %v4094 = vld [vmem:[#allocation4 + $0xa44] sm:$0xf]
    %v4095 = vld [vmem:[#allocation4 + $0xa48] sm:$0xff]
    %v4096 = vld [vmem:[#allocation4 + $0xa50] sm:$0xff]
    %v4097 = vld [vmem:[#allocation4 + $0xa58] sm:$0xff]
    %v4098 = vld [vmem:[#allocation4 + $0xa60] sm:$0xf]
    %v4099 = vld [vmem:[#allocation4 + $0xa64] sm:$0xff]
    %v4100 = vld [vmem:[#allocation4 + $0xa6c] sm:$0xff]
    %v4101 = vld [vmem:[#allocation4 + $0xa74] sm:$0xff]
    %v4102 = vld [vmem:[#allocation4 + $0xa7c] sm:$0xf]
    %v4103 = vld [vmem:[#allocation4 + $0xa80] sm:$0xff]
    %v4104 = vld [vmem:[#allocation4 + $0xa88] sm:$0xff]
    %v4105 = vld [vmem:[#allocation4 + $0xa90] sm:$0xff]
    %v4106 = vld [vmem:[#allocation4 + $0xa98] sm:$0xf]
    %v4107 = vld [vmem:[#allocation4 + $0xa9c] sm:$0xff]
    %v4108 = vld [vmem:[#allocation4 + $0xaa4] sm:$0xff]
    %v4109 = vld [vmem:[#allocation4 + $0xaac] sm:$0xff]
    %v4110 = vld [vmem:[#allocation4 + $0xab4] sm:$0xf]
    %v4111 = vld [vmem:[#allocation4 + $0xab8] sm:$0xff]
    %v4112 = vld [vmem:[#allocation4 + $0xac0] sm:$0xff]
    %v4113 = vld [vmem:[#allocation4 + $0xac8] sm:$0xff]
    %v4114 = vld [vmem:[#allocation4 + $0xad0] sm:$0xf]
    %v4115 = vld [vmem:[#allocation4 + $0xad4] sm:$0xff]
    %v4116 = vld [vmem:[#allocation4 + $0xadc] sm:$0xff]
    %v4117 = vld [vmem:[#allocation4 + $0xae4] sm:$0xff]
    %v4118 = vld [vmem:[#allocation4 + $0xaec] sm:$0xf]
    %v4119 = vld [vmem:[#allocation4 + $0xaf0] sm:$0xff]
    %v4120 = vld [vmem:[#allocation4 + $0xaf8] sm:$0xff]
    %v4121 = vld [vmem:[#allocation4 + $0xb00] sm:$0xff]
    %v4122 = vld [vmem:[#allocation4 + $0xb08] sm:$0xf]
    %v4123 = vld [vmem:[#allocation4 + $0xb0c] sm:$0xff]
    %v4124 = vld [vmem:[#allocation4 + $0xb14] sm:$0xff]
    %v4125 = vld [vmem:[#allocation4 + $0xb1c] sm:$0xff]
    %v4126 = vld [vmem:[#allocation4 + $0xb24] sm:$0xf]
    %v4127 = vld [vmem:[#allocation4 + $0xb28] sm:$0xff]
    %v4128 = vld [vmem:[#allocation4 + $0xb30] sm:$0xff]
    %v4129 = vld [vmem:[#allocation4 + $0xb38] sm:$0xff]
    %v4130 = vld [vmem:[#allocation4 + $0xb40] sm:$0xf]
    %v4131 = vld [vmem:[#allocation4 + $0xb44] sm:$0xff]
    %v4132 = vld [vmem:[#allocation4 + $0xb4c] sm:$0xff]
    %v4133 = vld [vmem:[#allocation4 + $0xb54] sm:$0xff]
    %v4134 = vld [vmem:[#allocation4 + $0xb5c] sm:$0xf]
    %v4135 = vld [vmem:[#allocation4 + $0xb60] sm:$0xff]
    %v4136 = vld [vmem:[#allocation4 + $0xb68] sm:$0xff]
    %v4137 = vld [vmem:[#allocation4 + $0xb70] sm:$0xff]
    %v4138 = vld [vmem:[#allocation4 + $0xb78] sm:$0xf]
    %v4139 = vld [vmem:[#allocation4 + $0xb7c] sm:$0xff]
    %v4140 = vld [vmem:[#allocation4 + $0xb84] sm:$0xff]
    %v4141 = vld [vmem:[#allocation4 + $0xb8c] sm:$0xff]
    %v4142 = vld [vmem:[#allocation4 + $0xb94] sm:$0xf]
    %v4143 = vld [vmem:[#allocation4 + $0xb98] sm:$0xff]
    %v4144 = vld [vmem:[#allocation4 + $0xba0] sm:$0xff]
    %v4145 = vld [vmem:[#allocation4 + $0xba8] sm:$0xff]
    %v4146 = vld [vmem:[#allocation4 + $0xbb0] sm:$0xf]
    %v4147 = vld [vmem:[#allocation4 + $0xbb4] sm:$0xff]
    %v4148 = vld [vmem:[#allocation4 + $0xbbc] sm:$0xff]
    %v4149 = vld [vmem:[#allocation4 + $0xbc4] sm:$0xff]
    %v4150 = vld [vmem:[#allocation4 + $0xbcc] sm:$0xf]
    %v4151 = vld [vmem:[#allocation4 + $0xbd0] sm:$0xff]
    %v4152 = vld [vmem:[#allocation4 + $0xbd8] sm:$0xff]
    %v4153 = vld [vmem:[#allocation4 + $0xbe0] sm:$0xff]
    %v4154 = vld [vmem:[#allocation4 + $0xbe8] sm:$0xf]
    %v4155 = vld [vmem:[#allocation4 + $0xbec] sm:$0xff]
    %v4156 = vld [vmem:[#allocation4 + $0xbf4] sm:$0xff]
    %v4157 = vld [vmem:[#allocation4 + $0xbfc] sm:$0xff]
    %v4158 = vld [vmem:[#allocation4 + $0xc04] sm:$0xf]
    %v4159 = vld [vmem:[#allocation4 + $0xc08] sm:$0xff]
    %v4160 = vld [vmem:[#allocation4 + $0xc10] sm:$0xff]
    %v4161 = vld [vmem:[#allocation4 + $0xc18] sm:$0xff]
    %v4162 = vld [vmem:[#allocation4 + $0xc20] sm:$0xf]
    %v4163 = vld [vmem:[#allocation4 + $0xc24] sm:$0xff]
    %v4164 = vld [vmem:[#allocation4 + $0xc2c] sm:$0xff]
    %v4165 = vld [vmem:[#allocation4 + $0xc34] sm:$0xff]
    %v4166 = vld [vmem:[#allocation4 + $0xc3c] sm:$0xf]
    %v4167 = vld [vmem:[#allocation4 + $0xc40] sm:$0xff]
    %v4168 = vld [vmem:[#allocation4 + $0xc48] sm:$0xff]
    %v4169 = vld [vmem:[#allocation4 + $0xc50] sm:$0xff]
    %v4170 = vld [vmem:[#allocation4 + $0xc58] sm:$0xf]
    %v4171 = vld [vmem:[#allocation4 + $0xc5c] sm:$0xff]
    %v4172 = vld [vmem:[#allocation4 + $0xc64] sm:$0xff]
    %v4173 = vld [vmem:[#allocation4 + $0xc6c] sm:$0xff]
    %v4174 = vld [vmem:[#allocation4 + $0xc74] sm:$0xf]
    %v4175 = vld [vmem:[#allocation4 + $0xc78] sm:$0xff]
    %v4176 = vld [vmem:[#allocation4 + $0xc80] sm:$0xff]
    %v4177 = vld [vmem:[#allocation4 + $0xc88] sm:$0xff]
    %v4178 = vld [vmem:[#allocation4 + $0xc90] sm:$0xf]
    %v4179 = vld [vmem:[#allocation4 + $0xc94] sm:$0xff]
    %v4180 = vld [vmem:[#allocation4 + $0xc9c] sm:$0xff]
    %v4181 = vld [vmem:[#allocation4 + $0xca4] sm:$0xff]
    %v4182 = vld [vmem:[#allocation4 + $0xcac] sm:$0xf]
    %v4183 = vld [vmem:[#allocation4 + $0xcb0] sm:$0xff]
    %v4184 = vld [vmem:[#allocation4 + $0xcb8] sm:$0xff]
    %v4185 = vld [vmem:[#allocation4 + $0xcc0] sm:$0xff]
    %v4186 = vld [vmem:[#allocation4 + $0xcc8] sm:$0xf]
    %v4187 = vld [vmem:[#allocation4 + $0xccc] sm:$0xff]
    %v4188 = vld [vmem:[#allocation4 + $0xcd4] sm:$0xff]
    %v4189 = vld [vmem:[#allocation4 + $0xcdc] sm:$0xff]
    %v4190 = vld [vmem:[#allocation4 + $0xce4] sm:$0xf]
    %v4191 = vld [vmem:[#allocation4 + $0xce8] sm:$0xff]
    %v4192 = vld [vmem:[#allocation4 + $0xcf0] sm:$0xff]
    %v4193 = vld [vmem:[#allocation4 + $0xcf8] sm:$0xff]
    %v4194 = vld [vmem:[#allocation4 + $0xd00] sm:$0xf]
    %v4195 = vld [vmem:[#allocation4 + $0xd04] sm:$0xff]
    %v4196 = vld [vmem:[#allocation4 + $0xd0c] sm:$0xff]
    %v4197 = vld [vmem:[#allocation4 + $0xd14] sm:$0xff]
    %v4198 = vld [vmem:[#allocation4 + $0xd1c] sm:$0xf]
    %v4199 = vld [vmem:[#allocation4 + $0xd20] sm:$0xff]
    %v4200 = vld [vmem:[#allocation4 + $0xd28] sm:$0xff]
    %v4201 = vld [vmem:[#allocation4 + $0xd30] sm:$0xff]
    %v4202 = vld [vmem:[#allocation4 + $0xd38] sm:$0xf]
    %v4203 = vld [vmem:[#allocation4 + $0xd3c] sm:$0xff]
    %v4204 = vld [vmem:[#allocation4 + $0xd44] sm:$0xff]
    %v4205 = vld [vmem:[#allocation4 + $0xd4c] sm:$0xff]
    %v4206 = vld [vmem:[#allocation4 + $0xd54] sm:$0xf]
    %v4207 = vld [vmem:[#allocation4 + $0xd58] sm:$0xff]
    %v4208 = vld [vmem:[#allocation4 + $0xd60] sm:$0xff]
    %v4209 = vld [vmem:[#allocation4 + $0xd68] sm:$0xff]
    %v4210 = vld [vmem:[#allocation4 + $0xd70] sm:$0xf]
    %v4211 = vld [vmem:[#allocation4 + $0xd74] sm:$0xff]
    %v4212 = vld [vmem:[#allocation4 + $0xd7c] sm:$0xff]
    %v4213 = vld [vmem:[#allocation4 + $0xd84] sm:$0xff]
    %v4214 = vld [vmem:[#allocation4 + $0xd8c] sm:$0xf]
    %v4215 = vld [vmem:[#allocation4 + $0xd90] sm:$0xff]
    %v4216 = vld [vmem:[#allocation4 + $0xd98] sm:$0xff]
    %v4217 = vld [vmem:[#allocation4 + $0xda0] sm:$0xff]
    %v4218 = vld [vmem:[#allocation4 + $0xda8] sm:$0xf]
    %v4219 = vld [vmem:[#allocation4 + $0xdac] sm:$0xff]
    %v4220 = vld [vmem:[#allocation4 + $0xdb4] sm:$0xff]
    %v4221 = vld [vmem:[#allocation4 + $0xdbc] sm:$0xff]
    %v4222 = vld [vmem:[#allocation4 + $0xdc4] sm:$0xf]
    %v4223 = vld [vmem:[#allocation4 + $0xdc8] sm:$0xff]
    %v4224 = vld [vmem:[#allocation4 + $0xdd0] sm:$0xff]
    %v4225 = vld [vmem:[#allocation4 + $0xdd8] sm:$0xff]
    %v4226 = vld [vmem:[#allocation4 + $0xde0] sm:$0xf]
    %v4227 = vld [vmem:[#allocation4 + $0xde4] sm:$0xff]
    %v4228 = vld [vmem:[#allocation4 + $0xdec] sm:$0xff]
    %v4229 = vld [vmem:[#allocation4 + $0xdf4] sm:$0xff]
    %v4230 = vld [vmem:[#allocation4 + $0xdfc] sm:$0xf]
    %v4231 = vpack.c.bf16 %v3707, %v3707
    %v4232 = vpack.c.bf16 %v3708, %v3708
    %v4233 = vpack.c.bf16 %v3709, %v3709
    %v4234 = vpack.c.bf16 %v3710, %v3710
    %v4235 = vpack.c.bf16 %v3711, %v3711
    %v4236 = vpack.c.bf16 %v3712, %v3712
    %v4237 = vpack.c.bf16 %v3713, %v3713
    %v4238 = vpack.c.bf16 %v3714, %v3714
    %v4239 = vld [vmem:[#allocation29] sm:$0xff]
    %v4241 = vlaneseq
    %v4242 = vshrl.u32 %v4241, 7
    %v4243 = vsub.s32 0, %v4242
    %v4244 = vrot.slane %v4239, %v4243
    %v4245 = vlaneseq
    %v4246 = vshrl.u32 %v4245, 7
    %v4247 = vsub.s32 1, %v4246
    %v4248 = vrot.slane %v4239, %v4247
    %v4249 = vlaneseq
    %v4250 = vshrl.u32 %v4249, 7
    %v4251 = vsub.s32 2, %v4250
    %v4252 = vrot.slane %v4239, %v4251
    %v4253 = vlaneseq
    %v4254 = vshrl.u32 %v4253, 7
    %v4255 = vsub.s32 3, %v4254
    %v4256 = vrot.slane %v4239, %v4255
    %v4257 = vlaneseq
    %v4258 = vshrl.u32 %v4257, 7
    %v4259 = vsub.s32 4, %v4258
    %v4260 = vrot.slane %v4239, %v4259
    %v4261 = vlaneseq
    %v4262 = vshrl.u32 %v4261, 7
    %v4263 = vsub.s32 5, %v4262
    %v4264 = vrot.slane %v4239, %v4263
    %v4265 = vlaneseq
    %v4266 = vshrl.u32 %v4265, 7
    %v4267 = vsub.s32 6, %v4266
    %v4268 = vrot.slane %v4239, %v4267
    %v4788 = vunpack.c.l.b16 %v3719
    %v4789 = vunpack.c.h.b16 %v3719
    %v4790 = vunpack.c.l.b16 %v3720
    %v4791 = vunpack.c.h.b16 %v3720
    %v4792 = vunpack.c.l.b16 %v3721
    %v4793 = vunpack.c.h.b16 %v3721
    %v4794 = vunpack.c.l.b16 %v3722
    %v4795 = vunpack.c.l.b16 %v3723
    %v4796 = vunpack.c.h.b16 %v3723
    %v4797 = vunpack.c.l.b16 %v3724
    %v4798 = vunpack.c.h.b16 %v3724
    %v4799 = vunpack.c.l.b16 %v3725
    %v4800 = vunpack.c.h.b16 %v3725
    %v4801 = vunpack.c.l.b16 %v3726
    %v4802 = vunpack.c.l.b16 %v3727
    %v4803 = vunpack.c.h.b16 %v3727
    %v4804 = vunpack.c.l.b16 %v3728
    %v4805 = vunpack.c.h.b16 %v3728
    %v4806 = vunpack.c.l.b16 %v3729
    %v4807 = vunpack.c.h.b16 %v3729
    %v4808 = vunpack.c.l.b16 %v3730
    %v4809 = vunpack.c.l.b16 %v3731
    %v4810 = vunpack.c.h.b16 %v3731
    %v4811 = vunpack.c.l.b16 %v3732
    %v4812 = vunpack.c.h.b16 %v3732
    %v4813 = vunpack.c.l.b16 %v3733
    %v4814 = vunpack.c.h.b16 %v3733
    %v4815 = vunpack.c.l.b16 %v3734
    %v4816 = vunpack.c.l.b16 %v3735
    %v4817 = vunpack.c.h.b16 %v3735
    %v4818 = vunpack.c.l.b16 %v3736
    %v4819 = vunpack.c.h.b16 %v3736
    %v4820 = vunpack.c.l.b16 %v3737
    %v4821 = vunpack.c.h.b16 %v3737
    %v4822 = vunpack.c.l.b16 %v3738
    %v4823 = vunpack.c.l.b16 %v3739
    %v4824 = vunpack.c.h.b16 %v3739
    %v4825 = vunpack.c.l.b16 %v3740
    %v4826 = vunpack.c.h.b16 %v3740
    %v4827 = vunpack.c.l.b16 %v3741
    %v4828 = vunpack.c.h.b16 %v3741
    %v4829 = vunpack.c.l.b16 %v3742
    %v4830 = vunpack.c.l.b16 %v3743
    %v4831 = vunpack.c.h.b16 %v3743
    %v4832 = vunpack.c.l.b16 %v3744
    %v4833 = vunpack.c.h.b16 %v3744
    %v4834 = vunpack.c.l.b16 %v3745
    %v4835 = vunpack.c.h.b16 %v3745
    %v4836 = vunpack.c.l.b16 %v3746
    %v4837 = vunpack.c.l.b16 %v3747
    %v4838 = vunpack.c.h.b16 %v3747
    %v4839 = vunpack.c.l.b16 %v3748
    %v4840 = vunpack.c.h.b16 %v3748
    %v4841 = vunpack.c.l.b16 %v3749
    %v4842 = vunpack.c.h.b16 %v3749
    %v4843 = vunpack.c.l.b16 %v3750
    %v4844 = vunpack.c.l.b16 %v3751
    %v4845 = vunpack.c.h.b16 %v3751
    %v4846 = vunpack.c.l.b16 %v3752
    %v4847 = vunpack.c.h.b16 %v3752
    %v4848 = vunpack.c.l.b16 %v3753
    %v4849 = vunpack.c.h.b16 %v3753
    %v4850 = vunpack.c.l.b16 %v3754
    %v4851 = vunpack.c.l.b16 %v3755
    %v4852 = vunpack.c.h.b16 %v3755
    %v4853 = vunpack.c.l.b16 %v3756
    %v4854 = vunpack.c.h.b16 %v3756
    %v4855 = vunpack.c.l.b16 %v3757
    %v4856 = vunpack.c.h.b16 %v3757
    %v4857 = vunpack.c.l.b16 %v3758
    %v4858 = vunpack.c.l.b16 %v3759
    %v4859 = vunpack.c.h.b16 %v3759
    %v4860 = vunpack.c.l.b16 %v3760
    %v4861 = vunpack.c.h.b16 %v3760
    %v4862 = vunpack.c.l.b16 %v3761
    %v4863 = vunpack.c.h.b16 %v3761
    %v4864 = vunpack.c.l.b16 %v3762
    %v4865 = vunpack.c.l.b16 %v3763
    %v4866 = vunpack.c.h.b16 %v3763
    %v4867 = vunpack.c.l.b16 %v3764
    %v4868 = vunpack.c.h.b16 %v3764
    %v4869 = vunpack.c.l.b16 %v3765
    %v4870 = vunpack.c.h.b16 %v3765
    %v4871 = vunpack.c.l.b16 %v3766
    %v4872 = vunpack.c.l.b16 %v3767
    %v4873 = vunpack.c.h.b16 %v3767
    %v4874 = vunpack.c.l.b16 %v3768
    %v4875 = vunpack.c.h.b16 %v3768
    %v4876 = vunpack.c.l.b16 %v3769
    %v4877 = vunpack.c.h.b16 %v3769
    %v4878 = vunpack.c.l.b16 %v3770
    %v4879 = vunpack.c.l.b16 %v3771
    %v4880 = vunpack.c.h.b16 %v3771
    %v4881 = vunpack.c.l.b16 %v3772
    %v4882 = vunpack.c.h.b16 %v3772
    %v4883 = vunpack.c.l.b16 %v3773
    %v4884 = vunpack.c.h.b16 %v3773
    %v4885 = vunpack.c.l.b16 %v3774
    %v4886 = vunpack.c.l.b16 %v3775
    %v4887 = vunpack.c.h.b16 %v3775
    %v4888 = vunpack.c.l.b16 %v3776
    %v4889 = vunpack.c.h.b16 %v3776
    %v4890 = vunpack.c.l.b16 %v3777
    %v4891 = vunpack.c.h.b16 %v3777
    %v4892 = vunpack.c.l.b16 %v3778
    %v4893 = vunpack.c.l.b16 %v3779
    %v4894 = vunpack.c.h.b16 %v3779
    %v4895 = vunpack.c.l.b16 %v3780
    %v4896 = vunpack.c.h.b16 %v3780
    %v4897 = vunpack.c.l.b16 %v3781
    %v4898 = vunpack.c.h.b16 %v3781
    %v4899 = vunpack.c.l.b16 %v3782
    %v4900 = vunpack.c.l.b16 %v3783
    %v4901 = vunpack.c.h.b16 %v3783
    %v4902 = vunpack.c.l.b16 %v3784
    %v4903 = vunpack.c.h.b16 %v3784
    %v4904 = vunpack.c.l.b16 %v3785
    %v4905 = vunpack.c.h.b16 %v3785
    %v4906 = vunpack.c.l.b16 %v3786
    %v4907 = vunpack.c.l.b16 %v3787
    %v4908 = vunpack.c.h.b16 %v3787
    %v4909 = vunpack.c.l.b16 %v3788
    %v4910 = vunpack.c.h.b16 %v3788
    %v4911 = vunpack.c.l.b16 %v3789
    %v4912 = vunpack.c.h.b16 %v3789
    %v4913 = vunpack.c.l.b16 %v3790
    %v4914 = vunpack.c.l.b16 %v3791
    %v4915 = vunpack.c.h.b16 %v3791
    %v4916 = vunpack.c.l.b16 %v3792
    %v4917 = vunpack.c.h.b16 %v3792
    %v4918 = vunpack.c.l.b16 %v3793
    %v4919 = vunpack.c.h.b16 %v3793
    %v4920 = vunpack.c.l.b16 %v3794
    %v4921 = vunpack.c.l.b16 %v3795
    %v4922 = vunpack.c.h.b16 %v3795
    %v4923 = vunpack.c.l.b16 %v3796
    %v4924 = vunpack.c.h.b16 %v3796
    %v4925 = vunpack.c.l.b16 %v3797
    %v4926 = vunpack.c.h.b16 %v3797
    %v4927 = vunpack.c.l.b16 %v3798
    %v4928 = vunpack.c.l.b16 %v3799
    %v4929 = vunpack.c.h.b16 %v3799
    %v4930 = vunpack.c.l.b16 %v3800
    %v4931 = vunpack.c.h.b16 %v3800
    %v4932 = vunpack.c.l.b16 %v3801
    %v4933 = vunpack.c.h.b16 %v3801
    %v4934 = vunpack.c.l.b16 %v3802
    %v4935 = vunpack.c.l.b16 %v3803
    %v4936 = vunpack.c.h.b16 %v3803
    %v4937 = vunpack.c.l.b16 %v3804
    %v4938 = vunpack.c.h.b16 %v3804
    %v4939 = vunpack.c.l.b16 %v3805
    %v4940 = vunpack.c.h.b16 %v3805
    %v4941 = vunpack.c.l.b16 %v3806
    %v4942 = vunpack.c.l.b16 %v3807
    %v4943 = vunpack.c.h.b16 %v3807
    %v4944 = vunpack.c.l.b16 %v3808
    %v4945 = vunpack.c.h.b16 %v3808
    %v4946 = vunpack.c.l.b16 %v3809
    %v4947 = vunpack.c.h.b16 %v3809
    %v4948 = vunpack.c.l.b16 %v3810
    %v4949 = vunpack.c.l.b16 %v3811
    %v4950 = vunpack.c.h.b16 %v3811
    %v4951 = vunpack.c.l.b16 %v3812
    %v4952 = vunpack.c.h.b16 %v3812
    %v4953 = vunpack.c.l.b16 %v3813
    %v4954 = vunpack.c.h.b16 %v3813
    %v4955 = vunpack.c.l.b16 %v3814
    %v4956 = vunpack.c.l.b16 %v3815
    %v4957 = vunpack.c.h.b16 %v3815
    %v4958 = vunpack.c.l.b16 %v3816
    %v4959 = vunpack.c.h.b16 %v3816
    %v4960 = vunpack.c.l.b16 %v3817
    %v4961 = vunpack.c.h.b16 %v3817
    %v4962 = vunpack.c.l.b16 %v3818
    %v4963 = vunpack.c.l.b16 %v3819
    %v4964 = vunpack.c.h.b16 %v3819
    %v4965 = vunpack.c.l.b16 %v3820
    %v4966 = vunpack.c.h.b16 %v3820
    %v4967 = vunpack.c.l.b16 %v3821
    %v4968 = vunpack.c.h.b16 %v3821
    %v4969 = vunpack.c.l.b16 %v3822
    %v4970 = vunpack.c.l.b16 %v3823
    %v4971 = vunpack.c.h.b16 %v3823
    %v4972 = vunpack.c.l.b16 %v3824
    %v4973 = vunpack.c.h.b16 %v3824
    %v4974 = vunpack.c.l.b16 %v3825
    %v4975 = vunpack.c.h.b16 %v3825
    %v4976 = vunpack.c.l.b16 %v3826
    %v4977 = vunpack.c.l.b16 %v3827
    %v4978 = vunpack.c.h.b16 %v3827
    %v4979 = vunpack.c.l.b16 %v3828
    %v4980 = vunpack.c.h.b16 %v3828
    %v4981 = vunpack.c.l.b16 %v3829
    %v4982 = vunpack.c.h.b16 %v3829
    %v4983 = vunpack.c.l.b16 %v3830
    %v4984 = vunpack.c.l.b16 %v3831
    %v4985 = vunpack.c.h.b16 %v3831
    %v4986 = vunpack.c.l.b16 %v3832
    %v4987 = vunpack.c.h.b16 %v3832
    %v4988 = vunpack.c.l.b16 %v3833
    %v4989 = vunpack.c.h.b16 %v3833
    %v4990 = vunpack.c.l.b16 %v3834
    %v4991 = vunpack.c.l.b16 %v3835
    %v4992 = vunpack.c.h.b16 %v3835
    %v4993 = vunpack.c.l.b16 %v3836
    %v4994 = vunpack.c.h.b16 %v3836
    %v4995 = vunpack.c.l.b16 %v3837
    %v4996 = vunpack.c.h.b16 %v3837
    %v4997 = vunpack.c.l.b16 %v3838
    %v4998 = vunpack.c.l.b16 %v3839
    %v4999 = vunpack.c.h.b16 %v3839
    %v5000 = vunpack.c.l.b16 %v3840
    %v5001 = vunpack.c.h.b16 %v3840
    %v5002 = vunpack.c.l.b16 %v3841
    %v5003 = vunpack.c.h.b16 %v3841
    %v5004 = vunpack.c.l.b16 %v3842
    %v5005 = vunpack.c.l.b16 %v3843
    %v5006 = vunpack.c.h.b16 %v3843
    %v5007 = vunpack.c.l.b16 %v3844
    %v5008 = vunpack.c.h.b16 %v3844
    %v5009 = vunpack.c.l.b16 %v3845
    %v5010 = vunpack.c.h.b16 %v3845
    %v5011 = vunpack.c.l.b16 %v3846
    %v5012 = vunpack.c.l.b16 %v3847
    %v5013 = vunpack.c.h.b16 %v3847
    %v5014 = vunpack.c.l.b16 %v3848
    %v5015 = vunpack.c.h.b16 %v3848
    %v5016 = vunpack.c.l.b16 %v3849
    %v5017 = vunpack.c.h.b16 %v3849
    %v5018 = vunpack.c.l.b16 %v3850
    %v5019 = vunpack.c.l.b16 %v3851
    %v5020 = vunpack.c.h.b16 %v3851
    %v5021 = vunpack.c.l.b16 %v3852
    %v5022 = vunpack.c.h.b16 %v3852
    %v5023 = vunpack.c.l.b16 %v3853
    %v5024 = vunpack.c.h.b16 %v3853
    %v5025 = vunpack.c.l.b16 %v3854
    %v5026 = vunpack.c.l.b16 %v3855
    %v5027 = vunpack.c.h.b16 %v3855
    %v5028 = vunpack.c.l.b16 %v3856
    %v5029 = vunpack.c.h.b16 %v3856
    %v5030 = vunpack.c.l.b16 %v3857
    %v5031 = vunpack.c.h.b16 %v3857
    %v5032 = vunpack.c.l.b16 %v3858
    %v5033 = vunpack.c.l.b16 %v3859
    %v5034 = vunpack.c.h.b16 %v3859
    %v5035 = vunpack.c.l.b16 %v3860
    %v5036 = vunpack.c.h.b16 %v3860
    %v5037 = vunpack.c.l.b16 %v3861
    %v5038 = vunpack.c.h.b16 %v3861
    %v5039 = vunpack.c.l.b16 %v3862
    %v5040 = vunpack.c.l.b16 %v3863
    %v5041 = vunpack.c.h.b16 %v3863
    %v5042 = vunpack.c.l.b16 %v3864
    %v5043 = vunpack.c.h.b16 %v3864
    %v5044 = vunpack.c.l.b16 %v3865
    %v5045 = vunpack.c.h.b16 %v3865
    %v5046 = vunpack.c.l.b16 %v3866
    %v5047 = vunpack.c.l.b16 %v3867
    %v5048 = vunpack.c.h.b16 %v3867
    %v5049 = vunpack.c.l.b16 %v3868
    %v5050 = vunpack.c.h.b16 %v3868
    %v5051 = vunpack.c.l.b16 %v3869
    %v5052 = vunpack.c.h.b16 %v3869
    %v5053 = vunpack.c.l.b16 %v3870
    %v5054 = vunpack.c.l.b16 %v3871
    %v5055 = vunpack.c.h.b16 %v3871
    %v5056 = vunpack.c.l.b16 %v3872
    %v5057 = vunpack.c.h.b16 %v3872
    %v5058 = vunpack.c.l.b16 %v3873
    %v5059 = vunpack.c.h.b16 %v3873
    %v5060 = vunpack.c.l.b16 %v3874
    %v5061 = vunpack.c.l.b16 %v3875
    %v5062 = vunpack.c.h.b16 %v3875
    %v5063 = vunpack.c.l.b16 %v3876
    %v5064 = vunpack.c.h.b16 %v3876
    %v5065 = vunpack.c.l.b16 %v3877
    %v5066 = vunpack.c.h.b16 %v3877
    %v5067 = vunpack.c.l.b16 %v3878
    %v5068 = vunpack.c.l.b16 %v3879
    %v5069 = vunpack.c.h.b16 %v3879
    %v5070 = vunpack.c.l.b16 %v3880
    %v5071 = vunpack.c.h.b16 %v3880
    %v5072 = vunpack.c.l.b16 %v3881
    %v5073 = vunpack.c.h.b16 %v3881
    %v5074 = vunpack.c.l.b16 %v3882
    %v5075 = vunpack.c.l.b16 %v3883
    %v5076 = vunpack.c.h.b16 %v3883
    %v5077 = vunpack.c.l.b16 %v3884
    %v5078 = vunpack.c.h.b16 %v3884
    %v5079 = vunpack.c.l.b16 %v3885
    %v5080 = vunpack.c.h.b16 %v3885
    %v5081 = vunpack.c.l.b16 %v3886
    %v5082 = vunpack.c.l.b16 %v3887
    %v5083 = vunpack.c.h.b16 %v3887
    %v5084 = vunpack.c.l.b16 %v3888
    %v5085 = vunpack.c.h.b16 %v3888
    %v5086 = vunpack.c.l.b16 %v3889
    %v5087 = vunpack.c.h.b16 %v3889
    %v5088 = vunpack.c.l.b16 %v3890
    %v5089 = vunpack.c.l.b16 %v3891
    %v5090 = vunpack.c.h.b16 %v3891
    %v5091 = vunpack.c.l.b16 %v3892
    %v5092 = vunpack.c.h.b16 %v3892
    %v5093 = vunpack.c.l.b16 %v3893
    %v5094 = vunpack.c.h.b16 %v3893
    %v5095 = vunpack.c.l.b16 %v3894
    %v5096 = vunpack.c.l.b16 %v3895
    %v5097 = vunpack.c.h.b16 %v3895
    %v5098 = vunpack.c.l.b16 %v3896
    %v5099 = vunpack.c.h.b16 %v3896
    %v5100 = vunpack.c.l.b16 %v3897
    %v5101 = vunpack.c.h.b16 %v3897
    %v5102 = vunpack.c.l.b16 %v3898
    %v5103 = vunpack.c.l.b16 %v3899
    %v5104 = vunpack.c.h.b16 %v3899
    %v5105 = vunpack.c.l.b16 %v3900
    %v5106 = vunpack.c.h.b16 %v3900
    %v5107 = vunpack.c.l.b16 %v3901
    %v5108 = vunpack.c.h.b16 %v3901
    %v5109 = vunpack.c.l.b16 %v3902
    %v5110 = vunpack.c.l.b16 %v3903
    %v5111 = vunpack.c.h.b16 %v3903
    %v5112 = vunpack.c.l.b16 %v3904
    %v5113 = vunpack.c.h.b16 %v3904
    %v5114 = vunpack.c.l.b16 %v3905
    %v5115 = vunpack.c.h.b16 %v3905
    %v5116 = vunpack.c.l.b16 %v3906
    %v5117 = vunpack.c.l.b16 %v3907
    %v5118 = vunpack.c.h.b16 %v3907
    %v5119 = vunpack.c.l.b16 %v3908
    %v5120 = vunpack.c.h.b16 %v3908
    %v5121 = vunpack.c.l.b16 %v3909
    %v5122 = vunpack.c.h.b16 %v3909
    %v5123 = vunpack.c.l.b16 %v3910
    %v5124 = vunpack.c.l.b16 %v3911
    %v5125 = vunpack.c.h.b16 %v3911
    %v5126 = vunpack.c.l.b16 %v3912
    %v5127 = vunpack.c.h.b16 %v3912
    %v5128 = vunpack.c.l.b16 %v3913
    %v5129 = vunpack.c.h.b16 %v3913
    %v5130 = vunpack.c.l.b16 %v3914
    %v5131 = vunpack.c.l.b16 %v3915
    %v5132 = vunpack.c.h.b16 %v3915
    %v5133 = vunpack.c.l.b16 %v3916
    %v5134 = vunpack.c.h.b16 %v3916
    %v5135 = vunpack.c.l.b16 %v3917
    %v5136 = vunpack.c.h.b16 %v3917
    %v5137 = vunpack.c.l.b16 %v3918
    %v5138 = vunpack.c.l.b16 %v3919
    %v5139 = vunpack.c.h.b16 %v3919
    %v5140 = vunpack.c.l.b16 %v3920
    %v5141 = vunpack.c.h.b16 %v3920
    %v5142 = vunpack.c.l.b16 %v3921
    %v5143 = vunpack.c.h.b16 %v3921
    %v5144 = vunpack.c.l.b16 %v3922
    %v5145 = vunpack.c.l.b16 %v3923
    %v5146 = vunpack.c.h.b16 %v3923
    %v5147 = vunpack.c.l.b16 %v3924
    %v5148 = vunpack.c.h.b16 %v3924
    %v5149 = vunpack.c.l.b16 %v3925
    %v5150 = vunpack.c.h.b16 %v3925
    %v5151 = vunpack.c.l.b16 %v3926
    %v5152 = vunpack.c.l.b16 %v3927
    %v5153 = vunpack.c.h.b16 %v3927
    %v5154 = vunpack.c.l.b16 %v3928
    %v5155 = vunpack.c.h.b16 %v3928
    %v5156 = vunpack.c.l.b16 %v3929
    %v5157 = vunpack.c.h.b16 %v3929
    %v5158 = vunpack.c.l.b16 %v3930
    %v5159 = vunpack.c.l.b16 %v3931
    %v5160 = vunpack.c.h.b16 %v3931
    %v5161 = vunpack.c.l.b16 %v3932
    %v5162 = vunpack.c.h.b16 %v3932
    %v5163 = vunpack.c.l.b16 %v3933
    %v5164 = vunpack.c.h.b16 %v3933
    %v5165 = vunpack.c.l.b16 %v3934
    %v5166 = vunpack.c.l.b16 %v3935
    %v5167 = vunpack.c.h.b16 %v3935
    %v5168 = vunpack.c.l.b16 %v3936
    %v5169 = vunpack.c.h.b16 %v3936
    %v5170 = vunpack.c.l.b16 %v3937
    %v5171 = vunpack.c.h.b16 %v3937
    %v5172 = vunpack.c.l.b16 %v3938
    %v5173 = vunpack.c.l.b16 %v3939
    %v5174 = vunpack.c.h.b16 %v3939
    %v5175 = vunpack.c.l.b16 %v3940
    %v5176 = vunpack.c.h.b16 %v3940
    %v5177 = vunpack.c.l.b16 %v3941
    %v5178 = vunpack.c.h.b16 %v3941
    %v5179 = vunpack.c.l.b16 %v3942
    %v5180 = vunpack.c.l.b16 %v3943
    %v5181 = vunpack.c.h.b16 %v3943
    %v5182 = vunpack.c.l.b16 %v3944
    %v5183 = vunpack.c.h.b16 %v3944
    %v5184 = vunpack.c.l.b16 %v3945
    %v5185 = vunpack.c.h.b16 %v3945
    %v5186 = vunpack.c.l.b16 %v3946
    %v5187 = vunpack.c.l.b16 %v3947
    %v5188 = vunpack.c.h.b16 %v3947
    %v5189 = vunpack.c.l.b16 %v3948
    %v5190 = vunpack.c.h.b16 %v3948
    %v5191 = vunpack.c.l.b16 %v3949
    %v5192 = vunpack.c.h.b16 %v3949
    %v5193 = vunpack.c.l.b16 %v3950
    %v5194 = vunpack.c.l.b16 %v3951
    %v5195 = vunpack.c.h.b16 %v3951
    %v5196 = vunpack.c.l.b16 %v3952
    %v5197 = vunpack.c.h.b16 %v3952
    %v5198 = vunpack.c.l.b16 %v3953
    %v5199 = vunpack.c.h.b16 %v3953
    %v5200 = vunpack.c.l.b16 %v3954
    %v5201 = vunpack.c.l.b16 %v3955
    %v5202 = vunpack.c.h.b16 %v3955
    %v5203 = vunpack.c.l.b16 %v3956
    %v5204 = vunpack.c.h.b16 %v3956
    %v5205 = vunpack.c.l.b16 %v3957
    %v5206 = vunpack.c.h.b16 %v3957
    %v5207 = vunpack.c.l.b16 %v3958
    %v5208 = vunpack.c.l.b16 %v3959
    %v5209 = vunpack.c.h.b16 %v3959
    %v5210 = vunpack.c.l.b16 %v3960
    %v5211 = vunpack.c.h.b16 %v3960
    %v5212 = vunpack.c.l.b16 %v3961
    %v5213 = vunpack.c.h.b16 %v3961
    %v5214 = vunpack.c.l.b16 %v3962
    %v5215 = vunpack.c.l.b16 %v3963
    %v5216 = vunpack.c.h.b16 %v3963
    %v5217 = vunpack.c.l.b16 %v3964
    %v5218 = vunpack.c.h.b16 %v3964
    %v5219 = vunpack.c.l.b16 %v3965
    %v5220 = vunpack.c.h.b16 %v3965
    %v5221 = vunpack.c.l.b16 %v3966
    %v5222 = vunpack.c.l.b16 %v3967
    %v5223 = vunpack.c.h.b16 %v3967
    %v5224 = vunpack.c.l.b16 %v3968
    %v5225 = vunpack.c.h.b16 %v3968
    %v5226 = vunpack.c.l.b16 %v3969
    %v5227 = vunpack.c.h.b16 %v3969
    %v5228 = vunpack.c.l.b16 %v3970
    %v5229 = vunpack.c.l.b16 %v3971
    %v5230 = vunpack.c.h.b16 %v3971
    %v5231 = vunpack.c.l.b16 %v3972
    %v5232 = vunpack.c.h.b16 %v3972
    %v5233 = vunpack.c.l.b16 %v3973
    %v5234 = vunpack.c.h.b16 %v3973
    %v5235 = vunpack.c.l.b16 %v3974
    %v5236 = vunpack.c.l.b16 %v3975
    %v5237 = vunpack.c.h.b16 %v3975
    %v5238 = vunpack.c.l.b16 %v3976
    %v5239 = vunpack.c.h.b16 %v3976
    %v5240 = vunpack.c.l.b16 %v3977
    %v5241 = vunpack.c.h.b16 %v3977
    %v5242 = vunpack.c.l.b16 %v3978
    %v5243 = vunpack.c.l.b16 %v3979
    %v5244 = vunpack.c.h.b16 %v3979
    %v5245 = vunpack.c.l.b16 %v3980
    %v5246 = vunpack.c.h.b16 %v3980
    %v5247 = vunpack.c.l.b16 %v3981
    %v5248 = vunpack.c.h.b16 %v3981
    %v5249 = vunpack.c.l.b16 %v3982
    %v5250 = vunpack.c.l.b16 %v3983
    %v5251 = vunpack.c.h.b16 %v3983
    %v5252 = vunpack.c.l.b16 %v3984
    %v5253 = vunpack.c.h.b16 %v3984
    %v5254 = vunpack.c.l.b16 %v3985
    %v5255 = vunpack.c.h.b16 %v3985
    %v5256 = vunpack.c.l.b16 %v3986
    %v5257 = vunpack.c.l.b16 %v3987
    %v5258 = vunpack.c.h.b16 %v3987
    %v5259 = vunpack.c.l.b16 %v3988
    %v5260 = vunpack.c.h.b16 %v3988
    %v5261 = vunpack.c.l.b16 %v3989
    %v5262 = vunpack.c.h.b16 %v3989
    %v5263 = vunpack.c.l.b16 %v3990
    %v5264 = vunpack.c.l.b16 %v3991
    %v5265 = vunpack.c.h.b16 %v3991
    %v5266 = vunpack.c.l.b16 %v3992
    %v5267 = vunpack.c.h.b16 %v3992
    %v5268 = vunpack.c.l.b16 %v3993
    %v5269 = vunpack.c.h.b16 %v3993
    %v5270 = vunpack.c.l.b16 %v3994
    %v5271 = vunpack.c.l.b16 %v3995
    %v5272 = vunpack.c.h.b16 %v3995
    %v5273 = vunpack.c.l.b16 %v3996
    %v5274 = vunpack.c.h.b16 %v3996
    %v5275 = vunpack.c.l.b16 %v3997
    %v5276 = vunpack.c.h.b16 %v3997
    %v5277 = vunpack.c.l.b16 %v3998
    %v5278 = vunpack.c.l.b16 %v3999
    %v5279 = vunpack.c.h.b16 %v3999
    %v5280 = vunpack.c.l.b16 %v4000
    %v5281 = vunpack.c.h.b16 %v4000
    %v5282 = vunpack.c.l.b16 %v4001
    %v5283 = vunpack.c.h.b16 %v4001
    %v5284 = vunpack.c.l.b16 %v4002
    %v5285 = vunpack.c.l.b16 %v4003
    %v5286 = vunpack.c.h.b16 %v4003
    %v5287 = vunpack.c.l.b16 %v4004
    %v5288 = vunpack.c.h.b16 %v4004
    %v5289 = vunpack.c.l.b16 %v4005
    %v5290 = vunpack.c.h.b16 %v4005
    %v5291 = vunpack.c.l.b16 %v4006
    %v5292 = vunpack.c.l.b16 %v4007
    %v5293 = vunpack.c.h.b16 %v4007
    %v5294 = vunpack.c.l.b16 %v4008
    %v5295 = vunpack.c.h.b16 %v4008
    %v5296 = vunpack.c.l.b16 %v4009
    %v5297 = vunpack.c.h.b16 %v4009
    %v5298 = vunpack.c.l.b16 %v4010
    %v5299 = vunpack.c.l.b16 %v4011
    %v5300 = vunpack.c.h.b16 %v4011
    %v5301 = vunpack.c.l.b16 %v4012
    %v5302 = vunpack.c.h.b16 %v4012
    %v5303 = vunpack.c.l.b16 %v4013
    %v5304 = vunpack.c.h.b16 %v4013
    %v5305 = vunpack.c.l.b16 %v4014
    %v5306 = vunpack.c.l.b16 %v4015
    %v5307 = vunpack.c.h.b16 %v4015
    %v5308 = vunpack.c.l.b16 %v4016
    %v5309 = vunpack.c.h.b16 %v4016
    %v5310 = vunpack.c.l.b16 %v4017
    %v5311 = vunpack.c.h.b16 %v4017
    %v5312 = vunpack.c.l.b16 %v4018
    %v5313 = vunpack.c.l.b16 %v4019
    %v5314 = vunpack.c.h.b16 %v4019
    %v5315 = vunpack.c.l.b16 %v4020
    %v5316 = vunpack.c.h.b16 %v4020
    %v5317 = vunpack.c.l.b16 %v4021
    %v5318 = vunpack.c.h.b16 %v4021
    %v5319 = vunpack.c.l.b16 %v4022
    %v5320 = vunpack.c.l.b16 %v4023
    %v5321 = vunpack.c.h.b16 %v4023
    %v5322 = vunpack.c.l.b16 %v4024
    %v5323 = vunpack.c.h.b16 %v4024
    %v5324 = vunpack.c.l.b16 %v4025
    %v5325 = vunpack.c.h.b16 %v4025
    %v5326 = vunpack.c.l.b16 %v4026
    %v5327 = vunpack.c.l.b16 %v4027
    %v5328 = vunpack.c.h.b16 %v4027
    %v5329 = vunpack.c.l.b16 %v4028
    %v5330 = vunpack.c.h.b16 %v4028
    %v5331 = vunpack.c.l.b16 %v4029
    %v5332 = vunpack.c.h.b16 %v4029
    %v5333 = vunpack.c.l.b16 %v4030
    %v5334 = vunpack.c.l.b16 %v4031
    %v5335 = vunpack.c.h.b16 %v4031
    %v5336 = vunpack.c.l.b16 %v4032
    %v5337 = vunpack.c.h.b16 %v4032
    %v5338 = vunpack.c.l.b16 %v4033
    %v5339 = vunpack.c.h.b16 %v4033
    %v5340 = vunpack.c.l.b16 %v4034
    %v5341 = vunpack.c.l.b16 %v4035
    %v5342 = vunpack.c.h.b16 %v4035
    %v5343 = vunpack.c.l.b16 %v4036
    %v5344 = vunpack.c.h.b16 %v4036
    %v5345 = vunpack.c.l.b16 %v4037
    %v5346 = vunpack.c.h.b16 %v4037
    %v5347 = vunpack.c.l.b16 %v4038
    %v5348 = vunpack.c.l.b16 %v4039
    %v5349 = vunpack.c.h.b16 %v4039
    %v5350 = vunpack.c.l.b16 %v4040
    %v5351 = vunpack.c.h.b16 %v4040
    %v5352 = vunpack.c.l.b16 %v4041
    %v5353 = vunpack.c.h.b16 %v4041
    %v5354 = vunpack.c.l.b16 %v4042
    %v5355 = vunpack.c.l.b16 %v4043
    %v5356 = vunpack.c.h.b16 %v4043
    %v5357 = vunpack.c.l.b16 %v4044
    %v5358 = vunpack.c.h.b16 %v4044
    %v5359 = vunpack.c.l.b16 %v4045
    %v5360 = vunpack.c.h.b16 %v4045
    %v5361 = vunpack.c.l.b16 %v4046
    %v5362 = vunpack.c.l.b16 %v4047
    %v5363 = vunpack.c.h.b16 %v4047
    %v5364 = vunpack.c.l.b16 %v4048
    %v5365 = vunpack.c.h.b16 %v4048
    %v5366 = vunpack.c.l.b16 %v4049
    %v5367 = vunpack.c.h.b16 %v4049
    %v5368 = vunpack.c.l.b16 %v4050
    %v5369 = vunpack.c.l.b16 %v4051
    %v5370 = vunpack.c.h.b16 %v4051
    %v5371 = vunpack.c.l.b16 %v4052
    %v5372 = vunpack.c.h.b16 %v4052
    %v5373 = vunpack.c.l.b16 %v4053
    %v5374 = vunpack.c.h.b16 %v4053
    %v5375 = vunpack.c.l.b16 %v4054
    %v5376 = vunpack.c.l.b16 %v4055
    %v5377 = vunpack.c.h.b16 %v4055
    %v5378 = vunpack.c.l.b16 %v4056
    %v5379 = vunpack.c.h.b16 %v4056
    %v5380 = vunpack.c.l.b16 %v4057
    %v5381 = vunpack.c.h.b16 %v4057
    %v5382 = vunpack.c.l.b16 %v4058
    %v5383 = vunpack.c.l.b16 %v4059
    %v5384 = vunpack.c.h.b16 %v4059
    %v5385 = vunpack.c.l.b16 %v4060
    %v5386 = vunpack.c.h.b16 %v4060
    %v5387 = vunpack.c.l.b16 %v4061
    %v5388 = vunpack.c.h.b16 %v4061
    %v5389 = vunpack.c.l.b16 %v4062
    %v5390 = vunpack.c.l.b16 %v4063
    %v5391 = vunpack.c.h.b16 %v4063
    %v5392 = vunpack.c.l.b16 %v4064
    %v5393 = vunpack.c.h.b16 %v4064
    %v5394 = vunpack.c.l.b16 %v4065
    %v5395 = vunpack.c.h.b16 %v4065
    %v5396 = vunpack.c.l.b16 %v4066
    %v5397 = vunpack.c.l.b16 %v4067
    %v5398 = vunpack.c.h.b16 %v4067
    %v5399 = vunpack.c.l.b16 %v4068
    %v5400 = vunpack.c.h.b16 %v4068
    %v5401 = vunpack.c.l.b16 %v4069
    %v5402 = vunpack.c.h.b16 %v4069
    %v5403 = vunpack.c.l.b16 %v4070
    %v5404 = vunpack.c.l.b16 %v4071
    %v5405 = vunpack.c.h.b16 %v4071
    %v5406 = vunpack.c.l.b16 %v4072
    %v5407 = vunpack.c.h.b16 %v4072
    %v5408 = vunpack.c.l.b16 %v4073
    %v5409 = vunpack.c.h.b16 %v4073
    %v5410 = vunpack.c.l.b16 %v4074
    %v5411 = vunpack.c.l.b16 %v4075
    %v5412 = vunpack.c.h.b16 %v4075
    %v5413 = vunpack.c.l.b16 %v4076
    %v5414 = vunpack.c.h.b16 %v4076
    %v5415 = vunpack.c.l.b16 %v4077
    %v5416 = vunpack.c.h.b16 %v4077
    %v5417 = vunpack.c.l.b16 %v4078
    %v5418 = vunpack.c.l.b16 %v4079
    %v5419 = vunpack.c.h.b16 %v4079
    %v5420 = vunpack.c.l.b16 %v4080
    %v5421 = vunpack.c.h.b16 %v4080
    %v5422 = vunpack.c.l.b16 %v4081
    %v5423 = vunpack.c.h.b16 %v4081
    %v5424 = vunpack.c.l.b16 %v4082
    %v5425 = vunpack.c.l.b16 %v4083
    %v5426 = vunpack.c.h.b16 %v4083
    %v5427 = vunpack.c.l.b16 %v4084
    %v5428 = vunpack.c.h.b16 %v4084
    %v5429 = vunpack.c.l.b16 %v4085
    %v5430 = vunpack.c.h.b16 %v4085
    %v5431 = vunpack.c.l.b16 %v4086
    %v5432 = vunpack.c.l.b16 %v4087
    %v5433 = vunpack.c.h.b16 %v4087
    %v5434 = vunpack.c.l.b16 %v4088
    %v5435 = vunpack.c.h.b16 %v4088
    %v5436 = vunpack.c.l.b16 %v4089
    %v5437 = vunpack.c.h.b16 %v4089
    %v5438 = vunpack.c.l.b16 %v4090
    %v5439 = vunpack.c.l.b16 %v4091
    %v5440 = vunpack.c.h.b16 %v4091
    %v5441 = vunpack.c.l.b16 %v4092
    %v5442 = vunpack.c.h.b16 %v4092
    %v5443 = vunpack.c.l.b16 %v4093
    %v5444 = vunpack.c.h.b16 %v4093
    %v5445 = vunpack.c.l.b16 %v4094
    %v5446 = vunpack.c.l.b16 %v4095
    %v5447 = vunpack.c.h.b16 %v4095
    %v5448 = vunpack.c.l.b16 %v4096
    %v5449 = vunpack.c.h.b16 %v4096
    %v5450 = vunpack.c.l.b16 %v4097
    %v5451 = vunpack.c.h.b16 %v4097
    %v5452 = vunpack.c.l.b16 %v4098
    %v5453 = vunpack.c.l.b16 %v4099
    %v5454 = vunpack.c.h.b16 %v4099
    %v5455 = vunpack.c.l.b16 %v4100
    %v5456 = vunpack.c.h.b16 %v4100
    %v5457 = vunpack.c.l.b16 %v4101
    %v5458 = vunpack.c.h.b16 %v4101
    %v5459 = vunpack.c.l.b16 %v4102
    %v5460 = vunpack.c.l.b16 %v4103
    %v5461 = vunpack.c.h.b16 %v4103
    %v5462 = vunpack.c.l.b16 %v4104
    %v5463 = vunpack.c.h.b16 %v4104
    %v5464 = vunpack.c.l.b16 %v4105
    %v5465 = vunpack.c.h.b16 %v4105
    %v5466 = vunpack.c.l.b16 %v4106
    %v5467 = vunpack.c.l.b16 %v4107
    %v5468 = vunpack.c.h.b16 %v4107
    %v5469 = vunpack.c.l.b16 %v4108
    %v5470 = vunpack.c.h.b16 %v4108
    %v5471 = vunpack.c.l.b16 %v4109
    %v5472 = vunpack.c.h.b16 %v4109
    %v5473 = vunpack.c.l.b16 %v4110
    %v5474 = vunpack.c.l.b16 %v4111
    %v5475 = vunpack.c.h.b16 %v4111
    %v5476 = vunpack.c.l.b16 %v4112
    %v5477 = vunpack.c.h.b16 %v4112
    %v5478 = vunpack.c.l.b16 %v4113
    %v5479 = vunpack.c.h.b16 %v4113
    %v5480 = vunpack.c.l.b16 %v4114
    %v5481 = vunpack.c.l.b16 %v4115
    %v5482 = vunpack.c.h.b16 %v4115
    %v5483 = vunpack.c.l.b16 %v4116
    %v5484 = vunpack.c.h.b16 %v4116
    %v5485 = vunpack.c.l.b16 %v4117
    %v5486 = vunpack.c.h.b16 %v4117
    %v5487 = vunpack.c.l.b16 %v4118
    %v5488 = vunpack.c.l.b16 %v4119
    %v5489 = vunpack.c.h.b16 %v4119
    %v5490 = vunpack.c.l.b16 %v4120
    %v5491 = vunpack.c.h.b16 %v4120
    %v5492 = vunpack.c.l.b16 %v4121
    %v5493 = vunpack.c.h.b16 %v4121
    %v5494 = vunpack.c.l.b16 %v4122
    %v5495 = vunpack.c.l.b16 %v4123
    %v5496 = vunpack.c.h.b16 %v4123
    %v5497 = vunpack.c.l.b16 %v4124
    %v5498 = vunpack.c.h.b16 %v4124
    %v5499 = vunpack.c.l.b16 %v4125
    %v5500 = vunpack.c.h.b16 %v4125
    %v5501 = vunpack.c.l.b16 %v4126
    %v5502 = vunpack.c.l.b16 %v4127
    %v5503 = vunpack.c.h.b16 %v4127
    %v5504 = vunpack.c.l.b16 %v4128
    %v5505 = vunpack.c.h.b16 %v4128
    %v5506 = vunpack.c.l.b16 %v4129
    %v5507 = vunpack.c.h.b16 %v4129
    %v5508 = vunpack.c.l.b16 %v4130
    %v5509 = vunpack.c.l.b16 %v4131
    %v5510 = vunpack.c.h.b16 %v4131
    %v5511 = vunpack.c.l.b16 %v4132
    %v5512 = vunpack.c.h.b16 %v4132
    %v5513 = vunpack.c.l.b16 %v4133
    %v5514 = vunpack.c.h.b16 %v4133
    %v5515 = vunpack.c.l.b16 %v4134
    %v5516 = vunpack.c.l.b16 %v4135
    %v5517 = vunpack.c.h.b16 %v4135
    %v5518 = vunpack.c.l.b16 %v4136
    %v5519 = vunpack.c.h.b16 %v4136
    %v5520 = vunpack.c.l.b16 %v4137
    %v5521 = vunpack.c.h.b16 %v4137
    %v5522 = vunpack.c.l.b16 %v4138
    %v5523 = vunpack.c.l.b16 %v4139
    %v5524 = vunpack.c.h.b16 %v4139
    %v5525 = vunpack.c.l.b16 %v4140
    %v5526 = vunpack.c.h.b16 %v4140
    %v5527 = vunpack.c.l.b16 %v4141
    %v5528 = vunpack.c.h.b16 %v4141
    %v5529 = vunpack.c.l.b16 %v4142
    %v5530 = vunpack.c.l.b16 %v4143
    %v5531 = vunpack.c.h.b16 %v4143
    %v5532 = vunpack.c.l.b16 %v4144
    %v5533 = vunpack.c.h.b16 %v4144
    %v5534 = vunpack.c.l.b16 %v4145
    %v5535 = vunpack.c.h.b16 %v4145
    %v5536 = vunpack.c.l.b16 %v4146
    %v5537 = vunpack.c.l.b16 %v4147
    %v5538 = vunpack.c.h.b16 %v4147
    %v5539 = vunpack.c.l.b16 %v4148
    %v5540 = vunpack.c.h.b16 %v4148
    %v5541 = vunpack.c.l.b16 %v4149
    %v5542 = vunpack.c.h.b16 %v4149
    %v5543 = vunpack.c.l.b16 %v4150
    %v5544 = vunpack.c.l.b16 %v4151
    %v5545 = vunpack.c.h.b16 %v4151
    %v5546 = vunpack.c.l.b16 %v4152
    %v5547 = vunpack.c.h.b16 %v4152
    %v5548 = vunpack.c.l.b16 %v4153
    %v5549 = vunpack.c.h.b16 %v4153
    %v5550 = vunpack.c.l.b16 %v4154
    %v5551 = vunpack.c.l.b16 %v4155
    %v5552 = vunpack.c.h.b16 %v4155
    %v5553 = vunpack.c.l.b16 %v4156
    %v5554 = vunpack.c.h.b16 %v4156
    %v5555 = vunpack.c.l.b16 %v4157
    %v5556 = vunpack.c.h.b16 %v4157
    %v5557 = vunpack.c.l.b16 %v4158
    %v5558 = vunpack.c.l.b16 %v4159
    %v5559 = vunpack.c.h.b16 %v4159
    %v5560 = vunpack.c.l.b16 %v4160
    %v5561 = vunpack.c.h.b16 %v4160
    %v5562 = vunpack.c.l.b16 %v4161
    %v5563 = vunpack.c.h.b16 %v4161
    %v5564 = vunpack.c.l.b16 %v4162
    %v5565 = vunpack.c.l.b16 %v4163
    %v5566 = vunpack.c.h.b16 %v4163
    %v5567 = vunpack.c.l.b16 %v4164
    %v5568 = vunpack.c.h.b16 %v4164
    %v5569 = vunpack.c.l.b16 %v4165
    %v5570 = vunpack.c.h.b16 %v4165
    %v5571 = vunpack.c.l.b16 %v4166
    %v5572 = vunpack.c.l.b16 %v4167
    %v5573 = vunpack.c.h.b16 %v4167
    %v5574 = vunpack.c.l.b16 %v4168
    %v5575 = vunpack.c.h.b16 %v4168
    %v5576 = vunpack.c.l.b16 %v4169
    %v5577 = vunpack.c.h.b16 %v4169
    %v5578 = vunpack.c.l.b16 %v4170
    %v5579 = vunpack.c.l.b16 %v4171
    %v5580 = vunpack.c.h.b16 %v4171
    %v5581 = vunpack.c.l.b16 %v4172
    %v5582 = vunpack.c.h.b16 %v4172
    %v5583 = vunpack.c.l.b16 %v4173
    %v5584 = vunpack.c.h.b16 %v4173
    %v5585 = vunpack.c.l.b16 %v4174
    %v5586 = vunpack.c.l.b16 %v4175
    %v5587 = vunpack.c.h.b16 %v4175
    %v5588 = vunpack.c.l.b16 %v4176
    %v5589 = vunpack.c.h.b16 %v4176
    %v5590 = vunpack.c.l.b16 %v4177
    %v5591 = vunpack.c.h.b16 %v4177
    %v5592 = vunpack.c.l.b16 %v4178
    %v5593 = vunpack.c.l.b16 %v4179
    %v5594 = vunpack.c.h.b16 %v4179
    %v5595 = vunpack.c.l.b16 %v4180
    %v5596 = vunpack.c.h.b16 %v4180
    %v5597 = vunpack.c.l.b16 %v4181
    %v5598 = vunpack.c.h.b16 %v4181
    %v5599 = vunpack.c.l.b16 %v4182
    %v5600 = vunpack.c.l.b16 %v4183
    %v5601 = vunpack.c.h.b16 %v4183
    %v5602 = vunpack.c.l.b16 %v4184
    %v5603 = vunpack.c.h.b16 %v4184
    %v5604 = vunpack.c.l.b16 %v4185
    %v5605 = vunpack.c.h.b16 %v4185
    %v5606 = vunpack.c.l.b16 %v4186
    %v5607 = vunpack.c.l.b16 %v4187
    %v5608 = vunpack.c.h.b16 %v4187
    %v5609 = vunpack.c.l.b16 %v4188
    %v5610 = vunpack.c.h.b16 %v4188
    %v5611 = vunpack.c.l.b16 %v4189
    %v5612 = vunpack.c.h.b16 %v4189
    %v5613 = vunpack.c.l.b16 %v4190
    %v5614 = vunpack.c.l.b16 %v4191
    %v5615 = vunpack.c.h.b16 %v4191
    %v5616 = vunpack.c.l.b16 %v4192
    %v5617 = vunpack.c.h.b16 %v4192
    %v5618 = vunpack.c.l.b16 %v4193
    %v5619 = vunpack.c.h.b16 %v4193
    %v5620 = vunpack.c.l.b16 %v4194
    %v5621 = vunpack.c.l.b16 %v4195
    %v5622 = vunpack.c.h.b16 %v4195
    %v5623 = vunpack.c.l.b16 %v4196
    %v5624 = vunpack.c.h.b16 %v4196
    %v5625 = vunpack.c.l.b16 %v4197
    %v5626 = vunpack.c.h.b16 %v4197
    %v5627 = vunpack.c.l.b16 %v4198
    %v5628 = vunpack.c.l.b16 %v4199
    %v5629 = vunpack.c.h.b16 %v4199
    %v5630 = vunpack.c.l.b16 %v4200
    %v5631 = vunpack.c.h.b16 %v4200
    %v5632 = vunpack.c.l.b16 %v4201
    %v5633 = vunpack.c.h.b16 %v4201
    %v5634 = vunpack.c.l.b16 %v4202
    %v5635 = vunpack.c.l.b16 %v4203
    %v5636 = vunpack.c.h.b16 %v4203
    %v5637 = vunpack.c.l.b16 %v4204
    %v5638 = vunpack.c.h.b16 %v4204
    %v5639 = vunpack.c.l.b16 %v4205
    %v5640 = vunpack.c.h.b16 %v4205
    %v5641 = vunpack.c.l.b16 %v4206
    %v5642 = vunpack.c.l.b16 %v4207
    %v5643 = vunpack.c.h.b16 %v4207
    %v5644 = vunpack.c.l.b16 %v4208
    %v5645 = vunpack.c.h.b16 %v4208
    %v5646 = vunpack.c.l.b16 %v4209
    %v5647 = vunpack.c.h.b16 %v4209
    %v5648 = vunpack.c.l.b16 %v4210
    %v5649 = vunpack.c.l.b16 %v4211
    %v5650 = vunpack.c.h.b16 %v4211
    %v5651 = vunpack.c.l.b16 %v4212
    %v5652 = vunpack.c.h.b16 %v4212
    %v5653 = vunpack.c.l.b16 %v4213
    %v5654 = vunpack.c.h.b16 %v4213
    %v5655 = vunpack.c.l.b16 %v4214
    %v5656 = vunpack.c.l.b16 %v4215
    %v5657 = vunpack.c.h.b16 %v4215
    %v5658 = vunpack.c.l.b16 %v4216
    %v5659 = vunpack.c.h.b16 %v4216
    %v5660 = vunpack.c.l.b16 %v4217
    %v5661 = vunpack.c.h.b16 %v4217
    %v5662 = vunpack.c.l.b16 %v4218
    %v5663 = vunpack.c.l.b16 %v4219
    %v5664 = vunpack.c.h.b16 %v4219
    %v5665 = vunpack.c.l.b16 %v4220
    %v5666 = vunpack.c.h.b16 %v4220
    %v5667 = vunpack.c.l.b16 %v4221
    %v5668 = vunpack.c.h.b16 %v4221
    %v5669 = vunpack.c.l.b16 %v4222
    %v5670 = vunpack.c.l.b16 %v4223
    %v5671 = vunpack.c.h.b16 %v4223
    %v5672 = vunpack.c.l.b16 %v4224
    %v5673 = vunpack.c.h.b16 %v4224
    %v5674 = vunpack.c.l.b16 %v4225
    %v5675 = vunpack.c.h.b16 %v4225
    %v5676 = vunpack.c.l.b16 %v4226
    %v5677 = vunpack.c.l.b16 %v4227
    %v5678 = vunpack.c.h.b16 %v4227
    %v5679 = vunpack.c.l.b16 %v4228
    %v5680 = vunpack.c.h.b16 %v4228
    %v5681 = vunpack.c.l.b16 %v4229
    %v5682 = vunpack.c.h.b16 %v4229
    %v5683 = vunpack.c.l.b16 %v4230
    %v5684 = vpack.c.b16 %v4795, %v4788
    %v5685 = vpack.c.b16 %v4796, %v4789
    %v5686 = vpack.c.b16 %v4797, %v4790
    %v5687 = vpack.c.b16 %v4798, %v4791
    %v5688 = vpack.c.b16 %v4799, %v4792
    %v5689 = vpack.c.b16 %v4800, %v4793
    %v5690 = vpack.c.b16 %v4801, %v4794
    %v5691 = vpack.c.b16 %v4809, %v4802
    %v5692 = vpack.c.b16 %v4810, %v4803
    %v5693 = vpack.c.b16 %v4811, %v4804
    %v5694 = vpack.c.b16 %v4812, %v4805
    %v5695 = vpack.c.b16 %v4813, %v4806
    %v5696 = vpack.c.b16 %v4814, %v4807
    %v5697 = vpack.c.b16 %v4815, %v4808
    %v5698 = vpack.c.b16 %v4823, %v4816
    %v5699 = vpack.c.b16 %v4824, %v4817
    %v5700 = vpack.c.b16 %v4825, %v4818
    %v5701 = vpack.c.b16 %v4826, %v4819
    %v5702 = vpack.c.b16 %v4827, %v4820
    %v5703 = vpack.c.b16 %v4828, %v4821
    %v5704 = vpack.c.b16 %v4829, %v4822
    %v5705 = vpack.c.b16 %v4837, %v4830
    %v5706 = vpack.c.b16 %v4838, %v4831
    %v5707 = vpack.c.b16 %v4839, %v4832
    %v5708 = vpack.c.b16 %v4840, %v4833
    %v5709 = vpack.c.b16 %v4841, %v4834
    %v5710 = vpack.c.b16 %v4842, %v4835
    %v5711 = vpack.c.b16 %v4843, %v4836
    %v5712 = vpack.c.b16 %v4851, %v4844
    %v5713 = vpack.c.b16 %v4852, %v4845
    %v5714 = vpack.c.b16 %v4853, %v4846
    %v5715 = vpack.c.b16 %v4854, %v4847
    %v5716 = vpack.c.b16 %v4855, %v4848
    %v5717 = vpack.c.b16 %v4856, %v4849
    %v5718 = vpack.c.b16 %v4857, %v4850
    %v5719 = vpack.c.b16 %v4865, %v4858
    %v5720 = vpack.c.b16 %v4866, %v4859
    %v5721 = vpack.c.b16 %v4867, %v4860
    %v5722 = vpack.c.b16 %v4868, %v4861
    %v5723 = vpack.c.b16 %v4869, %v4862
    %v5724 = vpack.c.b16 %v4870, %v4863
    %v5725 = vpack.c.b16 %v4871, %v4864
    %v5726 = vpack.c.b16 %v4879, %v4872
    %v5727 = vpack.c.b16 %v4880, %v4873
    %v5728 = vpack.c.b16 %v4881, %v4874
    %v5729 = vpack.c.b16 %v4882, %v4875
    %v5730 = vpack.c.b16 %v4883, %v4876
    %v5731 = vpack.c.b16 %v4884, %v4877
    %v5732 = vpack.c.b16 %v4885, %v4878
    %v5733 = vpack.c.b16 %v4893, %v4886
    %v5734 = vpack.c.b16 %v4894, %v4887
    %v5735 = vpack.c.b16 %v4895, %v4888
    %v5736 = vpack.c.b16 %v4896, %v4889
    %v5737 = vpack.c.b16 %v4897, %v4890
    %v5738 = vpack.c.b16 %v4898, %v4891
    %v5739 = vpack.c.b16 %v4899, %v4892
    %v5740 = vpack.c.b16 %v4907, %v4900
    %v5741 = vpack.c.b16 %v4908, %v4901
    %v5742 = vpack.c.b16 %v4909, %v4902
    %v5743 = vpack.c.b16 %v4910, %v4903
    %v5744 = vpack.c.b16 %v4911, %v4904
    %v5745 = vpack.c.b16 %v4912, %v4905
    %v5746 = vpack.c.b16 %v4913, %v4906
    %v5747 = vpack.c.b16 %v4921, %v4914
    %v5748 = vpack.c.b16 %v4922, %v4915
    %v5749 = vpack.c.b16 %v4923, %v4916
    %v5750 = vpack.c.b16 %v4924, %v4917
    %v5751 = vpack.c.b16 %v4925, %v4918
    %v5752 = vpack.c.b16 %v4926, %v4919
    %v5753 = vpack.c.b16 %v4927, %v4920
    %v5754 = vpack.c.b16 %v4935, %v4928
    %v5755 = vpack.c.b16 %v4936, %v4929
    %v5756 = vpack.c.b16 %v4937, %v4930
    %v5757 = vpack.c.b16 %v4938, %v4931
    %v5758 = vpack.c.b16 %v4939, %v4932
    %v5759 = vpack.c.b16 %v4940, %v4933
    %v5760 = vpack.c.b16 %v4941, %v4934
    %v5761 = vpack.c.b16 %v4949, %v4942
    %v5762 = vpack.c.b16 %v4950, %v4943
    %v5763 = vpack.c.b16 %v4951, %v4944
    %v5764 = vpack.c.b16 %v4952, %v4945
    %v5765 = vpack.c.b16 %v4953, %v4946
    %v5766 = vpack.c.b16 %v4954, %v4947
    %v5767 = vpack.c.b16 %v4955, %v4948
    %v5768 = vpack.c.b16 %v4963, %v4956
    %v5769 = vpack.c.b16 %v4964, %v4957
    %v5770 = vpack.c.b16 %v4965, %v4958
    %v5771 = vpack.c.b16 %v4966, %v4959
    %v5772 = vpack.c.b16 %v4967, %v4960
    %v5773 = vpack.c.b16 %v4968, %v4961
    %v5774 = vpack.c.b16 %v4969, %v4962
    %v5775 = vpack.c.b16 %v4977, %v4970
    %v5776 = vpack.c.b16 %v4978, %v4971
    %v5777 = vpack.c.b16 %v4979, %v4972
    %v5778 = vpack.c.b16 %v4980, %v4973
    %v5779 = vpack.c.b16 %v4981, %v4974
    %v5780 = vpack.c.b16 %v4982, %v4975
    %v5781 = vpack.c.b16 %v4983, %v4976
    %v5782 = vpack.c.b16 %v4991, %v4984
    %v5783 = vpack.c.b16 %v4992, %v4985
    %v5784 = vpack.c.b16 %v4993, %v4986
    %v5785 = vpack.c.b16 %v4994, %v4987
    %v5786 = vpack.c.b16 %v4995, %v4988
    %v5787 = vpack.c.b16 %v4996, %v4989
    %v5788 = vpack.c.b16 %v4997, %v4990
    %v5789 = vpack.c.b16 %v5005, %v4998
    %v5790 = vpack.c.b16 %v5006, %v4999
    %v5791 = vpack.c.b16 %v5007, %v5000
    %v5792 = vpack.c.b16 %v5008, %v5001
    %v5793 = vpack.c.b16 %v5009, %v5002
    %v5794 = vpack.c.b16 %v5010, %v5003
    %v5795 = vpack.c.b16 %v5011, %v5004
    %v5796 = vpack.c.b16 %v5019, %v5012
    %v5797 = vpack.c.b16 %v5020, %v5013
    %v5798 = vpack.c.b16 %v5021, %v5014
    %v5799 = vpack.c.b16 %v5022, %v5015
    %v5800 = vpack.c.b16 %v5023, %v5016
    %v5801 = vpack.c.b16 %v5024, %v5017
    %v5802 = vpack.c.b16 %v5025, %v5018
    %v5803 = vpack.c.b16 %v5033, %v5026
    %v5804 = vpack.c.b16 %v5034, %v5027
    %v5805 = vpack.c.b16 %v5035, %v5028
    %v5806 = vpack.c.b16 %v5036, %v5029
    %v5807 = vpack.c.b16 %v5037, %v5030
    %v5808 = vpack.c.b16 %v5038, %v5031
    %v5809 = vpack.c.b16 %v5039, %v5032
    %v5810 = vpack.c.b16 %v5047, %v5040
    %v5811 = vpack.c.b16 %v5048, %v5041
    %v5812 = vpack.c.b16 %v5049, %v5042
    %v5813 = vpack.c.b16 %v5050, %v5043
    %v5814 = vpack.c.b16 %v5051, %v5044
    %v5815 = vpack.c.b16 %v5052, %v5045
    %v5816 = vpack.c.b16 %v5053, %v5046
    %v5817 = vpack.c.b16 %v5061, %v5054
    %v5818 = vpack.c.b16 %v5062, %v5055
    %v5819 = vpack.c.b16 %v5063, %v5056
    %v5820 = vpack.c.b16 %v5064, %v5057
    %v5821 = vpack.c.b16 %v5065, %v5058
    %v5822 = vpack.c.b16 %v5066, %v5059
    %v5823 = vpack.c.b16 %v5067, %v5060
    %v5824 = vpack.c.b16 %v5075, %v5068
    %v5825 = vpack.c.b16 %v5076, %v5069
    %v5826 = vpack.c.b16 %v5077, %v5070
    %v5827 = vpack.c.b16 %v5078, %v5071
    %v5828 = vpack.c.b16 %v5079, %v5072
    %v5829 = vpack.c.b16 %v5080, %v5073
    %v5830 = vpack.c.b16 %v5081, %v5074
    %v5831 = vpack.c.b16 %v5089, %v5082
    %v5832 = vpack.c.b16 %v5090, %v5083
    %v5833 = vpack.c.b16 %v5091, %v5084
    %v5834 = vpack.c.b16 %v5092, %v5085
    %v5835 = vpack.c.b16 %v5093, %v5086
    %v5836 = vpack.c.b16 %v5094, %v5087
    %v5837 = vpack.c.b16 %v5095, %v5088
    %v5838 = vpack.c.b16 %v5103, %v5096
    %v5839 = vpack.c.b16 %v5104, %v5097
    %v5840 = vpack.c.b16 %v5105, %v5098
    %v5841 = vpack.c.b16 %v5106, %v5099
    %v5842 = vpack.c.b16 %v5107, %v5100
    %v5843 = vpack.c.b16 %v5108, %v5101
    %v5844 = vpack.c.b16 %v5109, %v5102
    %v5845 = vpack.c.b16 %v5117, %v5110
    %v5846 = vpack.c.b16 %v5118, %v5111
    %v5847 = vpack.c.b16 %v5119, %v5112
    %v5848 = vpack.c.b16 %v5120, %v5113
    %v5849 = vpack.c.b16 %v5121, %v5114
    %v5850 = vpack.c.b16 %v5122, %v5115
    %v5851 = vpack.c.b16 %v5123, %v5116
    %v5852 = vpack.c.b16 %v5131, %v5124
    %v5853 = vpack.c.b16 %v5132, %v5125
    %v5854 = vpack.c.b16 %v5133, %v5126
    %v5855 = vpack.c.b16 %v5134, %v5127
    %v5856 = vpack.c.b16 %v5135, %v5128
    %v5857 = vpack.c.b16 %v5136, %v5129
    %v5858 = vpack.c.b16 %v5137, %v5130
    %v5859 = vpack.c.b16 %v5145, %v5138
    %v5860 = vpack.c.b16 %v5146, %v5139
    %v5861 = vpack.c.b16 %v5147, %v5140
    %v5862 = vpack.c.b16 %v5148, %v5141
    %v5863 = vpack.c.b16 %v5149, %v5142
    %v5864 = vpack.c.b16 %v5150, %v5143
    %v5865 = vpack.c.b16 %v5151, %v5144
    %v5866 = vpack.c.b16 %v5159, %v5152
    %v5867 = vpack.c.b16 %v5160, %v5153
    %v5868 = vpack.c.b16 %v5161, %v5154
    %v5869 = vpack.c.b16 %v5162, %v5155
    %v5870 = vpack.c.b16 %v5163, %v5156
    %v5871 = vpack.c.b16 %v5164, %v5157
    %v5872 = vpack.c.b16 %v5165, %v5158
    %v5873 = vpack.c.b16 %v5173, %v5166
    %v5874 = vpack.c.b16 %v5174, %v5167
    %v5875 = vpack.c.b16 %v5175, %v5168
    %v5876 = vpack.c.b16 %v5176, %v5169
    %v5877 = vpack.c.b16 %v5177, %v5170
    %v5878 = vpack.c.b16 %v5178, %v5171
    %v5879 = vpack.c.b16 %v5179, %v5172
    %v5880 = vpack.c.b16 %v5187, %v5180
    %v5881 = vpack.c.b16 %v5188, %v5181
    %v5882 = vpack.c.b16 %v5189, %v5182
    %v5883 = vpack.c.b16 %v5190, %v5183
    %v5884 = vpack.c.b16 %v5191, %v5184
    %v5885 = vpack.c.b16 %v5192, %v5185
    %v5886 = vpack.c.b16 %v5193, %v5186
    %v5887 = vpack.c.b16 %v5201, %v5194
    %v5888 = vpack.c.b16 %v5202, %v5195
    %v5889 = vpack.c.b16 %v5203, %v5196
    %v5890 = vpack.c.b16 %v5204, %v5197
    %v5891 = vpack.c.b16 %v5205, %v5198
    %v5892 = vpack.c.b16 %v5206, %v5199
    %v5893 = vpack.c.b16 %v5207, %v5200
    %v5894 = vpack.c.b16 %v5215, %v5208
    %v5895 = vpack.c.b16 %v5216, %v5209
    %v5896 = vpack.c.b16 %v5217, %v5210
    %v5897 = vpack.c.b16 %v5218, %v5211
    %v5898 = vpack.c.b16 %v5219, %v5212
    %v5899 = vpack.c.b16 %v5220, %v5213
    %v5900 = vpack.c.b16 %v5221, %v5214
    %v5901 = vpack.c.b16 %v5229, %v5222
    %v5902 = vpack.c.b16 %v5230, %v5223
    %v5903 = vpack.c.b16 %v5231, %v5224
    %v5904 = vpack.c.b16 %v5232, %v5225
    %v5905 = vpack.c.b16 %v5233, %v5226
    %v5906 = vpack.c.b16 %v5234, %v5227
    %v5907 = vpack.c.b16 %v5235, %v5228
    %v5908 = vpack.c.b16 %v5243, %v5236
    %v5909 = vpack.c.b16 %v5244, %v5237
    %v5910 = vpack.c.b16 %v5245, %v5238
    %v5911 = vpack.c.b16 %v5246, %v5239
    %v5912 = vpack.c.b16 %v5247, %v5240
    %v5913 = vpack.c.b16 %v5248, %v5241
    %v5914 = vpack.c.b16 %v5249, %v5242
    %v5915 = vpack.c.b16 %v5257, %v5250
    %v5916 = vpack.c.b16 %v5258, %v5251
    %v5917 = vpack.c.b16 %v5259, %v5252
    %v5918 = vpack.c.b16 %v5260, %v5253
    %v5919 = vpack.c.b16 %v5261, %v5254
    %v5920 = vpack.c.b16 %v5262, %v5255
    %v5921 = vpack.c.b16 %v5263, %v5256
    %v5922 = vpack.c.b16 %v5271, %v5264
    %v5923 = vpack.c.b16 %v5272, %v5265
    %v5924 = vpack.c.b16 %v5273, %v5266
    %v5925 = vpack.c.b16 %v5274, %v5267
    %v5926 = vpack.c.b16 %v5275, %v5268
    %v5927 = vpack.c.b16 %v5276, %v5269
    %v5928 = vpack.c.b16 %v5277, %v5270
    %v5929 = vpack.c.b16 %v5285, %v5278
    %v5930 = vpack.c.b16 %v5286, %v5279
    %v5931 = vpack.c.b16 %v5287, %v5280
    %v5932 = vpack.c.b16 %v5288, %v5281
    %v5933 = vpack.c.b16 %v5289, %v5282
    %v5934 = vpack.c.b16 %v5290, %v5283
    %v5935 = vpack.c.b16 %v5291, %v5284
    %v5936 = vpack.c.b16 %v5299, %v5292
    %v5937 = vpack.c.b16 %v5300, %v5293
    %v5938 = vpack.c.b16 %v5301, %v5294
    %v5939 = vpack.c.b16 %v5302, %v5295
    %v5940 = vpack.c.b16 %v5303, %v5296
    %v5941 = vpack.c.b16 %v5304, %v5297
    %v5942 = vpack.c.b16 %v5305, %v5298
    %v5943 = vpack.c.b16 %v5313, %v5306
    %v5944 = vpack.c.b16 %v5314, %v5307
    %v5945 = vpack.c.b16 %v5315, %v5308
    %v5946 = vpack.c.b16 %v5316, %v5309
    %v5947 = vpack.c.b16 %v5317, %v5310
    %v5948 = vpack.c.b16 %v5318, %v5311
    %v5949 = vpack.c.b16 %v5319, %v5312
    %v5950 = vpack.c.b16 %v5327, %v5320
    %v5951 = vpack.c.b16 %v5328, %v5321
    %v5952 = vpack.c.b16 %v5329, %v5322
    %v5953 = vpack.c.b16 %v5330, %v5323
    %v5954 = vpack.c.b16 %v5331, %v5324
    %v5955 = vpack.c.b16 %v5332, %v5325
    %v5956 = vpack.c.b16 %v5333, %v5326
    %v5957 = vpack.c.b16 %v5341, %v5334
    %v5958 = vpack.c.b16 %v5342, %v5335
    %v5959 = vpack.c.b16 %v5343, %v5336
    %v5960 = vpack.c.b16 %v5344, %v5337
    %v5961 = vpack.c.b16 %v5345, %v5338
    %v5962 = vpack.c.b16 %v5346, %v5339
    %v5963 = vpack.c.b16 %v5347, %v5340
    %v5964 = vpack.c.b16 %v5355, %v5348
    %v5965 = vpack.c.b16 %v5356, %v5349
    %v5966 = vpack.c.b16 %v5357, %v5350
    %v5967 = vpack.c.b16 %v5358, %v5351
    %v5968 = vpack.c.b16 %v5359, %v5352
    %v5969 = vpack.c.b16 %v5360, %v5353
    %v5970 = vpack.c.b16 %v5361, %v5354
    %v5971 = vpack.c.b16 %v5369, %v5362
    %v5972 = vpack.c.b16 %v5370, %v5363
    %v5973 = vpack.c.b16 %v5371, %v5364
    %v5974 = vpack.c.b16 %v5372, %v5365
    %v5975 = vpack.c.b16 %v5373, %v5366
    %v5976 = vpack.c.b16 %v5374, %v5367
    %v5977 = vpack.c.b16 %v5375, %v5368
    %v5978 = vpack.c.b16 %v5383, %v5376
    %v5979 = vpack.c.b16 %v5384, %v5377
    %v5980 = vpack.c.b16 %v5385, %v5378
    %v5981 = vpack.c.b16 %v5386, %v5379
    %v5982 = vpack.c.b16 %v5387, %v5380
    %v5983 = vpack.c.b16 %v5388, %v5381
    %v5984 = vpack.c.b16 %v5389, %v5382
    %v5985 = vpack.c.b16 %v5397, %v5390
    %v5986 = vpack.c.b16 %v5398, %v5391
    %v5987 = vpack.c.b16 %v5399, %v5392
    %v5988 = vpack.c.b16 %v5400, %v5393
    %v5989 = vpack.c.b16 %v5401, %v5394
    %v5990 = vpack.c.b16 %v5402, %v5395
    %v5991 = vpack.c.b16 %v5403, %v5396
    %v5992 = vpack.c.b16 %v5411, %v5404
    %v5993 = vpack.c.b16 %v5412, %v5405
    %v5994 = vpack.c.b16 %v5413, %v5406
    %v5995 = vpack.c.b16 %v5414, %v5407
    %v5996 = vpack.c.b16 %v5415, %v5408
    %v5997 = vpack.c.b16 %v5416, %v5409
    %v5998 = vpack.c.b16 %v5417, %v5410
    %v5999 = vpack.c.b16 %v5425, %v5418
    %v6000 = vpack.c.b16 %v5426, %v5419
    %v6001 = vpack.c.b16 %v5427, %v5420
    %v6002 = vpack.c.b16 %v5428, %v5421
    %v6003 = vpack.c.b16 %v5429, %v5422
    %v6004 = vpack.c.b16 %v5430, %v5423
    %v6005 = vpack.c.b16 %v5431, %v5424
    %v6006 = vpack.c.b16 %v5439, %v5432
    %v6007 = vpack.c.b16 %v5440, %v5433
    %v6008 = vpack.c.b16 %v5441, %v5434
    %v6009 = vpack.c.b16 %v5442, %v5435
    %v6010 = vpack.c.b16 %v5443, %v5436
    %v6011 = vpack.c.b16 %v5444, %v5437
    %v6012 = vpack.c.b16 %v5445, %v5438
    %v6013 = vpack.c.b16 %v5453, %v5446
    %v6014 = vpack.c.b16 %v5454, %v5447
    %v6015 = vpack.c.b16 %v5455, %v5448
    %v6016 = vpack.c.b16 %v5456, %v5449
    %v6017 = vpack.c.b16 %v5457, %v5450
    %v6018 = vpack.c.b16 %v5458, %v5451
    %v6019 = vpack.c.b16 %v5459, %v5452
    %v6020 = vpack.c.b16 %v5467, %v5460
    %v6021 = vpack.c.b16 %v5468, %v5461
    %v6022 = vpack.c.b16 %v5469, %v5462
    %v6023 = vpack.c.b16 %v5470, %v5463
    %v6024 = vpack.c.b16 %v5471, %v5464
    %v6025 = vpack.c.b16 %v5472, %v5465
    %v6026 = vpack.c.b16 %v5473, %v5466
    %v6027 = vpack.c.b16 %v5481, %v5474
    %v6028 = vpack.c.b16 %v5482, %v5475
    %v6029 = vpack.c.b16 %v5483, %v5476
    %v6030 = vpack.c.b16 %v5484, %v5477
    %v6031 = vpack.c.b16 %v5485, %v5478
    %v6032 = vpack.c.b16 %v5486, %v5479
    %v6033 = vpack.c.b16 %v5487, %v5480
    %v6034 = vpack.c.b16 %v5495, %v5488
    %v6035 = vpack.c.b16 %v5496, %v5489
    %v6036 = vpack.c.b16 %v5497, %v5490
    %v6037 = vpack.c.b16 %v5498, %v5491
    %v6038 = vpack.c.b16 %v5499, %v5492
    %v6039 = vpack.c.b16 %v5500, %v5493
    %v6040 = vpack.c.b16 %v5501, %v5494
    %v6041 = vpack.c.b16 %v5509, %v5502
    %v6042 = vpack.c.b16 %v5510, %v5503
    %v6043 = vpack.c.b16 %v5511, %v5504
    %v6044 = vpack.c.b16 %v5512, %v5505
    %v6045 = vpack.c.b16 %v5513, %v5506
    %v6046 = vpack.c.b16 %v5514, %v5507
    %v6047 = vpack.c.b16 %v5515, %v5508
    %v6048 = vpack.c.b16 %v5523, %v5516
    %v6049 = vpack.c.b16 %v5524, %v5517
    %v6050 = vpack.c.b16 %v5525, %v5518
    %v6051 = vpack.c.b16 %v5526, %v5519
    %v6052 = vpack.c.b16 %v5527, %v5520
    %v6053 = vpack.c.b16 %v5528, %v5521
    %v6054 = vpack.c.b16 %v5529, %v5522
    %v6055 = vpack.c.b16 %v5537, %v5530
    %v6056 = vpack.c.b16 %v5538, %v5531
    %v6057 = vpack.c.b16 %v5539, %v5532
    %v6058 = vpack.c.b16 %v5540, %v5533
    %v6059 = vpack.c.b16 %v5541, %v5534
    %v6060 = vpack.c.b16 %v5542, %v5535
    %v6061 = vpack.c.b16 %v5543, %v5536
    %v6062 = vpack.c.b16 %v5551, %v5544
    %v6063 = vpack.c.b16 %v5552, %v5545
    %v6064 = vpack.c.b16 %v5553, %v5546
    %v6065 = vpack.c.b16 %v5554, %v5547
    %v6066 = vpack.c.b16 %v5555, %v5548
    %v6067 = vpack.c.b16 %v5556, %v5549
    %v6068 = vpack.c.b16 %v5557, %v5550
    %v6069 = vpack.c.b16 %v5565, %v5558
    %v6070 = vpack.c.b16 %v5566, %v5559
    %v6071 = vpack.c.b16 %v5567, %v5560
    %v6072 = vpack.c.b16 %v5568, %v5561
    %v6073 = vpack.c.b16 %v5569, %v5562
    %v6074 = vpack.c.b16 %v5570, %v5563
    %v6075 = vpack.c.b16 %v5571, %v5564
    %v6076 = vpack.c.b16 %v5579, %v5572
    %v6077 = vpack.c.b16 %v5580, %v5573
    %v6078 = vpack.c.b16 %v5581, %v5574
    %v6079 = vpack.c.b16 %v5582, %v5575
    %v6080 = vpack.c.b16 %v5583, %v5576
    %v6081 = vpack.c.b16 %v5584, %v5577
    %v6082 = vpack.c.b16 %v5585, %v5578
    %v6083 = vpack.c.b16 %v5593, %v5586
    %v6084 = vpack.c.b16 %v5594, %v5587
    %v6085 = vpack.c.b16 %v5595, %v5588
    %v6086 = vpack.c.b16 %v5596, %v5589
    %v6087 = vpack.c.b16 %v5597, %v5590
    %v6088 = vpack.c.b16 %v5598, %v5591
    %v6089 = vpack.c.b16 %v5599, %v5592
    %v6090 = vpack.c.b16 %v5607, %v5600
    %v6091 = vpack.c.b16 %v5608, %v5601
    %v6092 = vpack.c.b16 %v5609, %v5602
    %v6093 = vpack.c.b16 %v5610, %v5603
    %v6094 = vpack.c.b16 %v5611, %v5604
    %v6095 = vpack.c.b16 %v5612, %v5605
    %v6096 = vpack.c.b16 %v5613, %v5606
    %v6097 = vpack.c.b16 %v5621, %v5614
    %v6098 = vpack.c.b16 %v5622, %v5615
    %v6099 = vpack.c.b16 %v5623, %v5616
    %v6100 = vpack.c.b16 %v5624, %v5617
    %v6101 = vpack.c.b16 %v5625, %v5618
    %v6102 = vpack.c.b16 %v5626, %v5619
    %v6103 = vpack.c.b16 %v5627, %v5620
    %v6104 = vpack.c.b16 %v5635, %v5628
    %v6105 = vpack.c.b16 %v5636, %v5629
    %v6106 = vpack.c.b16 %v5637, %v5630
    %v6107 = vpack.c.b16 %v5638, %v5631
    %v6108 = vpack.c.b16 %v5639, %v5632
    %v6109 = vpack.c.b16 %v5640, %v5633
    %v6110 = vpack.c.b16 %v5641, %v5634
    %v6111 = vpack.c.b16 %v5649, %v5642
    %v6112 = vpack.c.b16 %v5650, %v5643
    %v6113 = vpack.c.b16 %v5651, %v5644
    %v6114 = vpack.c.b16 %v5652, %v5645
    %v6115 = vpack.c.b16 %v5653, %v5646
    %v6116 = vpack.c.b16 %v5654, %v5647
    %v6117 = vpack.c.b16 %v5655, %v5648
    %v6118 = vpack.c.b16 %v5663, %v5656
    %v6119 = vpack.c.b16 %v5664, %v5657
    %v6120 = vpack.c.b16 %v5665, %v5658
    %v6121 = vpack.c.b16 %v5666, %v5659
    %v6122 = vpack.c.b16 %v5667, %v5660
    %v6123 = vpack.c.b16 %v5668, %v5661
    %v6124 = vpack.c.b16 %v5669, %v5662
    %v6125 = vpack.c.b16 %v5677, %v5670
    %v6126 = vpack.c.b16 %v5678, %v5671
    %v6127 = vpack.c.b16 %v5679, %v5672
    %v6128 = vpack.c.b16 %v5680, %v5673
    %v6129 = vpack.c.b16 %v5681, %v5674
    %v6130 = vpack.c.b16 %v5682, %v5675
    %v6131 = vpack.c.b16 %v5683, %v5676
    %6580 = vmatprep.subr.bf16.mxu0 %v5734
    %6581 = vmatpush1.bf16.msra.mxu0 %v5733
    %6582 = vmatprep.subr.bf16.mxu0 %v5727
    %6583 = vmatpush1.bf16.msra.mxu0 %v5726
    %6584 = vmatprep.subr.bf16.mxu0 %v5720
    %6585 = vmatpush1.bf16.msra.mxu0 %v5719
    %6586 = vmatprep.subr.bf16.mxu0 %v5713
    %6587 = vmatpush1.bf16.msra.mxu0 %v5712
    %6588 = vmatprep.subr.bf16.mxu0 %v5706
    %6589 = vmatpush1.bf16.msra.mxu0 %v5705
    %6590 = vmatprep.subr.bf16.mxu0 %v5699
    %6591 = vmatpush1.bf16.msra.mxu0 %v5698
    %6592 = vmatprep.subr.bf16.mxu0 %v5692
    %6593 = vmatpush1.bf16.msra.mxu0 %v5691
    %6594 = vmatprep.subr.bf16.mxu0 %v5685
    %6595 = vmatpush1.bf16.msra.mxu0 %v5684
    %6596 = vmatprep.subr.bf16.mxu0 %v5790
    %6597 = vmatpush2.bf16.msra.mxu0 %v5789
    %6598 = vmatprep.subr.bf16.mxu0 %v5783
    %6599 = vmatpush2.bf16.msra.mxu0 %v5782
    %6600 = vmatprep.subr.bf16.mxu0 %v5776
    %6601 = vmatpush2.bf16.msra.mxu0 %v5775
    %6602 = vmatprep.subr.bf16.mxu0 %v5769
    %6603 = vmatpush2.bf16.msra.mxu0 %v5768
    %6604 = vmatprep.subr.bf16.mxu0 %v5762
    %6605 = vmatpush2.bf16.msra.mxu0 %v5761
    %6606 = vmatprep.subr.bf16.mxu0 %v5755
    %6607 = vmatpush2.bf16.msra.mxu0 %v5754
    %6608 = vmatprep.subr.bf16.mxu0 %v5748
    %6609 = vmatpush2.bf16.msra.mxu0 %v5747
    %6610 = vmatprep.subr.bf16.mxu0 %v5741
    %6611 = vmatpush2.bf16.msra.mxu0 %v5740
    %6612 = vmatprep.mubr.bf16.mxu0 %v4232
    %6613 = vmatmul.mubr.bf16.gmra.mxu0 %v4231
    %v6614 = vpop.f32.mrf.mxu0
    %v6615 = vadd.f32 %v4244, %v6614
    %v6616 = vpop.f32.mrf.mxu0
    %v6617 = vadd.f32 %v4248, %v6616
    %v6618 = vpop.f32.mrf.mxu0
    %v6619 = vpop.f32.mrf.mxu0
    %6620 = vdwg.mxu0
    %6621 = vmatprep.subr.bf16.mxu0 %v5846
    %6622 = vmatpush1.bf16.msra.mxu0 %v5845
    %6623 = vmatprep.subr.bf16.mxu0 %v5839
    %6624 = vmatpush1.bf16.msra.mxu0 %v5838
    %6625 = vmatprep.subr.bf16.mxu0 %v5832
    %6626 = vmatpush1.bf16.msra.mxu0 %v5831
    %6627 = vmatprep.subr.bf16.mxu0 %v5825
    %6628 = vmatpush1.bf16.msra.mxu0 %v5824
    %6629 = vmatprep.subr.bf16.mxu0 %v5818
    %6630 = vmatpush1.bf16.msra.mxu0 %v5817
    %6631 = vmatprep.subr.bf16.mxu0 %v5811
    %6632 = vmatpush1.bf16.msra.mxu0 %v5810
    %6633 = vmatprep.subr.bf16.mxu0 %v5804
    %6634 = vmatpush1.bf16.msra.mxu0 %v5803
    %6635 = vmatprep.subr.bf16.mxu0 %v5797
    %6636 = vmatpush1.bf16.msra.mxu0 %v5796
    %6637 = vmatprep.subr.bf16.mxu0 %v5902
    %6638 = vmatpush2.bf16.msra.mxu0 %v5901
    %6639 = vmatprep.subr.bf16.mxu0 %v5895
    %6640 = vmatpush2.bf16.msra.mxu0 %v5894
    %6641 = vmatprep.subr.bf16.mxu0 %v5888
    %6642 = vmatpush2.bf16.msra.mxu0 %v5887
    %6643 = vmatprep.subr.bf16.mxu0 %v5881
    %6644 = vmatpush2.bf16.msra.mxu0 %v5880
    %6645 = vmatprep.subr.bf16.mxu0 %v5874
    %6646 = vmatpush2.bf16.msra.mxu0 %v5873
    %6647 = vmatprep.subr.bf16.mxu0 %v5867
    %6648 = vmatpush2.bf16.msra.mxu0 %v5866
    %6649 = vmatprep.subr.bf16.mxu0 %v5860
    %6650 = vmatpush2.bf16.msra.mxu0 %v5859
    %6651 = vmatprep.subr.bf16.mxu0 %v5853
    %6652 = vmatpush2.bf16.msra.mxu0 %v5852
    %6653 = vmatprep.mubr.bf16.mxu0 %v4234
    %6654 = vmatmul.mubr.bf16.gmra.mxu0 %v4233
    %v6655 = vpop.f32.mrf.mxu0
    %v6656 = vadd.f32 %v6615, %v6655
    %v6657 = vpop.f32.mrf.mxu0
    %v6658 = vadd.f32 %v6617, %v6657
    %v6659 = vpop.f32.mrf.mxu0
    %v6660 = vpop.f32.mrf.mxu0
    %6661 = vdwg.mxu0
    %6662 = vmatprep.subr.bf16.mxu0 %v5958
    %6663 = vmatpush1.bf16.msra.mxu0 %v5957
    %6664 = vmatprep.subr.bf16.mxu0 %v5951
    %6665 = vmatpush1.bf16.msra.mxu0 %v5950
    %6666 = vmatprep.subr.bf16.mxu0 %v5944
    %6667 = vmatpush1.bf16.msra.mxu0 %v5943
    %6668 = vmatprep.subr.bf16.mxu0 %v5937
    %6669 = vmatpush1.bf16.msra.mxu0 %v5936
    %6670 = vmatprep.subr.bf16.mxu0 %v5930
    %6671 = vmatpush1.bf16.msra.mxu0 %v5929
    %6672 = vmatprep.subr.bf16.mxu0 %v5923
    %6673 = vmatpush1.bf16.msra.mxu0 %v5922
    %6674 = vmatprep.subr.bf16.mxu0 %v5916
    %6675 = vmatpush1.bf16.msra.mxu0 %v5915
    %6676 = vmatprep.subr.bf16.mxu0 %v5909
    %6677 = vmatpush1.bf16.msra.mxu0 %v5908
    %6678 = vmatprep.subr.bf16.mxu0 %v6014
    %6679 = vmatpush2.bf16.msra.mxu0 %v6013
    %6680 = vmatprep.subr.bf16.mxu0 %v6007
    %6681 = vmatpush2.bf16.msra.mxu0 %v6006
    %6682 = vmatprep.subr.bf16.mxu0 %v6000
    %6683 = vmatpush2.bf16.msra.mxu0 %v5999
    %6684 = vmatprep.subr.bf16.mxu0 %v5993
    %6685 = vmatpush2.bf16.msra.mxu0 %v5992
    %6686 = vmatprep.subr.bf16.mxu0 %v5986
    %6687 = vmatpush2.bf16.msra.mxu0 %v5985
    %6688 = vmatprep.subr.bf16.mxu0 %v5979
    %6689 = vmatpush2.bf16.msra.mxu0 %v5978
    %6690 = vmatprep.subr.bf16.mxu0 %v5972
    %6691 = vmatpush2.bf16.msra.mxu0 %v5971
    %6692 = vmatprep.subr.bf16.mxu0 %v5965
    %6693 = vmatpush2.bf16.msra.mxu0 %v5964
    %6694 = vmatprep.mubr.bf16.mxu0 %v4236
    %6695 = vmatmul.mubr.bf16.gmra.mxu0 %v4235
    %v6696 = vpop.f32.mrf.mxu0
    %v6697 = vadd.f32 %v6656, %v6696
    %v6698 = vpop.f32.mrf.mxu0
    %v6699 = vadd.f32 %v6658, %v6698
    %v6700 = vpop.f32.mrf.mxu0
    %v6701 = vpop.f32.mrf.mxu0
    %6702 = vdwg.mxu0
    %6703 = vmatprep.subr.bf16.mxu0 %v6070
    %6704 = vmatpush1.bf16.msra.mxu0 %v6069
    %6705 = vmatprep.subr.bf16.mxu0 %v6063
    %6706 = vmatpush1.bf16.msra.mxu0 %v6062
    %6707 = vmatprep.subr.bf16.mxu0 %v6056
    %6708 = vmatpush1.bf16.msra.mxu0 %v6055
    %6709 = vmatprep.subr.bf16.mxu0 %v6049
    %6710 = vmatpush1.bf16.msra.mxu0 %v6048
    %6711 = vmatprep.subr.bf16.mxu0 %v6042
    %6712 = vmatpush1.bf16.msra.mxu0 %v6041
    %6713 = vmatprep.subr.bf16.mxu0 %v6035
    %6714 = vmatpush1.bf16.msra.mxu0 %v6034
    %6715 = vmatprep.subr.bf16.mxu0 %v6028
    %6716 = vmatpush1.bf16.msra.mxu0 %v6027
    %6717 = vmatprep.subr.bf16.mxu0 %v6021
    %6718 = vmatpush1.bf16.msra.mxu0 %v6020
    %6719 = vmatprep.subr.bf16.mxu0 %v6126
    %6720 = vmatpush2.bf16.msra.mxu0 %v6125
    %6721 = vmatprep.subr.bf16.mxu0 %v6119
    %6722 = vmatpush2.bf16.msra.mxu0 %v6118
    %6723 = vmatprep.subr.bf16.mxu0 %v6112
    %6724 = vmatpush2.bf16.msra.mxu0 %v6111
    %6725 = vmatprep.subr.bf16.mxu0 %v6105
    %6726 = vmatpush2.bf16.msra.mxu0 %v6104
    %6727 = vmatprep.subr.bf16.mxu0 %v6098
    %6728 = vmatpush2.bf16.msra.mxu0 %v6097
    %6729 = vmatprep.subr.bf16.mxu0 %v6091
    %6730 = vmatpush2.bf16.msra.mxu0 %v6090
    %6731 = vmatprep.subr.bf16.mxu0 %v6084
    %6732 = vmatpush2.bf16.msra.mxu0 %v6083
    %6733 = vmatprep.subr.bf16.mxu0 %v6077
    %6734 = vmatpush2.bf16.msra.mxu0 %v6076
    %6735 = vmatprep.mubr.bf16.mxu0 %v4238
    %6736 = vmatmul.mubr.bf16.gmra.mxu0 %v4237
    %v6737 = vpop.f32.mrf.mxu0
    %v6738 = vadd.f32 %v6697, %v6737
    %v6739 = vpop.f32.mrf.mxu0
    %v6740 = vadd.f32 %v6699, %v6739
    %v6741 = vpop.f32.mrf.mxu0
    %v6742 = vpop.f32.mrf.mxu0
    %6743 = vdwg.mxu0
    %6744 = vmatprep.subr.bf16.mxu0 %v5736
    %6745 = vmatpush1.bf16.msra.mxu0 %v5735
    %6746 = vmatprep.subr.bf16.mxu0 %v5729
    %6747 = vmatpush1.bf16.msra.mxu0 %v5728
    %6748 = vmatprep.subr.bf16.mxu0 %v5722
    %6749 = vmatpush1.bf16.msra.mxu0 %v5721
    %6750 = vmatprep.subr.bf16.mxu0 %v5715
    %6751 = vmatpush1.bf16.msra.mxu0 %v5714
    %6752 = vmatprep.subr.bf16.mxu0 %v5708
    %6753 = vmatpush1.bf16.msra.mxu0 %v5707
    %6754 = vmatprep.subr.bf16.mxu0 %v5701
    %6755 = vmatpush1.bf16.msra.mxu0 %v5700
    %6756 = vmatprep.subr.bf16.mxu0 %v5694
    %6757 = vmatpush1.bf16.msra.mxu0 %v5693
    %6758 = vmatprep.subr.bf16.mxu0 %v5687
    %6759 = vmatpush1.bf16.msra.mxu0 %v5686
    %6760 = vmatprep.subr.bf16.mxu0 %v5792
    %6761 = vmatpush2.bf16.msra.mxu0 %v5791
    %6762 = vmatprep.subr.bf16.mxu0 %v5785
    %6763 = vmatpush2.bf16.msra.mxu0 %v5784
    %6764 = vmatprep.subr.bf16.mxu0 %v5778
    %6765 = vmatpush2.bf16.msra.mxu0 %v5777
    %6766 = vmatprep.subr.bf16.mxu0 %v5771
    %6767 = vmatpush2.bf16.msra.mxu0 %v5770
    %6768 = vmatprep.subr.bf16.mxu0 %v5764
    %6769 = vmatpush2.bf16.msra.mxu0 %v5763
    %6770 = vmatprep.subr.bf16.mxu0 %v5757
    %6771 = vmatpush2.bf16.msra.mxu0 %v5756
    %6772 = vmatprep.subr.bf16.mxu0 %v5750
    %6773 = vmatpush2.bf16.msra.mxu0 %v5749
    %6774 = vmatprep.subr.bf16.mxu0 %v5743
    %6775 = vmatpush2.bf16.msra.mxu0 %v5742
    %6776 = vmatprep.mubr.bf16.mxu0 %v4232
    %6777 = vmatmul.mubr.bf16.gmra.mxu0 %v4231
    %v6778 = vpop.f32.mrf.mxu0
    %v6779 = vadd.f32 %v4252, %v6778
    %v6780 = vpop.f32.mrf.mxu0
    %v6781 = vadd.f32 %v4256, %v6780
    %v6782 = vpop.f32.mrf.mxu0
    %v6783 = vpop.f32.mrf.mxu0
    %6784 = vdwg.mxu0
    %6785 = vmatprep.subr.bf16.mxu0 %v5848
    %6786 = vmatpush1.bf16.msra.mxu0 %v5847
    %6787 = vmatprep.subr.bf16.mxu0 %v5841
    %6788 = vmatpush1.bf16.msra.mxu0 %v5840
    %6789 = vmatprep.subr.bf16.mxu0 %v5834
    %6790 = vmatpush1.bf16.msra.mxu0 %v5833
    %6791 = vmatprep.subr.bf16.mxu0 %v5827
    %6792 = vmatpush1.bf16.msra.mxu0 %v5826
    %6793 = vmatprep.subr.bf16.mxu0 %v5820
    %6794 = vmatpush1.bf16.msra.mxu0 %v5819
    %6795 = vmatprep.subr.bf16.mxu0 %v5813
    %6796 = vmatpush1.bf16.msra.mxu0 %v5812
    %6797 = vmatprep.subr.bf16.mxu0 %v5806
    %6798 = vmatpush1.bf16.msra.mxu0 %v5805
    %6799 = vmatprep.subr.bf16.mxu0 %v5799
    %6800 = vmatpush1.bf16.msra.mxu0 %v5798
    %6801 = vmatprep.subr.bf16.mxu0 %v5904
    %6802 = vmatpush2.bf16.msra.mxu0 %v5903
    %6803 = vmatprep.subr.bf16.mxu0 %v5897
    %6804 = vmatpush2.bf16.msra.mxu0 %v5896
    %6805 = vmatprep.subr.bf16.mxu0 %v5890
    %6806 = vmatpush2.bf16.msra.mxu0 %v5889
    %6807 = vmatprep.subr.bf16.mxu0 %v5883
    %6808 = vmatpush2.bf16.msra.mxu0 %v5882
    %6809 = vmatprep.subr.bf16.mxu0 %v5876
    %6810 = vmatpush2.bf16.msra.mxu0 %v5875
    %6811 = vmatprep.subr.bf16.mxu0 %v5869
    %6812 = vmatpush2.bf16.msra.mxu0 %v5868
    %6813 = vmatprep.subr.bf16.mxu0 %v5862
    %6814 = vmatpush2.bf16.msra.mxu0 %v5861
    %6815 = vmatprep.subr.bf16.mxu0 %v5855
    %6816 = vmatpush2.bf16.msra.mxu0 %v5854
    %6817 = vmatprep.mubr.bf16.mxu0 %v4234
    %6818 = vmatmul.mubr.bf16.gmra.mxu0 %v4233
    %v6819 = vpop.f32.mrf.mxu0
    %v6820 = vadd.f32 %v6779, %v6819
    %v6821 = vpop.f32.mrf.mxu0
    %v6822 = vadd.f32 %v6781, %v6821
    %v6823 = vpop.f32.mrf.mxu0
    %v6824 = vpop.f32.mrf.mxu0
    %6825 = vdwg.mxu0
    %6826 = vmatprep.subr.bf16.mxu0 %v5960
    %6827 = vmatpush1.bf16.msra.mxu0 %v5959
    %6828 = vmatprep.subr.bf16.mxu0 %v5953
    %6829 = vmatpush1.bf16.msra.mxu0 %v5952
    %6830 = vmatprep.subr.bf16.mxu0 %v5946
    %6831 = vmatpush1.bf16.msra.mxu0 %v5945
    %6832 = vmatprep.subr.bf16.mxu0 %v5939
    %6833 = vmatpush1.bf16.msra.mxu0 %v5938
    %6834 = vmatprep.subr.bf16.mxu0 %v5932
    %6835 = vmatpush1.bf16.msra.mxu0 %v5931
    %6836 = vmatprep.subr.bf16.mxu0 %v5925
    %6837 = vmatpush1.bf16.msra.mxu0 %v5924
    %6838 = vmatprep.subr.bf16.mxu0 %v5918
    %6839 = vmatpush1.bf16.msra.mxu0 %v5917
    %6840 = vmatprep.subr.bf16.mxu0 %v5911
    %6841 = vmatpush1.bf16.msra.mxu0 %v5910
    %6842 = vmatprep.subr.bf16.mxu0 %v6016
    %6843 = vmatpush2.bf16.msra.mxu0 %v6015
    %6844 = vmatprep.subr.bf16.mxu0 %v6009
    %6845 = vmatpush2.bf16.msra.mxu0 %v6008
    %6846 = vmatprep.subr.bf16.mxu0 %v6002
    %6847 = vmatpush2.bf16.msra.mxu0 %v6001
    %6848 = vmatprep.subr.bf16.mxu0 %v5995
    %6849 = vmatpush2.bf16.msra.mxu0 %v5994
    %6850 = vmatprep.subr.bf16.mxu0 %v5988
    %6851 = vmatpush2.bf16.msra.mxu0 %v5987
    %6852 = vmatprep.subr.bf16.mxu0 %v5981
    %6853 = vmatpush2.bf16.msra.mxu0 %v5980
    %6854 = vmatprep.subr.bf16.mxu0 %v5974
    %6855 = vmatpush2.bf16.msra.mxu0 %v5973
    %6856 = vmatprep.subr.bf16.mxu0 %v5967
    %6857 = vmatpush2.bf16.msra.mxu0 %v5966
    %6858 = vmatprep.mubr.bf16.mxu0 %v4236
    %6859 = vmatmul.mubr.bf16.gmra.mxu0 %v4235
    %v6860 = vpop.f32.mrf.mxu0
    %v6861 = vadd.f32 %v6820, %v6860
    %v6862 = vpop.f32.mrf.mxu0
    %v6863 = vadd.f32 %v6822, %v6862
    %v6864 = vpop.f32.mrf.mxu0
    %v6865 = vpop.f32.mrf.mxu0
    %6866 = vdwg.mxu0
    %6867 = vmatprep.subr.bf16.mxu0 %v6072
    %6868 = vmatpush1.bf16.msra.mxu0 %v6071
    %6869 = vmatprep.subr.bf16.mxu0 %v6065
    %6870 = vmatpush1.bf16.msra.mxu0 %v6064
    %6871 = vmatprep.subr.bf16.mxu0 %v6058
    %6872 = vmatpush1.bf16.msra.mxu0 %v6057
    %6873 = vmatprep.subr.bf16.mxu0 %v6051
    %6874 = vmatpush1.bf16.msra.mxu0 %v6050
    %6875 = vmatprep.subr.bf16.mxu0 %v6044
    %6876 = vmatpush1.bf16.msra.mxu0 %v6043
    %6877 = vmatprep.subr.bf16.mxu0 %v6037
    %6878 = vmatpush1.bf16.msra.mxu0 %v6036
    %6879 = vmatprep.subr.bf16.mxu0 %v6030
    %6880 = vmatpush1.bf16.msra.mxu0 %v6029
    %6881 = vmatprep.subr.bf16.mxu0 %v6023
    %6882 = vmatpush1.bf16.msra.mxu0 %v6022
    %6883 = vmatprep.subr.bf16.mxu0 %v6128
    %6884 = vmatpush2.bf16.msra.mxu0 %v6127
    %6885 = vmatprep.subr.bf16.mxu0 %v6121
    %6886 = vmatpush2.bf16.msra.mxu0 %v6120
    %6887 = vmatprep.subr.bf16.mxu0 %v6114
    %6888 = vmatpush2.bf16.msra.mxu0 %v6113
    %6889 = vmatprep.subr.bf16.mxu0 %v6107
    %6890 = vmatpush2.bf16.msra.mxu0 %v6106
    %6891 = vmatprep.subr.bf16.mxu0 %v6100
    %6892 = vmatpush2.bf16.msra.mxu0 %v6099
    %6893 = vmatprep.subr.bf16.mxu0 %v6093
    %6894 = vmatpush2.bf16.msra.mxu0 %v6092
    %6895 = vmatprep.subr.bf16.mxu0 %v6086
    %6896 = vmatpush2.bf16.msra.mxu0 %v6085
    %6897 = vmatprep.subr.bf16.mxu0 %v6079
    %6898 = vmatpush2.bf16.msra.mxu0 %v6078
    %6899 = vmatprep.mubr.bf16.mxu0 %v4238
    %6900 = vmatmul.mubr.bf16.gmra.mxu0 %v4237
    %v6901 = vpop.f32.mrf.mxu0
    %v6902 = vadd.f32 %v6861, %v6901
    %v6903 = vpop.f32.mrf.mxu0
    %v6904 = vadd.f32 %v6863, %v6903
    %v6905 = vpop.f32.mrf.mxu0
    %v6906 = vpop.f32.mrf.mxu0
    %6907 = vdwg.mxu0
    %6908 = vmatprep.subr.bf16.mxu0 %v5738
    %6909 = vmatpush1.bf16.msra.mxu0 %v5737
    %6910 = vmatprep.subr.bf16.mxu0 %v5731
    %6911 = vmatpush1.bf16.msra.mxu0 %v5730
    %6912 = vmatprep.subr.bf16.mxu0 %v5724
    %6913 = vmatpush1.bf16.msra.mxu0 %v5723
    %6914 = vmatprep.subr.bf16.mxu0 %v5717
    %6915 = vmatpush1.bf16.msra.mxu0 %v5716
    %6916 = vmatprep.subr.bf16.mxu0 %v5710
    %6917 = vmatpush1.bf16.msra.mxu0 %v5709
    %6918 = vmatprep.subr.bf16.mxu0 %v5703
    %6919 = vmatpush1.bf16.msra.mxu0 %v5702
    %6920 = vmatprep.subr.bf16.mxu0 %v5696
    %6921 = vmatpush1.bf16.msra.mxu0 %v5695
    %6922 = vmatprep.subr.bf16.mxu0 %v5689
    %6923 = vmatpush1.bf16.msra.mxu0 %v5688
    %6924 = vmatprep.subr.bf16.mxu0 %v5794
    %6925 = vmatpush2.bf16.msra.mxu0 %v5793
    %6926 = vmatprep.subr.bf16.mxu0 %v5787
    %6927 = vmatpush2.bf16.msra.mxu0 %v5786
    %6928 = vmatprep.subr.bf16.mxu0 %v5780
    %6929 = vmatpush2.bf16.msra.mxu0 %v5779
    %6930 = vmatprep.subr.bf16.mxu0 %v5773
    %6931 = vmatpush2.bf16.msra.mxu0 %v5772
    %6932 = vmatprep.subr.bf16.mxu0 %v5766
    %6933 = vmatpush2.bf16.msra.mxu0 %v5765
    %6934 = vmatprep.subr.bf16.mxu0 %v5759
    %6935 = vmatpush2.bf16.msra.mxu0 %v5758
    %6936 = vmatprep.subr.bf16.mxu0 %v5752
    %6937 = vmatpush2.bf16.msra.mxu0 %v5751
    %6938 = vmatprep.subr.bf16.mxu0 %v5745
    %6939 = vmatpush2.bf16.msra.mxu0 %v5744
    %6940 = vmatprep.mubr.bf16.mxu0 %v4232
    %6941 = vmatmul.mubr.bf16.gmra.mxu0 %v4231
    %v6942 = vpop.f32.mrf.mxu0
    %v6943 = vadd.f32 %v4260, %v6942
    %v6944 = vpop.f32.mrf.mxu0
    %v6945 = vadd.f32 %v4264, %v6944
    %v6946 = vpop.f32.mrf.mxu0
    %v6947 = vpop.f32.mrf.mxu0
    %6948 = vdwg.mxu0
    %6949 = vmatprep.subr.bf16.mxu0 %v5850
    %6950 = vmatpush1.bf16.msra.mxu0 %v5849
    %6951 = vmatprep.subr.bf16.mxu0 %v5843
    %6952 = vmatpush1.bf16.msra.mxu0 %v5842
    %6953 = vmatprep.subr.bf16.mxu0 %v5836
    %6954 = vmatpush1.bf16.msra.mxu0 %v5835
    %6955 = vmatprep.subr.bf16.mxu0 %v5829
    %6956 = vmatpush1.bf16.msra.mxu0 %v5828
    %6957 = vmatprep.subr.bf16.mxu0 %v5822
    %6958 = vmatpush1.bf16.msra.mxu0 %v5821
    %6959 = vmatprep.subr.bf16.mxu0 %v5815
    %6960 = vmatpush1.bf16.msra.mxu0 %v5814
    %6961 = vmatprep.subr.bf16.mxu0 %v5808
    %6962 = vmatpush1.bf16.msra.mxu0 %v5807
    %6963 = vmatprep.subr.bf16.mxu0 %v5801
    %6964 = vmatpush1.bf16.msra.mxu0 %v5800
    %6965 = vmatprep.subr.bf16.mxu0 %v5906
    %6966 = vmatpush2.bf16.msra.mxu0 %v5905
    %6967 = vmatprep.subr.bf16.mxu0 %v5899
    %6968 = vmatpush2.bf16.msra.mxu0 %v5898
    %6969 = vmatprep.subr.bf16.mxu0 %v5892
    %6970 = vmatpush2.bf16.msra.mxu0 %v5891
    %6971 = vmatprep.subr.bf16.mxu0 %v5885
    %6972 = vmatpush2.bf16.msra.mxu0 %v5884
    %6973 = vmatprep.subr.bf16.mxu0 %v5878
    %6974 = vmatpush2.bf16.msra.mxu0 %v5877
    %6975 = vmatprep.subr.bf16.mxu0 %v5871
    %6976 = vmatpush2.bf16.msra.mxu0 %v5870
    %6977 = vmatprep.subr.bf16.mxu0 %v5864
    %6978 = vmatpush2.bf16.msra.mxu0 %v5863
    %6979 = vmatprep.subr.bf16.mxu0 %v5857
    %6980 = vmatpush2.bf16.msra.mxu0 %v5856
    %6981 = vmatprep.mubr.bf16.mxu0 %v4234
    %6982 = vmatmul.mubr.bf16.gmra.mxu0 %v4233
    %v6983 = vpop.f32.mrf.mxu0
    %v6984 = vadd.f32 %v6943, %v6983
    %v6985 = vpop.f32.mrf.mxu0
    %v6986 = vadd.f32 %v6945, %v6985
    %v6987 = vpop.f32.mrf.mxu0
    %v6988 = vpop.f32.mrf.mxu0
    %6989 = vdwg.mxu0
    %6990 = vmatprep.subr.bf16.mxu0 %v5962
    %6991 = vmatpush1.bf16.msra.mxu0 %v5961
    %6992 = vmatprep.subr.bf16.mxu0 %v5955
    %6993 = vmatpush1.bf16.msra.mxu0 %v5954
    %6994 = vmatprep.subr.bf16.mxu0 %v5948
    %6995 = vmatpush1.bf16.msra.mxu0 %v5947
    %6996 = vmatprep.subr.bf16.mxu0 %v5941
    %6997 = vmatpush1.bf16.msra.mxu0 %v5940
    %6998 = vmatprep.subr.bf16.mxu0 %v5934
    %6999 = vmatpush1.bf16.msra.mxu0 %v5933
    %7000 = vmatprep.subr.bf16.mxu0 %v5927
    %7001 = vmatpush1.bf16.msra.mxu0 %v5926
    %7002 = vmatprep.subr.bf16.mxu0 %v5920
    %7003 = vmatpush1.bf16.msra.mxu0 %v5919
    %7004 = vmatprep.subr.bf16.mxu0 %v5913
    %7005 = vmatpush1.bf16.msra.mxu0 %v5912
    %7006 = vmatprep.subr.bf16.mxu0 %v6018
    %7007 = vmatpush2.bf16.msra.mxu0 %v6017
    %7008 = vmatprep.subr.bf16.mxu0 %v6011
    %7009 = vmatpush2.bf16.msra.mxu0 %v6010
    %7010 = vmatprep.subr.bf16.mxu0 %v6004
    %7011 = vmatpush2.bf16.msra.mxu0 %v6003
    %7012 = vmatprep.subr.bf16.mxu0 %v5997
    %7013 = vmatpush2.bf16.msra.mxu0 %v5996
    %7014 = vmatprep.subr.bf16.mxu0 %v5990
    %7015 = vmatpush2.bf16.msra.mxu0 %v5989
    %7016 = vmatprep.subr.bf16.mxu0 %v5983
    %7017 = vmatpush2.bf16.msra.mxu0 %v5982
    %7018 = vmatprep.subr.bf16.mxu0 %v5976
    %7019 = vmatpush2.bf16.msra.mxu0 %v5975
    %7020 = vmatprep.subr.bf16.mxu0 %v5969
    %7021 = vmatpush2.bf16.msra.mxu0 %v5968
    %7022 = vmatprep.mubr.bf16.mxu0 %v4236
    %7023 = vmatmul.mubr.bf16.gmra.mxu0 %v4235
    %v7024 = vpop.f32.mrf.mxu0
    %v7025 = vadd.f32 %v6984, %v7024
    %v7026 = vpop.f32.mrf.mxu0
    %v7027 = vadd.f32 %v6986, %v7026
    %v7028 = vpop.f32.mrf.mxu0
    %v7029 = vpop.f32.mrf.mxu0
    %7030 = vdwg.mxu0
    %7031 = vmatprep.subr.bf16.mxu0 %v6074
    %7032 = vmatpush1.bf16.msra.mxu0 %v6073
    %7033 = vmatprep.subr.bf16.mxu0 %v6067
    %7034 = vmatpush1.bf16.msra.mxu0 %v6066
    %7035 = vmatprep.subr.bf16.mxu0 %v6060
    %7036 = vmatpush1.bf16.msra.mxu0 %v6059
    %7037 = vmatprep.subr.bf16.mxu0 %v6053
    %7038 = vmatpush1.bf16.msra.mxu0 %v6052
    %7039 = vmatprep.subr.bf16.mxu0 %v6046
    %7040 = vmatpush1.bf16.msra.mxu0 %v6045
    %7041 = vmatprep.subr.bf16.mxu0 %v6039
    %7042 = vmatpush1.bf16.msra.mxu0 %v6038
    %7043 = vmatprep.subr.bf16.mxu0 %v6032
    %7044 = vmatpush1.bf16.msra.mxu0 %v6031
    %7045 = vmatprep.subr.bf16.mxu0 %v6025
    %7046 = vmatpush1.bf16.msra.mxu0 %v6024
    %7047 = vmatprep.subr.bf16.mxu0 %v6130
    %7048 = vmatpush2.bf16.msra.mxu0 %v6129
    %7049 = vmatprep.subr.bf16.mxu0 %v6123
    %7050 = vmatpush2.bf16.msra.mxu0 %v6122
    %7051 = vmatprep.subr.bf16.mxu0 %v6116
    %7052 = vmatpush2.bf16.msra.mxu0 %v6115
    %7053 = vmatprep.subr.bf16.mxu0 %v6109
    %7054 = vmatpush2.bf16.msra.mxu0 %v6108
    %7055 = vmatprep.subr.bf16.mxu0 %v6102
    %7056 = vmatpush2.bf16.msra.mxu0 %v6101
    %7057 = vmatprep.subr.bf16.mxu0 %v6095
    %7058 = vmatpush2.bf16.msra.mxu0 %v6094
    %7059 = vmatprep.subr.bf16.mxu0 %v6088
    %7060 = vmatpush2.bf16.msra.mxu0 %v6087
    %7061 = vmatprep.subr.bf16.mxu0 %v6081
    %7062 = vmatpush2.bf16.msra.mxu0 %v6080
    %7063 = vmatprep.mubr.bf16.mxu0 %v4238
    %7064 = vmatmul.mubr.bf16.gmra.mxu0 %v4237
    %v7065 = vpop.f32.mrf.mxu0
    %v7066 = vadd.f32 %v7025, %v7065
    %v7067 = vpop.f32.mrf.mxu0
    %v7068 = vadd.f32 %v7027, %v7067
    %v7069 = vpop.f32.mrf.mxu0
    %v7070 = vpop.f32.mrf.mxu0
    %7071 = vdwg.mxu0
    %7072 = vmatprep.subr.bf16.mxu0 0
    %7073 = vmatpush1.bf16.msra.mxu0 %v5739
    %7074 = vmatprep.subr.bf16.mxu0 0
    %7075 = vmatpush1.bf16.msra.mxu0 %v5732
    %7076 = vmatprep.subr.bf16.mxu0 0
    %7077 = vmatpush1.bf16.msra.mxu0 %v5725
    %7078 = vmatprep.subr.bf16.mxu0 0
    %7079 = vmatpush1.bf16.msra.mxu0 %v5718
    %7080 = vmatprep.subr.bf16.mxu0 0
    %7081 = vmatpush1.bf16.msra.mxu0 %v5711
    %7082 = vmatprep.subr.bf16.mxu0 0
    %7083 = vmatpush1.bf16.msra.mxu0 %v5704
    %7084 = vmatprep.subr.bf16.mxu0 0
    %7085 = vmatpush1.bf16.msra.mxu0 %v5697
    %7086 = vmatprep.subr.bf16.mxu0 0
    %7087 = vmatpush1.bf16.msra.mxu0 %v5690
    %7088 = vmatprep.subr.bf16.mxu0 0
    %7089 = vmatpush2.bf16.msra.mxu0 %v5795
    %7090 = vmatprep.subr.bf16.mxu0 0
    %7091 = vmatpush2.bf16.msra.mxu0 %v5788
    %7092 = vmatprep.subr.bf16.mxu0 0
    %7093 = vmatpush2.bf16.msra.mxu0 %v5781
    %7094 = vmatprep.subr.bf16.mxu0 0
    %7095 = vmatpush2.bf16.msra.mxu0 %v5774
    %7096 = vmatprep.subr.bf16.mxu0 0
    %7097 = vmatpush2.bf16.msra.mxu0 %v5767
    %7098 = vmatprep.subr.bf16.mxu0 0
    %7099 = vmatpush2.bf16.msra.mxu0 %v5760
    %7100 = vmatprep.subr.bf16.mxu0 0
    %7101 = vmatpush2.bf16.msra.mxu0 %v5753
    %7102 = vmatprep.subr.bf16.mxu0 0
    %7103 = vmatpush2.bf16.msra.mxu0 %v5746
    %7104 = vmatprep.mubr.bf16.mxu0 %v4232
    %7105 = vmatmul.mubr.bf16.gmra.mxu0 %v4231
    %v7106 = vpop.f32.mrf.mxu0
    %v7107 = vadd.f32 %v4268, %v7106
    %v7108 = vpop.f32.mrf.mxu0
    %v7109 = vpop.f32.mrf.mxu0
    %v7110 = vpop.f32.mrf.mxu0
    %7111 = vdwg.mxu0
    %7112 = vmatprep.subr.bf16.mxu0 0
    %7113 = vmatpush1.bf16.msra.mxu0 %v5851
    %7114 = vmatprep.subr.bf16.mxu0 0
    %7115 = vmatpush1.bf16.msra.mxu0 %v5844
    %7116 = vmatprep.subr.bf16.mxu0 0
    %7117 = vmatpush1.bf16.msra.mxu0 %v5837
    %7118 = vmatprep.subr.bf16.mxu0 0
    %7119 = vmatpush1.bf16.msra.mxu0 %v5830
    %7120 = vmatprep.subr.bf16.mxu0 0
    %7121 = vmatpush1.bf16.msra.mxu0 %v5823
    %7122 = vmatprep.subr.bf16.mxu0 0
    %7123 = vmatpush1.bf16.msra.mxu0 %v5816
    %7124 = vmatprep.subr.bf16.mxu0 0
    %7125 = vmatpush1.bf16.msra.mxu0 %v5809
    %7126 = vmatprep.subr.bf16.mxu0 0
    %7127 = vmatpush1.bf16.msra.mxu0 %v5802
    %7128 = vmatprep.subr.bf16.mxu0 0
    %7129 = vmatpush2.bf16.msra.mxu0 %v5907
    %7130 = vmatprep.subr.bf16.mxu0 0
    %7131 = vmatpush2.bf16.msra.mxu0 %v5900
    %7132 = vmatprep.subr.bf16.mxu0 0
    %7133 = vmatpush2.bf16.msra.mxu0 %v5893
    %7134 = vmatprep.subr.bf16.mxu0 0
    %7135 = vmatpush2.bf16.msra.mxu0 %v5886
    %7136 = vmatprep.subr.bf16.mxu0 0
    %7137 = vmatpush2.bf16.msra.mxu0 %v5879
    %7138 = vmatprep.subr.bf16.mxu0 0
    %7139 = vmatpush2.bf16.msra.mxu0 %v5872
    %7140 = vmatprep.subr.bf16.mxu0 0
    %7141 = vmatpush2.bf16.msra.mxu0 %v5865
    %7142 = vmatprep.subr.bf16.mxu0 0
    %7143 = vmatpush2.bf16.msra.mxu0 %v5858
    %7144 = vmatprep.mubr.bf16.mxu0 %v4234
    %7145 = vmatmul.mubr.bf16.gmra.mxu0 %v4233
    %v7146 = vpop.f32.mrf.mxu0
    %v7147 = vadd.f32 %v7107, %v7146
    %v7148 = vpop.f32.mrf.mxu0
    %v7149 = vpop.f32.mrf.mxu0
    %v7150 = vpop.f32.mrf.mxu0
    %7151 = vdwg.mxu0
    %7152 = vmatprep.subr.bf16.mxu0 0
    %7153 = vmatpush1.bf16.msra.mxu0 %v5963
    %7154 = vmatprep.subr.bf16.mxu0 0
    %7155 = vmatpush1.bf16.msra.mxu0 %v5956
    %7156 = vmatprep.subr.bf16.mxu0 0
    %7157 = vmatpush1.bf16.msra.mxu0 %v5949
    %7158 = vmatprep.subr.bf16.mxu0 0
    %7159 = vmatpush1.bf16.msra.mxu0 %v5942
    %7160 = vmatprep.subr.bf16.mxu0 0
    %7161 = vmatpush1.bf16.msra.mxu0 %v5935
    %7162 = vmatprep.subr.bf16.mxu0 0
    %7163 = vmatpush1.bf16.msra.mxu0 %v5928
    %7164 = vmatprep.subr.bf16.mxu0 0
    %7165 = vmatpush1.bf16.msra.mxu0 %v5921
    %7166 = vmatprep.subr.bf16.mxu0 0
    %7167 = vmatpush1.bf16.msra.mxu0 %v5914
    %7168 = vmatprep.subr.bf16.mxu0 0
    %7169 = vmatpush2.bf16.msra.mxu0 %v6019
    %7170 = vmatprep.subr.bf16.mxu0 0
    %7171 = vmatpush2.bf16.msra.mxu0 %v6012
    %7172 = vmatprep.subr.bf16.mxu0 0
    %7173 = vmatpush2.bf16.msra.mxu0 %v6005
    %7174 = vmatprep.subr.bf16.mxu0 0
    %7175 = vmatpush2.bf16.msra.mxu0 %v5998
    %7176 = vmatprep.subr.bf16.mxu0 0
    %7177 = vmatpush2.bf16.msra.mxu0 %v5991
    %7178 = vmatprep.subr.bf16.mxu0 0
    %7179 = vmatpush2.bf16.msra.mxu0 %v5984
    %7180 = vmatprep.subr.bf16.mxu0 0
    %7181 = vmatpush2.bf16.msra.mxu0 %v5977
    %7182 = vmatprep.subr.bf16.mxu0 0
    %7183 = vmatpush2.bf16.msra.mxu0 %v5970
    %7184 = vmatprep.mubr.bf16.mxu0 %v4236
    %7185 = vmatmul.mubr.bf16.gmra.mxu0 %v4235
    %v7186 = vpop.f32.mrf.mxu0
    %v7187 = vadd.f32 %v7147, %v7186
    %v7188 = vpop.f32.mrf.mxu0
    %v7189 = vpop.f32.mrf.mxu0
    %v7190 = vpop.f32.mrf.mxu0
    %7191 = vdwg.mxu0
    %7192 = vmatprep.subr.bf16.mxu0 0
    %7193 = vmatpush1.bf16.msra.mxu0 %v6075
    %7194 = vmatprep.subr.bf16.mxu0 0
    %7195 = vmatpush1.bf16.msra.mxu0 %v6068
    %7196 = vmatprep.subr.bf16.mxu0 0
    %7197 = vmatpush1.bf16.msra.mxu0 %v6061
    %7198 = vmatprep.subr.bf16.mxu0 0
    %7199 = vmatpush1.bf16.msra.mxu0 %v6054
    %7200 = vmatprep.subr.bf16.mxu0 0
    %7201 = vmatpush1.bf16.msra.mxu0 %v6047
    %7202 = vmatprep.subr.bf16.mxu0 0
    %7203 = vmatpush1.bf16.msra.mxu0 %v6040
    %7204 = vmatprep.subr.bf16.mxu0 0
    %7205 = vmatpush1.bf16.msra.mxu0 %v6033
    %7206 = vmatprep.subr.bf16.mxu0 0
    %7207 = vmatpush1.bf16.msra.mxu0 %v6026
    %7208 = vmatprep.subr.bf16.mxu0 0
    %7209 = vmatpush2.bf16.msra.mxu0 %v6131
    %7210 = vmatprep.subr.bf16.mxu0 0
    %7211 = vmatpush2.bf16.msra.mxu0 %v6124
    %7212 = vmatprep.subr.bf16.mxu0 0
    %7213 = vmatpush2.bf16.msra.mxu0 %v6117
    %7214 = vmatprep.subr.bf16.mxu0 0
    %7215 = vmatpush2.bf16.msra.mxu0 %v6110
    %7216 = vmatprep.subr.bf16.mxu0 0
    %7217 = vmatpush2.bf16.msra.mxu0 %v6103
    %7218 = vmatprep.subr.bf16.mxu0 0
    %7219 = vmatpush2.bf16.msra.mxu0 %v6096
    %7220 = vmatprep.subr.bf16.mxu0 0
    %7221 = vmatpush2.bf16.msra.mxu0 %v6089
    %7222 = vmatprep.subr.bf16.mxu0 0
    %7223 = vmatpush2.bf16.msra.mxu0 %v6082
    %7224 = vmatprep.mubr.bf16.mxu0 %v4238
    %7225 = vmatmul.mubr.bf16.gmra.mxu0 %v4237
    %v7226 = vpop.f32.mrf.mxu0
    %v7227 = vadd.f32 %v7187, %v7226
    %v7228 = vpop.f32.mrf.mxu0
    %v7229 = vpop.f32.mrf.mxu0
    %v7230 = vpop.f32.mrf.mxu0
    %7231 = vdwg.mxu0
    %v7232 = vsub.f32 0.0, %v6738
    %v7233 = vsub.f32 0.0, %v6740
    %v7234 = vsub.f32 0.0, %v6902
    %v7235 = vsub.f32 0.0, %v6904
    %v7236 = vsub.f32 0.0, %v7066
    %v7237 = vsub.f32 0.0, %v7068
    %v7238 = vsub.f32 0.0, %v7227
    %v7239 = vmul.f32 %v7232, 1.442695
    %v7240 = vpow.pop %v7239
    %v7241 = vmul.f32 %v7233, 1.442695
    %v7242 = vpow.pop %v7241
    %v7243 = vmul.f32 %v7234, 1.442695
    %v7244 = vpow.pop %v7243
    %v7245 = vmul.f32 %v7235, 1.442695
    %v7246 = vpow.pop %v7245
    %v7247 = vmul.f32 %v7236, 1.442695
    %v7248 = vpow.pop %v7247
    %v7249 = vmul.f32 %v7237, 1.442695
    %v7250 = vpow.pop %v7249
    %v7251 = vmul.f32 %v7238, 1.442695
    %v7252 = vpow.pop %v7251
    %v7253 = vadd.f32 %v7240, 1.0
    %v7254 = vadd.f32 %v7242, 1.0
    %v7255 = vadd.f32 %v7244, 1.0
    %v7256 = vadd.f32 %v7246, 1.0
    %v7257 = vadd.f32 %v7248, 1.0
    %v7258 = vadd.f32 %v7250, 1.0
    %v7259 = vadd.f32 %v7252, 1.0
    %v7260 = vrcp.pop %v7253
    %v7261 = vrcp.pop %v7254
    %v7262 = vrcp.pop %v7255
    %v7263 = vrcp.pop %v7256
    %v7264 = vrcp.pop %v7257
    %v7265 = vrcp.pop %v7258
    %v7266 = vrcp.pop %v7259
    %7267 = vst [vmem:[%s19] sm:$0xff] %v7260
    %7268 = vst [vmem:[%s19 + $0x8] sm:$0xff] %v7261
    %7269 = vst [vmem:[%s19 + $0x10] sm:$0xff] %v7262
    %7270 = vst [vmem:[%s19 + $0x18] sm:$0xff] %v7263
    %7271 = vst [vmem:[%s19 + $0x20] sm:$0xff] %v7264
    %7272 = vst [vmem:[%s19 + $0x28] sm:$0xff] %v7265
    %7273 = vst [vmem:[%s19 + $0x30] sm:$0xff] %v7266
    // Predicated region
    $region142: #{generator_forward.1} parent=1 // pred_check
      _
    $region143: #{generator_forward.1} parent=1 // pred_check_branch
      %7275 = sbr.rel (0) target = $region145
    $region144: #{generator_forward.1} parent=1 // pred_region
      _
    $region145: #{generator_forward.1} parent=1 // pred_fallthru
      _
    // Predicated region
    $region146: #{generator_forward.1} parent=1 // pred_check
      _
    $region147: #{generator_forward.1} parent=1 // pred_check_branch
      %7277 = sbr.rel (0) target = $region149
    $region148: #{generator_forward.1} parent=1 // pred_region
      _
    $region149: #{generator_forward.1} parent=1 // pred_fallthru
      _
    %7278 = vsyncpa [#allocation7], 1
    %7279 = vsyncpa [#allocation9], 1
    %7280 = vsyncpa [#allocation12], 1
    %7281 = vsyncpa [#allocation15], 1
    %7282 = vsyncpa [#allocation18], 1
    %7283 = vsyncpa [#allocation21], 1
    %7284 = vsyncpa [#allocation24], 1
    %7285 = vsyncpa [#allocation27], 1
    %7286 = vsyncpa [#allocation30], 1
  %7287 = vsyncmov [#allocation5]
  %s7288 = vpop.sfrf %7287
  %p7289 = scmp.eq.s32.totalorder %s7288, 0
  %p7290 = pneg %p7289
  %7292 = shalt.err (%p7290)
  %s7293 = scalar_lea.sflag [#allocation5], 1
  %7294 = vsyncmov %s7293
  %s7295 = vpop.sfrf %7294
  %p7296 = scmp.eq.s32.totalorder %s7295, 0
  %p7297 = pneg %p7296
  %7299 = shalt.err (%p7297)
  %s7300 = scalar_lea.sflag [#allocation5], 2
  %7301 = vsyncmov %s7300
  %s7302 = vpop.sfrf %7301
  %p7303 = scmp.eq.s32.totalorder %s7302, 0
  %p7304 = pneg %p7303
  %7306 = shalt.err (%p7304)

</llo_original>
